<compile_context>
chip_gen: v6e
topology: v6e:2x2x1
jax: 0.10.0
libtpu: 0.0.40
codegen_flags: <defaults>
</compile_context>

<pallas_src>
import functools

import jax
import jax.numpy as jnp
from jax.experimental import pallas as pl
from jax.experimental.pallas import tpu as pltpu


# ----------------------------------------------------------------------------
# Fused bottleneck kernel (one image per grid step)
# ----------------------------------------------------------------------------
def _bottleneck_kernel(x_ref, w1_ref, b1_ref, w2_ref, b2_ref, w3_ref, b3_ref,
                       *rest, rows, cols, cin, taps, proj, groups):
    if proj:
        ws_ref, bs_ref, o_ref, y1p_ref, y2_ref = rest
    else:
        o_ref, y1p_ref, y2_ref = rest

    cm = w2_ref.shape[-1]          # mid channels
    cdt = y1p_ref.dtype            # compute dtype (bf16)
    pad_l = 8                      # sublane-aligned interior column offset

    # ---- zero the padded conv1 scratch so halo rows/cols read back as 0 ----
    y1p_ref[...] = jnp.zeros(y1p_ref.shape, y1p_ref.dtype)

    # ---- conv1 (1x1) + BN1(shift) + ReLU: one matmul over all pixels --------
    x_all = x_ref[0]                                               # (M, Cg) bf16
    y1 = jnp.dot(x_all, w1_ref[...], preferred_element_type=jnp.float32)
    y1 = jnp.maximum(y1 + b1_ref[...], 0.0).astype(cdt)            # (M, c2in)
    for r in range(rows):          # scatter rows into the zero-padded halo scratch
        y1p_ref[r + 1, pad_l:pad_l + cols, :] = y1[r * cols:(r + 1) * cols, :]

    # ---- conv2 (3x3, stride folded away) + BN2(shift) + ReLU ----------------
    b2 = b2_ref[...]
    for r in range(rows):
        acc = jnp.zeros((cols, cm), jnp.float32)
        for t, (sh, sw) in enumerate(taps):
            patch = y1p_ref[r + sh, sw:sw + cols, :]               # (cols, c2in)
            acc = acc + jnp.dot(patch, w2_ref[t],
                                preferred_element_type=jnp.float32)
        y2_ref[r * cols:(r + 1) * cols, :] = jnp.maximum(acc + b2, 0.0).astype(cdt)

    # ---- conv3 (1x1) + BN3(shift) + shortcut + ReLU: whole-image matmuls ----
    y3 = jnp.dot(y2_ref[...], w3_ref[...],
                 preferred_element_type=jnp.float32) + b3_ref[...]
    if proj:
        xs = x_all[:, :cin] if groups > 1 else x_all     # parity (0,0) == x[::s, ::s]
        res = jnp.dot(xs, ws_ref[...],
                      preferred_element_type=jnp.float32) + bs_ref[...]
    else:
        res = x_all.astype(jnp.float32)                  # identity shortcut
    o_ref[0] = jnp.maximum(y3 + res, 0.0).astype(o_ref.dtype)


def _whole_array_spec(a):
    return pl.BlockSpec(a.shape, lambda b, _nd=a.ndim: (0,) * _nd)


# ----------------------------------------------------------------------------
# Wrapper: layout prep (NCHW -> NHWC [-> space-to-depth]) + pallas_call
# ----------------------------------------------------------------------------
def bottleneck_forward(x_nchw, params, stride, *, compute_dtype=jnp.bfloat16):
    n, c_in, h, w = x_nchw.shape
    cm = params["w1"].shape[1]           # mid channels
    c_out = params["w3"].shape[1]        # 4 * cm
    assert stride in (1, 2), "ResNet bottlenecks only use stride 1 or 2"
    proj = "ws" in params
    if not proj:
        assert stride == 1 and c_in == c_out, \
            "identity shortcut requires stride==1 and in_channels == 4*channels"

    # NOTE: in an NHWC end-to-end pipeline these transposes would be dropped;
    # XLA fuses transpose + space-to-depth + flatten into a single copy.
    x_nhwc = jnp.transpose(x_nchw, (0, 2, 3, 1))
    pad_l = 8

    if stride == 2:
        assert h % 2 == 0 and w % 2 == 0
        ho, wo = h // 2, w // 2
        groups = 4
        # space-to-depth: (N,H,W,C) -> (N, Ho*Wo, 4*C); channel = (ph*2+pw)*C + c
        xb = x_nhwc.reshape(n, ho, 2, wo, 2, c_in)
        xb = jnp.transpose(xb, (0, 1, 3, 2, 4, 5)).reshape(n, ho * wo, 4 * c_in)
        # conv1 becomes block-diagonal over the 4 parity groups.
        # TODO(synk): exact-flop alternative: 4 per-group matmuls instead.
        w1k = jnp.kron(jnp.eye(4, dtype=params["w1"].dtype), params["w1"])
        b1k = jnp.tile(params["b1"], 4)
        # Merge the 9 original 3x3 taps into 4 stride-1 taps over parity groups.
        c2in = 4 * cm
        w2eff = jnp.zeros((2, 2, c2in, cm), params["w2"].dtype)
        for dh in range(3):
            for dw in range(3):
                a, pa = (dh + 1) // 2, (dh + 1) % 2
                b, pb = (dw + 1) // 2, (dw + 1) % 2
                g = pa * 2 + pb
                w2eff = w2eff.at[a, b, g * cm:(g + 1) * cm, :].set(
                    params["w2"][dh * 3 + dw])
        w2k = w2eff.reshape(4, c2in, cm)
        taps = tuple((a, b + pad_l - 1) for a in range(2) for b in range(2))
        rows, cols = ho, wo
    else:
        ho, wo = h, w
        groups = 1
        xb = x_nhwc.reshape(n, h * w, c_in)
        w1k, b1k = params["w1"], params["b1"]
        c2in = cm
        w2k = params["w2"]                               # (9, cm, cm)
        taps = tuple((dh, dw + pad_l - 1) for dh in range(3) for dw in range(3))
        rows, cols = h, w

    cdt = compute_dtype
    args = [
        xb.astype(cdt),
        w1k.astype(cdt),
        b1k.reshape(1, -1).astype(jnp.float32),
        w2k.astype(cdt),
        params["b2"].reshape(1, -1).astype(jnp.float32),
        params["w3"].astype(cdt),
        params["b3"].reshape(1, -1).astype(jnp.float32),
    ]
    if proj:
        args += [params["ws"].astype(cdt),
                 params["bs"].reshape(1, -1).astype(jnp.float32)]

    m_pix = rows * cols
    in_specs = [pl.BlockSpec((1, m_pix, args[0].shape[-1]), lambda b: (b, 0, 0))]
    in_specs += [_whole_array_spec(a) for a in args[1:]]

    kernel = functools.partial(
        _bottleneck_kernel, rows=rows, cols=cols, cin=c_in,
        taps=taps, proj=proj, groups=groups)

    out2d = pl.pallas_call(
        kernel,
        out_shape=jax.ShapeDtypeStruct((n, m_pix, c_out), jnp.float32),
        grid=(n,),
        in_specs=in_specs,
        out_specs=pl.BlockSpec((1, m_pix, c_out), lambda b: (b, 0, 0)),
        scratch_shapes=[
            pltpu.VMEM((rows + 2, cols + 2 * pad_l, c2in), cdt),   # padded conv1 out
            pltpu.VMEM((m_pix, cm), cdt),                          # conv2 out
        ],
        compiler_params=pltpu.CompilerParams(
            dimension_semantics=("parallel",),
            vmem_limit_bytes=32 * 1024 * 1024),
    )(*args)

    out = out2d.reshape(n, ho, wo, c_out)
    return jnp.transpose(out, (0, 3, 1, 2))                         # -> NCHW


# ----------------------------------------------------------------------------
# Parameter folding (eval-mode BN -> weight scale + shift)
# ----------------------------------------------------------------------------
def fold_bn(gamma, beta, mean, var, eps=1e-5):
    scale = gamma / jnp.sqrt(var + eps)
    shift = beta - mean * scale
    return scale, shift


def prep_params(raw):
    s1, b1 = fold_bn(*raw["bn1"])
    s2, b2 = fold_bn(*raw["bn2"])
    s3, b3 = fold_bn(*raw["bn3"])
    p = {
        "w1": jnp.transpose(raw["w1"][:, :, 0, 0], (1, 0)) * s1[None, :],
        "b1": b1,
        "w2": jnp.stack([jnp.transpose(raw["w2"][:, :, dh, dw], (1, 0)) * s2[None, :]
                         for dh in range(3) for dw in range(3)]),   # (9, cm, cm)
        "b2": b2,
        "w3": jnp.transpose(raw["w3"][:, :, 0, 0], (1, 0)) * s3[None, :],
        "b3": b3,
    }
    if "ws" in raw:
        ss, bs = fold_bn(*raw["bns"])
        p["ws"] = jnp.transpose(raw["ws"][:, :, 0, 0], (1, 0)) * ss[None, :]
        p["bs"] = bs
    return p


# ----------------------------------------------------------------------------
# Pure-JAX reference (mirrors the PyTorch module, eval-mode BN, float32)
# ----------------------------------------------------------------------------
def _conv_ref(x, w, stride, pad):
    return jax.lax.conv_general_dilated(
        x, w, (stride, stride), [(pad, pad), (pad, pad)],
        dimension_numbers=("NCHW", "OIHW", "NCHW"))


def _bn_ref(x, gamma, beta, mean, var, eps=1e-5):
    inv = gamma / jnp.sqrt(var + eps)
    return (x - mean[None, :, None, None]) * inv[None, :, None, None] + \
        beta[None, :, None, None]


def bottleneck_ref(x, raw, stride):
    y = _conv_ref(x, raw["w1"], 1, 0)
    y = jnp.maximum(_bn_ref(y, *raw["bn1"]), 0.0)
    y = _conv_ref(y, raw["w2"], stride, 1)
    y = jnp.maximum(_bn_ref(y, *raw["bn2"]), 0.0)
    y = _conv_ref(y, raw["w3"], 1, 0)
    y = _bn_ref(y, *raw["bn3"])
    if "ws" in raw:
        s = _bn_ref(_conv_ref(x, raw["ws"], stride, 0), *raw["bns"])
    else:
        s = x
    return jnp.maximum(y + s, 0.0)


# ----------------------------------------------------------------------------
# Deterministic parameter construction
# ----------------------------------------------------------------------------
def make_raw_params(key, in_channels, channels, stride):
    out_channels = channels * 4
    keys = jax.random.split(key, 8)

    def conv_w(k, o, i, kh, kw):
        return jax.random.normal(k, (o, i, kh, kw), jnp.float32) * 0.1

    def bn_p(k, c):
        k1, k2, k3, k4 = jax.random.split(k, 4)
        return (jax.random.uniform(k1, (c,), jnp.float32, 0.5, 1.5),
                jax.random.normal(k2, (c,), jnp.float32) * 0.1,
                jax.random.normal(k3, (c,), jnp.float32) * 0.1,
                jax.random.uniform(k4, (c,), jnp.float32, 0.5, 1.5))

    raw = {
        "w1": conv_w(keys[0], channels, in_channels, 1, 1), "bn1": bn_p(keys[1], channels),
        "w2": conv_w(keys[2], channels, channels, 3, 3),    "bn2": bn_p(keys[3], channels),
        "w3": conv_w(keys[4], out_channels, channels, 1, 1), "bn3": bn_p(keys[5], out_channels),
    }
    if stride != 1 or in_channels != out_channels:
        raw["ws"] = conv_w(keys[6], out_channels, in_channels, 1, 1)
        raw["bns"] = bn_p(keys[7], out_channels)
    return raw


# ----------------------------------------------------------------------------
if __name__ == "__main__":
    key = jax.random.PRNGKey(0)
    kx, kp, kx2, kp2 = jax.random.split(key, 4)

    # Config A: stride-2 bottleneck with projection shortcut.
    x = jax.random.normal(kx, (2, 4, 16, 16), jnp.float32)           # NCHW
    raw = make_raw_params(kp, in_channels=4, channels=4, stride=2)
    params = prep_params(raw)
    out = jax.block_until_ready(bottleneck_forward(x, params, stride=2))
    ref = jax.block_until_ready(bottleneck_ref(x, raw, stride=2))
    assert out.shape == ref.shape == (2, 16, 8, 8)
    err = float(jnp.max(jnp.abs(out - ref)))
    assert jnp.allclose(out, ref, atol=5e-2, rtol=5e-2), f"max abs err {err}"

    # Config B: stride-1 bottleneck with identity shortcut.
    x2 = jax.random.normal(kx2, (2, 16, 16, 16), jnp.float32)
    raw2 = make_raw_params(kp2, in_channels=16, channels=4, stride=1)
    params2 = prep_params(raw2)
    out2 = jax.block_until_ready(bottleneck_forward(x2, params2, stride=1))
    ref2 = jax.block_until_ready(bottleneck_ref(x2, raw2, stride=1))
    assert out2.shape == ref2.shape == (2, 16, 16, 16)
    err2 = float(jnp.max(jnp.abs(out2 - ref2)))
    assert jnp.allclose(out2, ref2, atol=5e-2, rtol=5e-2), f"max abs err {err2}"

    print("KERNEL_OK")
</pallas_src>

<mosaic_0001>
module attributes {stable_mosaic.version = 11 : i64} {
  func.func @_bottleneck_kernel(%arg0: i32, %arg1: memref<1x64x16xbf16, #tpu.memory_space<vmem>>, %arg2: memref<16x16xbf16, #tpu.memory_space<vmem>>, %arg3: memref<1x16xf32, #tpu.memory_space<vmem>>, %arg4: memref<4x16x4xbf16, #tpu.memory_space<vmem>>, %arg5: memref<1x4xf32, #tpu.memory_space<vmem>>, %arg6: memref<4x16xbf16, #tpu.memory_space<vmem>>, %arg7: memref<1x16xf32, #tpu.memory_space<vmem>>, %arg8: memref<4x16xbf16, #tpu.memory_space<vmem>>, %arg9: memref<1x16xf32, #tpu.memory_space<vmem>>, %arg10: memref<1x64x16xf32, #tpu.memory_space<vmem>>, %arg11: memref<10x24x16xbf16, #tpu.memory_space<vmem>>, %arg12: memref<64x4xbf16, #tpu.memory_space<vmem>>) attributes {dimension_semantics = [#tpu.dimension_semantics<parallel>], iteration_bounds = array<i64: 2>, scalar_prefetch = 0 : i64, scratch_operands = 2 : i64, tpu.core_type = #tpu.core_type<tc>, window_params = [{transform_indices = @transform_0, window_bounds = array<i64: 1, 64, 16>}, {pipeline_mode = #tpu.pipeline_mode<synchronous>, transform_indices = @transform_1, window_bounds = array<i64: 16, 16>}, {pipeline_mode = #tpu.pipeline_mode<synchronous>, transform_indices = @transform_2, window_bounds = array<i64: 1, 16>}, {pipeline_mode = #tpu.pipeline_mode<synchronous>, transform_indices = @transform_3, window_bounds = array<i64: 4, 16, 4>}, {pipeline_mode = #tpu.pipeline_mode<synchronous>, transform_indices = @transform_4, window_bounds = array<i64: 1, 4>}, {pipeline_mode = #tpu.pipeline_mode<synchronous>, transform_indices = @transform_5, window_bounds = array<i64: 4, 16>}, {pipeline_mode = #tpu.pipeline_mode<synchronous>, transform_indices = @transform_6, window_bounds = array<i64: 1, 16>}, {pipeline_mode = #tpu.pipeline_mode<synchronous>, transform_indices = @transform_7, window_bounds = array<i64: 4, 16>}, {pipeline_mode = #tpu.pipeline_mode<synchronous>, transform_indices = @transform_8, window_bounds = array<i64: 1, 16>}, {transform_indices = @transform_9, window_bounds = array<i64: 1, 64, 16>}]} {
    %cst = arith.constant 0.000000e+00 : bf16
    %0 = vector.broadcast %cst : bf16 to vector<10x24x16xbf16>
    %c0 = arith.constant 0 : index
    %c0_0 = arith.constant 0 : index
    %c0_1 = arith.constant 0 : index
    %1 = vector.load %arg11[%c0, %c0_0, %c0_1] : memref<10x24x16xbf16, #tpu.memory_space<vmem>>, vector<10x24x16xbf16>
    tpu.vector_store %arg11[%c0, %c0_0, %c0_1], %0 {strides = array<i32>} : memref<10x24x16xbf16, #tpu.memory_space<vmem>>, vector<10x24x16xbf16>,
    %c0_2 = arith.constant 0 : index
    %c0_3 = arith.constant 0 : index
    %c0_4 = arith.constant 0 : index
    %2 = vector.load %arg1[%c0_2, %c0_3, %c0_4] : memref<1x64x16xbf16, #tpu.memory_space<vmem>>, vector<1x64x16xbf16>
    %3 = vector.shape_cast %2 : vector<1x64x16xbf16> to vector<64x16xbf16>
    %c0_5 = arith.constant 0 : index
    %c0_6 = arith.constant 0 : index
    %4 = vector.load %arg2[%c0_5, %c0_6] : memref<16x16xbf16, #tpu.memory_space<vmem>>, vector<16x16xbf16>
    %cst_7 = arith.constant dense<0.000000e+00> : vector<64x16xf32>
    %5 = tpu.matmul %3, %4, %cst_7 {dimension_numbers = #tpu.dot_dimension_numbers<[1], [0], [0], [1], [0, 0, 1, 1], [], []>} : vector<64x16xbf16>, vector<16x16xbf16>, vector<64x16xf32> -> vector<64x16xf32>
    %c0_8 = arith.constant 0 : index
    %c0_9 = arith.constant 0 : index
    %6 = vector.load %arg3[%c0_8, %c0_9] : memref<1x16xf32, #tpu.memory_space<vmem>>, vector<1x16xf32>
    %7 = vector.broadcast %6 : vector<1x16xf32> to vector<64x16xf32>
    %8 = arith.addf %5, %7 : vector<64x16xf32>
    %cst_10 = arith.constant 0.000000e+00 : f32
    %9 = vector.broadcast %cst_10 : f32 to vector<64x16xf32>
    %10 = arith.maximumf %8, %9 : vector<64x16xf32>
    %11 = arith.truncf %10 : vector<64x16xf32> to vector<64x16xbf16>
    %12 = vector.extract_strided_slice %11 {offsets = [0, 0], sizes = [8, 16], strides = [1, 1]} : vector<64x16xbf16> to vector<8x16xbf16>
    %c1 = arith.constant 1 : index
    %c8 = arith.constant 8 : index
    %c0_11 = arith.constant 0 : index
    %13 = vector.load %arg11[%c1, %c8, %c0_11] : memref<10x24x16xbf16, #tpu.memory_space<vmem>>, vector<1x8x16xbf16>
    %14 = vector.shape_cast %13 : vector<1x8x16xbf16> to vector<8x16xbf16>
    %15 = vector.shape_cast %12 : vector<8x16xbf16> to vector<1x8x16xbf16>
    tpu.vector_store %arg11[%c1, %c8, %c0_11], %15 {strides = array<i32>} : memref<10x24x16xbf16, #tpu.memory_space<vmem>>, vector<1x8x16xbf16>,
    %16 = vector.extract_strided_slice %11 {offsets = [8, 0], sizes = [8, 16], strides = [1, 1]} : vector<64x16xbf16> to vector<8x16xbf16>
    %c2 = arith.constant 2 : index
    %c8_12 = arith.constant 8 : index
    %c0_13 = arith.constant 0 : index
    %17 = vector.load %arg11[%c2, %c8_12, %c0_13] : memref<10x24x16xbf16, #tpu.memory_space<vmem>>, vector<1x8x16xbf16>
    %18 = vector.shape_cast %17 : vector<1x8x16xbf16> to vector<8x16xbf16>
    %19 = vector.shape_cast %16 : vector<8x16xbf16> to vector<1x8x16xbf16>
    tpu.vector_store %arg11[%c2, %c8_12, %c0_13], %19 {strides = array<i32>} : memref<10x24x16xbf16, #tpu.memory_space<vmem>>, vector<1x8x16xbf16>,
    %20 = vector.extract_strided_slice %11 {offsets = [16, 0], sizes = [8, 16], strides = [1, 1]} : vector<64x16xbf16> to vector<8x16xbf16>
    %c3 = arith.constant 3 : index
    %c8_14 = arith.constant 8 : index
    %c0_15 = arith.constant 0 : index
    %21 = vector.load %arg11[%c3, %c8_14, %c0_15] : memref<10x24x16xbf16, #tpu.memory_space<vmem>>, vector<1x8x16xbf16>
    %22 = vector.shape_cast %21 : vector<1x8x16xbf16> to vector<8x16xbf16>
    %23 = vector.shape_cast %20 : vector<8x16xbf16> to vector<1x8x16xbf16>
    tpu.vector_store %arg11[%c3, %c8_14, %c0_15], %23 {strides = array<i32>} : memref<10x24x16xbf16, #tpu.memory_space<vmem>>, vector<1x8x16xbf16>,
    %24 = vector.extract_strided_slice %11 {offsets = [24, 0], sizes = [8, 16], strides = [1, 1]} : vector<64x16xbf16> to vector<8x16xbf16>
    %c4 = arith.constant 4 : index
    %c8_16 = arith.constant 8 : index
    %c0_17 = arith.constant 0 : index
    %25 = vector.load %arg11[%c4, %c8_16, %c0_17] : memref<10x24x16xbf16, #tpu.memory_space<vmem>>, vector<1x8x16xbf16>
    %26 = vector.shape_cast %25 : vector<1x8x16xbf16> to vector<8x16xbf16>
    %27 = vector.shape_cast %24 : vector<8x16xbf16> to vector<1x8x16xbf16>
    tpu.vector_store %arg11[%c4, %c8_16, %c0_17], %27 {strides = array<i32>} : memref<10x24x16xbf16, #tpu.memory_space<vmem>>, vector<1x8x16xbf16>,
    %28 = vector.extract_strided_slice %11 {offsets = [32, 0], sizes = [8, 16], strides = [1, 1]} : vector<64x16xbf16> to vector<8x16xbf16>
    %c5 = arith.constant 5 : index
    %c8_18 = arith.constant 8 : index
    %c0_19 = arith.constant 0 : index
    %29 = vector.load %arg11[%c5, %c8_18, %c0_19] : memref<10x24x16xbf16, #tpu.memory_space<vmem>>, vector<1x8x16xbf16>
    %30 = vector.shape_cast %29 : vector<1x8x16xbf16> to vector<8x16xbf16>
    %31 = vector.shape_cast %28 : vector<8x16xbf16> to vector<1x8x16xbf16>
    tpu.vector_store %arg11[%c5, %c8_18, %c0_19], %31 {strides = array<i32>} : memref<10x24x16xbf16, #tpu.memory_space<vmem>>, vector<1x8x16xbf16>,
    %32 = vector.extract_strided_slice %11 {offsets = [40, 0], sizes = [8, 16], strides = [1, 1]} : vector<64x16xbf16> to vector<8x16xbf16>
    %c6 = arith.constant 6 : index
    %c8_20 = arith.constant 8 : index
    %c0_21 = arith.constant 0 : index
    %33 = vector.load %arg11[%c6, %c8_20, %c0_21] : memref<10x24x16xbf16, #tpu.memory_space<vmem>>, vector<1x8x16xbf16>
    %34 = vector.shape_cast %33 : vector<1x8x16xbf16> to vector<8x16xbf16>
    %35 = vector.shape_cast %32 : vector<8x16xbf16> to vector<1x8x16xbf16>
    tpu.vector_store %arg11[%c6, %c8_20, %c0_21], %35 {strides = array<i32>} : memref<10x24x16xbf16, #tpu.memory_space<vmem>>, vector<1x8x16xbf16>,
    %36 = vector.extract_strided_slice %11 {offsets = [48, 0], sizes = [8, 16], strides = [1, 1]} : vector<64x16xbf16> to vector<8x16xbf16>
    %c7 = arith.constant 7 : index
    %c8_22 = arith.constant 8 : index
    %c0_23 = arith.constant 0 : index
    %37 = vector.load %arg11[%c7, %c8_22, %c0_23] : memref<10x24x16xbf16, #tpu.memory_space<vmem>>, vector<1x8x16xbf16>
    %38 = vector.shape_cast %37 : vector<1x8x16xbf16> to vector<8x16xbf16>
    %39 = vector.shape_cast %36 : vector<8x16xbf16> to vector<1x8x16xbf16>
    tpu.vector_store %arg11[%c7, %c8_22, %c0_23], %39 {strides = array<i32>} : memref<10x24x16xbf16, #tpu.memory_space<vmem>>, vector<1x8x16xbf16>,
    %40 = vector.extract_strided_slice %11 {offsets = [56, 0], sizes = [8, 16], strides = [1, 1]} : vector<64x16xbf16> to vector<8x16xbf16>
    %c8_24 = arith.constant 8 : index
    %c8_25 = arith.constant 8 : index
    %c0_26 = arith.constant 0 : index
    %41 = vector.load %arg11[%c8_24, %c8_25, %c0_26] : memref<10x24x16xbf16, #tpu.memory_space<vmem>>, vector<1x8x16xbf16>
    %42 = vector.shape_cast %41 : vector<1x8x16xbf16> to vector<8x16xbf16>
    %43 = vector.shape_cast %40 : vector<8x16xbf16> to vector<1x8x16xbf16>
    tpu.vector_store %arg11[%c8_24, %c8_25, %c0_26], %43 {strides = array<i32>} : memref<10x24x16xbf16, #tpu.memory_space<vmem>>, vector<1x8x16xbf16>,
    %c0_27 = arith.constant 0 : index
    %c0_28 = arith.constant 0 : index
    %44 = vector.load %arg5[%c0_27, %c0_28] : memref<1x4xf32, #tpu.memory_space<vmem>>, vector<1x4xf32>
    %cst_29 = arith.constant 0.000000e+00 : f32
    %45 = vector.broadcast %cst_29 : f32 to vector<8x4xf32>
    %c0_30 = arith.constant 0 : index
    %c7_31 = arith.constant 7 : index
    %c0_32 = arith.constant 0 : index
    %46 = vector.load %arg11[%c0_30, %c7_31, %c0_32] : memref<10x24x16xbf16, #tpu.memory_space<vmem>>, vector<1x8x16xbf16>
    %47 = vector.shape_cast %46 : vector<1x8x16xbf16> to vector<8x16xbf16>
    %c0_33 = arith.constant 0 : index
    %c0_34 = arith.constant 0 : index
    %c0_35 = arith.constant 0 : index
    %48 = vector.load %arg4[%c0_33, %c0_34, %c0_35] : memref<4x16x4xbf16, #tpu.memory_space<vmem>>, vector<1x16x4xbf16>
    %49 = vector.shape_cast %48 : vector<1x16x4xbf16> to vector<16x4xbf16>
    %cst_36 = arith.constant dense<0.000000e+00> : vector<8x4xf32>
    %50 = tpu.matmul %47, %49, %cst_36 {dimension_numbers = #tpu.dot_dimension_numbers<[1], [0], [0], [1], [0, 0, 1, 1], [], []>} : vector<8x16xbf16>, vector<16x4xbf16>, vector<8x4xf32> -> vector<8x4xf32>
    %51 = arith.addf %45, %50 : vector<8x4xf32>
    %c0_37 = arith.constant 0 : index
    %c8_38 = arith.constant 8 : index
    %c0_39 = arith.constant 0 : index
    %52 = vector.load %arg11[%c0_37, %c8_38, %c0_39] : memref<10x24x16xbf16, #tpu.memory_space<vmem>>, vector<1x8x16xbf16>
    %53 = vector.shape_cast %52 : vector<1x8x16xbf16> to vector<8x16xbf16>
    %c1_40 = arith.constant 1 : index
    %c0_41 = arith.constant 0 : index
    %c0_42 = arith.constant 0 : index
    %54 = vector.load %arg4[%c1_40, %c0_41, %c0_42] : memref<4x16x4xbf16, #tpu.memory_space<vmem>>, vector<1x16x4xbf16>
    %55 = vector.shape_cast %54 : vector<1x16x4xbf16> to vector<16x4xbf16>
    %cst_43 = arith.constant dense<0.000000e+00> : vector<8x4xf32>
    %56 = tpu.matmul %53, %55, %cst_43 {dimension_numbers = #tpu.dot_dimension_numbers<[1], [0], [0], [1], [0, 0, 1, 1], [], []>} : vector<8x16xbf16>, vector<16x4xbf16>, vector<8x4xf32> -> vector<8x4xf32>
    %57 = arith.addf %51, %56 : vector<8x4xf32>
    %c1_44 = arith.constant 1 : index
    %c7_45 = arith.constant 7 : index
    %c0_46 = arith.constant 0 : index
    %58 = vector.load %arg11[%c1_44, %c7_45, %c0_46] : memref<10x24x16xbf16, #tpu.memory_space<vmem>>, vector<1x8x16xbf16>
    %59 = vector.shape_cast %58 : vector<1x8x16xbf16> to vector<8x16xbf16>
    %c2_47 = arith.constant 2 : index
    %c0_48 = arith.constant 0 : index
    %c0_49 = arith.constant 0 : index
    %60 = vector.load %arg4[%c2_47, %c0_48, %c0_49] : memref<4x16x4xbf16, #tpu.memory_space<vmem>>, vector<1x16x4xbf16>
    %61 = vector.shape_cast %60 : vector<1x16x4xbf16> to vector<16x4xbf16>
    %cst_50 = arith.constant dense<0.000000e+00> : vector<8x4xf32>
    %62 = tpu.matmul %59, %61, %cst_50 {dimension_numbers = #tpu.dot_dimension_numbers<[1], [0], [0], [1], [0, 0, 1, 1], [], []>} : vector<8x16xbf16>, vector<16x4xbf16>, vector<8x4xf32> -> vector<8x4xf32>
    %63 = arith.addf %57, %62 : vector<8x4xf32>
    %c1_51 = arith.constant 1 : index
    %c8_52 = arith.constant 8 : index
    %c0_53 = arith.constant 0 : index
    %64 = vector.load %arg11[%c1_51, %c8_52, %c0_53] : memref<10x24x16xbf16, #tpu.memory_space<vmem>>, vector<1x8x16xbf16>
    %65 = vector.shape_cast %64 : vector<1x8x16xbf16> to vector<8x16xbf16>
    %c3_54 = arith.constant 3 : index
    %c0_55 = arith.constant 0 : index
    %c0_56 = arith.constant 0 : index
    %66 = vector.load %arg4[%c3_54, %c0_55, %c0_56] : memref<4x16x4xbf16, #tpu.memory_space<vmem>>, vector<1x16x4xbf16>
    %67 = vector.shape_cast %66 : vector<1x16x4xbf16> to vector<16x4xbf16>
    %cst_57 = arith.constant dense<0.000000e+00> : vector<8x4xf32>
    %68 = tpu.matmul %65, %67, %cst_57 {dimension_numbers = #tpu.dot_dimension_numbers<[1], [0], [0], [1], [0, 0, 1, 1], [], []>} : vector<8x16xbf16>, vector<16x4xbf16>, vector<8x4xf32> -> vector<8x4xf32>
    %69 = arith.addf %63, %68 : vector<8x4xf32>
    %70 = vector.broadcast %44 : vector<1x4xf32> to vector<8x4xf32>
    %71 = arith.addf %69, %70 : vector<8x4xf32>
    %cst_58 = arith.constant 0.000000e+00 : f32
    %72 = vector.broadcast %cst_58 : f32 to vector<8x4xf32>
    %73 = arith.maximumf %71, %72 : vector<8x4xf32>
    %74 = arith.truncf %73 : vector<8x4xf32> to vector<8x4xbf16>
    %c0_59 = arith.constant 0 : index
    %c0_60 = arith.constant 0 : index
    %75 = vector.load %arg12[%c0_59, %c0_60] : memref<64x4xbf16, #tpu.memory_space<vmem>>, vector<8x4xbf16>
    tpu.vector_store %arg12[%c0_59, %c0_60], %74 {strides = array<i32>} : memref<64x4xbf16, #tpu.memory_space<vmem>>, vector<8x4xbf16>,
    %cst_61 = arith.constant 0.000000e+00 : f32
    %76 = vector.broadcast %cst_61 : f32 to vector<8x4xf32>
    %c1_62 = arith.constant 1 : index
    %c7_63 = arith.constant 7 : index
    %c0_64 = arith.constant 0 : index
    %77 = vector.load %arg11[%c1_62, %c7_63, %c0_64] : memref<10x24x16xbf16, #tpu.memory_space<vmem>>, vector<1x8x16xbf16>
    %78 = vector.shape_cast %77 : vector<1x8x16xbf16> to vector<8x16xbf16>
    %c0_65 = arith.constant 0 : index
    %c0_66 = arith.constant 0 : index
    %c0_67 = arith.constant 0 : index
    %79 = vector.load %arg4[%c0_65, %c0_66, %c0_67] : memref<4x16x4xbf16, #tpu.memory_space<vmem>>, vector<1x16x4xbf16>
    %80 = vector.shape_cast %79 : vector<1x16x4xbf16> to vector<16x4xbf16>
    %cst_68 = arith.constant dense<0.000000e+00> : vector<8x4xf32>
    %81 = tpu.matmul %78, %80, %cst_68 {dimension_numbers = #tpu.dot_dimension_numbers<[1], [0], [0], [1], [0, 0, 1, 1], [], []>} : vector<8x16xbf16>, vector<16x4xbf16>, vector<8x4xf32> -> vector<8x4xf32>
    %82 = arith.addf %76, %81 : vector<8x4xf32>
    %c1_69 = arith.constant 1 : index
    %c8_70 = arith.constant 8 : index
    %c0_71 = arith.constant 0 : index
    %83 = vector.load %arg11[%c1_69, %c8_70, %c0_71] : memref<10x24x16xbf16, #tpu.memory_space<vmem>>, vector<1x8x16xbf16>
    %84 = vector.shape_cast %83 : vector<1x8x16xbf16> to vector<8x16xbf16>
    %c1_72 = arith.constant 1 : index
    %c0_73 = arith.constant 0 : index
    %c0_74 = arith.constant 0 : index
    %85 = vector.load %arg4[%c1_72, %c0_73, %c0_74] : memref<4x16x4xbf16, #tpu.memory_space<vmem>>, vector<1x16x4xbf16>
    %86 = vector.shape_cast %85 : vector<1x16x4xbf16> to vector<16x4xbf16>
    %cst_75 = arith.constant dense<0.000000e+00> : vector<8x4xf32>
    %87 = tpu.matmul %84, %86, %cst_75 {dimension_numbers = #tpu.dot_dimension_numbers<[1], [0], [0], [1], [0, 0, 1, 1], [], []>} : vector<8x16xbf16>, vector<16x4xbf16>, vector<8x4xf32> -> vector<8x4xf32>
    %88 = arith.addf %82, %87 : vector<8x4xf32>
    %c2_76 = arith.constant 2 : index
    %c7_77 = arith.constant 7 : index
    %c0_78 = arith.constant 0 : index
    %89 = vector.load %arg11[%c2_76, %c7_77, %c0_78] : memref<10x24x16xbf16, #tpu.memory_space<vmem>>, vector<1x8x16xbf16>
    %90 = vector.shape_cast %89 : vector<1x8x16xbf16> to vector<8x16xbf16>
    %c2_79 = arith.constant 2 : index
    %c0_80 = arith.constant 0 : index
    %c0_81 = arith.constant 0 : index
    %91 = vector.load %arg4[%c2_79, %c0_80, %c0_81] : memref<4x16x4xbf16, #tpu.memory_space<vmem>>, vector<1x16x4xbf16>
    %92 = vector.shape_cast %91 : vector<1x16x4xbf16> to vector<16x4xbf16>
    %cst_82 = arith.constant dense<0.000000e+00> : vector<8x4xf32>
    %93 = tpu.matmul %90, %92, %cst_82 {dimension_numbers = #tpu.dot_dimension_numbers<[1], [0], [0], [1], [0, 0, 1, 1], [], []>} : vector<8x16xbf16>, vector<16x4xbf16>, vector<8x4xf32> -> vector<8x4xf32>
    %94 = arith.addf %88, %93 : vector<8x4xf32>
    %c2_83 = arith.constant 2 : index
    %c8_84 = arith.constant 8 : index
    %c0_85 = arith.constant 0 : index
    %95 = vector.load %arg11[%c2_83, %c8_84, %c0_85] : memref<10x24x16xbf16, #tpu.memory_space<vmem>>, vector<1x8x16xbf16>
    %96 = vector.shape_cast %95 : vector<1x8x16xbf16> to vector<8x16xbf16>
    %c3_86 = arith.constant 3 : index
    %c0_87 = arith.constant 0 : index
    %c0_88 = arith.constant 0 : index
    %97 = vector.load %arg4[%c3_86, %c0_87, %c0_88] : memref<4x16x4xbf16, #tpu.memory_space<vmem>>, vector<1x16x4xbf16>
    %98 = vector.shape_cast %97 : vector<1x16x4xbf16> to vector<16x4xbf16>
    %cst_89 = arith.constant dense<0.000000e+00> : vector<8x4xf32>
    %99 = tpu.matmul %96, %98, %cst_89 {dimension_numbers = #tpu.dot_dimension_numbers<[1], [0], [0], [1], [0, 0, 1, 1], [], []>} : vector<8x16xbf16>, vector<16x4xbf16>, vector<8x4xf32> -> vector<8x4xf32>
    %100 = arith.addf %94, %99 : vector<8x4xf32>
    %101 = vector.broadcast %44 : vector<1x4xf32> to vector<8x4xf32>
    %102 = arith.addf %100, %101 : vector<8x4xf32>
    %cst_90 = arith.constant 0.000000e+00 : f32
    %103 = vector.broadcast %cst_90 : f32 to vector<8x4xf32>
    %104 = arith.maximumf %102, %103 : vector<8x4xf32>
    %105 = arith.truncf %104 : vector<8x4xf32> to vector<8x4xbf16>
    %c8_91 = arith.constant 8 : index
    %c0_92 = arith.constant 0 : index
    %106 = vector.load %arg12[%c8_91, %c0_92] : memref<64x4xbf16, #tpu.memory_space<vmem>>, vector<8x4xbf16>
    tpu.vector_store %arg12[%c8_91, %c0_92], %105 {strides = array<i32>} : memref<64x4xbf16, #tpu.memory_space<vmem>>, vector<8x4xbf16>,
    %cst_93 = arith.constant 0.000000e+00 : f32
    %107 = vector.broadcast %cst_93 : f32 to vector<8x4xf32>
    %c2_94 = arith.constant 2 : index
    %c7_95 = arith.constant 7 : index
    %c0_96 = arith.constant 0 : index
    %108 = vector.load %arg11[%c2_94, %c7_95, %c0_96] : memref<10x24x16xbf16, #tpu.memory_space<vmem>>, vector<1x8x16xbf16>
    %109 = vector.shape_cast %108 : vector<1x8x16xbf16> to vector<8x16xbf16>
    %c0_97 = arith.constant 0 : index
    %c0_98 = arith.constant 0 : index
    %c0_99 = arith.constant 0 : index
    %110 = vector.load %arg4[%c0_97, %c0_98, %c0_99] : memref<4x16x4xbf16, #tpu.memory_space<vmem>>, vector<1x16x4xbf16>
    %111 = vector.shape_cast %110 : vector<1x16x4xbf16> to vector<16x4xbf16>
    %cst_100 = arith.constant dense<0.000000e+00> : vector<8x4xf32>
    %112 = tpu.matmul %109, %111, %cst_100 {dimension_numbers = #tpu.dot_dimension_numbers<[1], [0], [0], [1], [0, 0, 1, 1], [], []>} : vector<8x16xbf16>, vector<16x4xbf16>, vector<8x4xf32> -> vector<8x4xf32>
    %113 = arith.addf %107, %112 : vector<8x4xf32>
    %c2_101 = arith.constant 2 : index
    %c8_102 = arith.constant 8 : index
    %c0_103 = arith.constant 0 : index
    %114 = vector.load %arg11[%c2_101, %c8_102, %c0_103] : memref<10x24x16xbf16, #tpu.memory_space<vmem>>, vector<1x8x16xbf16>
    %115 = vector.shape_cast %114 : vector<1x8x16xbf16> to vector<8x16xbf16>
    %c1_104 = arith.constant 1 : index
    %c0_105 = arith.constant 0 : index
    %c0_106 = arith.constant 0 : index
    %116 = vector.load %arg4[%c1_104, %c0_105, %c0_106] : memref<4x16x4xbf16, #tpu.memory_space<vmem>>, vector<1x16x4xbf16>
    %117 = vector.shape_cast %116 : vector<1x16x4xbf16> to vector<16x4xbf16>
    %cst_107 = arith.constant dense<0.000000e+00> : vector<8x4xf32>
    %118 = tpu.matmul %115, %117, %cst_107 {dimension_numbers = #tpu.dot_dimension_numbers<[1], [0], [0], [1], [0, 0, 1, 1], [], []>} : vector<8x16xbf16>, vector<16x4xbf16>, vector<8x4xf32> -> vector<8x4xf32>
    %119 = arith.addf %113, %118 : vector<8x4xf32>
    %c3_108 = arith.constant 3 : index
    %c7_109 = arith.constant 7 : index
    %c0_110 = arith.constant 0 : index
    %120 = vector.load %arg11[%c3_108, %c7_109, %c0_110] : memref<10x24x16xbf16, #tpu.memory_space<vmem>>, vector<1x8x16xbf16>
    %121 = vector.shape_cast %120 : vector<1x8x16xbf16> to vector<8x16xbf16>
    %c2_111 = arith.constant 2 : index
    %c0_112 = arith.constant 0 : index
    %c0_113 = arith.constant 0 : index
    %122 = vector.load %arg4[%c2_111, %c0_112, %c0_113] : memref<4x16x4xbf16, #tpu.memory_space<vmem>>, vector<1x16x4xbf16>
    %123 = vector.shape_cast %122 : vector<1x16x4xbf16> to vector<16x4xbf16>
    %cst_114 = arith.constant dense<0.000000e+00> : vector<8x4xf32>
    %124 = tpu.matmul %121, %123, %cst_114 {dimension_numbers = #tpu.dot_dimension_numbers<[1], [0], [0], [1], [0, 0, 1, 1], [], []>} : vector<8x16xbf16>, vector<16x4xbf16>, vector<8x4xf32> -> vector<8x4xf32>
    %125 = arith.addf %119, %124 : vector<8x4xf32>
    %c3_115 = arith.constant 3 : index
    %c8_116 = arith.constant 8 : index
    %c0_117 = arith.constant 0 : index
    %126 = vector.load %arg11[%c3_115, %c8_116, %c0_117] : memref<10x24x16xbf16, #tpu.memory_space<vmem>>, vector<1x8x16xbf16>
    %127 = vector.shape_cast %126 : vector<1x8x16xbf16> to vector<8x16xbf16>
    %c3_118 = arith.constant 3 : index
    %c0_119 = arith.constant 0 : index
    %c0_120 = arith.constant 0 : index
    %128 = vector.load %arg4[%c3_118, %c0_119, %c0_120] : memref<4x16x4xbf16, #tpu.memory_space<vmem>>, vector<1x16x4xbf16>
    %129 = vector.shape_cast %128 : vector<1x16x4xbf16> to vector<16x4xbf16>
    %cst_121 = arith.constant dense<0.000000e+00> : vector<8x4xf32>
    %130 = tpu.matmul %127, %129, %cst_121 {dimension_numbers = #tpu.dot_dimension_numbers<[1], [0], [0], [1], [0, 0, 1, 1], [], []>} : vector<8x16xbf16>, vector<16x4xbf16>, vector<8x4xf32> -> vector<8x4xf32>
    %131 = arith.addf %125, %130 : vector<8x4xf32>
    %132 = vector.broadcast %44 : vector<1x4xf32> to vector<8x4xf32>
    %133 = arith.addf %131, %132 : vector<8x4xf32>
    %cst_122 = arith.constant 0.000000e+00 : f32
    %134 = vector.broadcast %cst_122 : f32 to vector<8x4xf32>
    %135 = arith.maximumf %133, %134 : vector<8x4xf32>
    %136 = arith.truncf %135 : vector<8x4xf32> to vector<8x4xbf16>
    %c16 = arith.constant 16 : index
    %c0_123 = arith.constant 0 : index
    %137 = vector.load %arg12[%c16, %c0_123] : memref<64x4xbf16, #tpu.memory_space<vmem>>, vector<8x4xbf16>
    tpu.vector_store %arg12[%c16, %c0_123], %136 {strides = array<i32>} : memref<64x4xbf16, #tpu.memory_space<vmem>>, vector<8x4xbf16>,
    %cst_124 = arith.constant 0.000000e+00 : f32
    %138 = vector.broadcast %cst_124 : f32 to vector<8x4xf32>
    %c3_125 = arith.constant 3 : index
    %c7_126 = arith.constant 7 : index
    %c0_127 = arith.constant 0 : index
    %139 = vector.load %arg11[%c3_125, %c7_126, %c0_127] : memref<10x24x16xbf16, #tpu.memory_space<vmem>>, vector<1x8x16xbf16>
    %140 = vector.shape_cast %139 : vector<1x8x16xbf16> to vector<8x16xbf16>
    %c0_128 = arith.constant 0 : index
    %c0_129 = arith.constant 0 : index
    %c0_130 = arith.constant 0 : index
    %141 = vector.load %arg4[%c0_128, %c0_129, %c0_130] : memref<4x16x4xbf16, #tpu.memory_space<vmem>>, vector<1x16x4xbf16>
    %142 = vector.shape_cast %141 : vector<1x16x4xbf16> to vector<16x4xbf16>
    %cst_131 = arith.constant dense<0.000000e+00> : vector<8x4xf32>
    %143 = tpu.matmul %140, %142, %cst_131 {dimension_numbers = #tpu.dot_dimension_numbers<[1], [0], [0], [1], [0, 0, 1, 1], [], []>} : vector<8x16xbf16>, vector<16x4xbf16>, vector<8x4xf32> -> vector<8x4xf32>
    %144 = arith.addf %138, %143 : vector<8x4xf32>
    %c3_132 = arith.constant 3 : index
    %c8_133 = arith.constant 8 : index
    %c0_134 = arith.constant 0 : index
    %145 = vector.load %arg11[%c3_132, %c8_133, %c0_134] : memref<10x24x16xbf16, #tpu.memory_space<vmem>>, vector<1x8x16xbf16>
    %146 = vector.shape_cast %145 : vector<1x8x16xbf16> to vector<8x16xbf16>
    %c1_135 = arith.constant 1 : index
    %c0_136 = arith.constant 0 : index
    %c0_137 = arith.constant 0 : index
    %147 = vector.load %arg4[%c1_135, %c0_136, %c0_137] : memref<4x16x4xbf16, #tpu.memory_space<vmem>>, vector<1x16x4xbf16>
    %148 = vector.shape_cast %147 : vector<1x16x4xbf16> to vector<16x4xbf16>
    %cst_138 = arith.constant dense<0.000000e+00> : vector<8x4xf32>
    %149 = tpu.matmul %146, %148, %cst_138 {dimension_numbers = #tpu.dot_dimension_numbers<[1], [0], [0], [1], [0, 0, 1, 1], [], []>} : vector<8x16xbf16>, vector<16x4xbf16>, vector<8x4xf32> -> vector<8x4xf32>
    %150 = arith.addf %144, %149 : vector<8x4xf32>
    %c4_139 = arith.constant 4 : index
    %c7_140 = arith.constant 7 : index
    %c0_141 = arith.constant 0 : index
    %151 = vector.load %arg11[%c4_139, %c7_140, %c0_141] : memref<10x24x16xbf16, #tpu.memory_space<vmem>>, vector<1x8x16xbf16>
    %152 = vector.shape_cast %151 : vector<1x8x16xbf16> to vector<8x16xbf16>
    %c2_142 = arith.constant 2 : index
    %c0_143 = arith.constant 0 : index
    %c0_144 = arith.constant 0 : index
    %153 = vector.load %arg4[%c2_142, %c0_143, %c0_144] : memref<4x16x4xbf16, #tpu.memory_space<vmem>>, vector<1x16x4xbf16>
    %154 = vector.shape_cast %153 : vector<1x16x4xbf16> to vector<16x4xbf16>
    %cst_145 = arith.constant dense<0.000000e+00> : vector<8x4xf32>
    %155 = tpu.matmul %152, %154, %cst_145 {dimension_numbers = #tpu.dot_dimension_numbers<[1], [0], [0], [1], [0, 0, 1, 1], [], []>} : vector<8x16xbf16>, vector<16x4xbf16>, vector<8x4xf32> -> vector<8x4xf32>
    %156 = arith.addf %150, %155 : vector<8x4xf32>
    %c4_146 = arith.constant 4 : index
    %c8_147 = arith.constant 8 : index
    %c0_148 = arith.constant 0 : index
    %157 = vector.load %arg11[%c4_146, %c8_147, %c0_148] : memref<10x24x16xbf16, #tpu.memory_space<vmem>>, vector<1x8x16xbf16>
    %158 = vector.shape_cast %157 : vector<1x8x16xbf16> to vector<8x16xbf16>
    %c3_149 = arith.constant 3 : index
    %c0_150 = arith.constant 0 : index
    %c0_151 = arith.constant 0 : index
    %159 = vector.load %arg4[%c3_149, %c0_150, %c0_151] : memref<4x16x4xbf16, #tpu.memory_space<vmem>>, vector<1x16x4xbf16>
    %160 = vector.shape_cast %159 : vector<1x16x4xbf16> to vector<16x4xbf16>
    %cst_152 = arith.constant dense<0.000000e+00> : vector<8x4xf32>
    %161 = tpu.matmul %158, %160, %cst_152 {dimension_numbers = #tpu.dot_dimension_numbers<[1], [0], [0], [1], [0, 0, 1, 1], [], []>} : vector<8x16xbf16>, vector<16x4xbf16>, vector<8x4xf32> -> vector<8x4xf32>
    %162 = arith.addf %156, %161 : vector<8x4xf32>
    %163 = vector.broadcast %44 : vector<1x4xf32> to vector<8x4xf32>
    %164 = arith.addf %162, %163 : vector<8x4xf32>
    %cst_153 = arith.constant 0.000000e+00 : f32
    %165 = vector.broadcast %cst_153 : f32 to vector<8x4xf32>
    %166 = arith.maximumf %164, %165 : vector<8x4xf32>
    %167 = arith.truncf %166 : vector<8x4xf32> to vector<8x4xbf16>
    %c24 = arith.constant 24 : index
    %c0_154 = arith.constant 0 : index
    %168 = vector.load %arg12[%c24, %c0_154] : memref<64x4xbf16, #tpu.memory_space<vmem>>, vector<8x4xbf16>
    tpu.vector_store %arg12[%c24, %c0_154], %167 {strides = array<i32>} : memref<64x4xbf16, #tpu.memory_space<vmem>>, vector<8x4xbf16>,
    %cst_155 = arith.constant 0.000000e+00 : f32
    %169 = vector.broadcast %cst_155 : f32 to vector<8x4xf32>
    %c4_156 = arith.constant 4 : index
    %c7_157 = arith.constant 7 : index
    %c0_158 = arith.constant 0 : index
    %170 = vector.load %arg11[%c4_156, %c7_157, %c0_158] : memref<10x24x16xbf16, #tpu.memory_space<vmem>>, vector<1x8x16xbf16>
    %171 = vector.shape_cast %170 : vector<1x8x16xbf16> to vector<8x16xbf16>
    %c0_159 = arith.constant 0 : index
    %c0_160 = arith.constant 0 : index
    %c0_161 = arith.constant 0 : index
    %172 = vector.load %arg4[%c0_159, %c0_160, %c0_161] : memref<4x16x4xbf16, #tpu.memory_space<vmem>>, vector<1x16x4xbf16>
    %173 = vector.shape_cast %172 : vector<1x16x4xbf16> to vector<16x4xbf16>
    %cst_162 = arith.constant dense<0.000000e+00> : vector<8x4xf32>
    %174 = tpu.matmul %171, %173, %cst_162 {dimension_numbers = #tpu.dot_dimension_numbers<[1], [0], [0], [1], [0, 0, 1, 1], [], []>} : vector<8x16xbf16>, vector<16x4xbf16>, vector<8x4xf32> -> vector<8x4xf32>
    %175 = arith.addf %169, %174 : vector<8x4xf32>
    %c4_163 = arith.constant 4 : index
    %c8_164 = arith.constant 8 : index
    %c0_165 = arith.constant 0 : index
    %176 = vector.load %arg11[%c4_163, %c8_164, %c0_165] : memref<10x24x16xbf16, #tpu.memory_space<vmem>>, vector<1x8x16xbf16>
    %177 = vector.shape_cast %176 : vector<1x8x16xbf16> to vector<8x16xbf16>
    %c1_166 = arith.constant 1 : index
    %c0_167 = arith.constant 0 : index
    %c0_168 = arith.constant 0 : index
    %178 = vector.load %arg4[%c1_166, %c0_167, %c0_168] : memref<4x16x4xbf16, #tpu.memory_space<vmem>>, vector<1x16x4xbf16>
    %179 = vector.shape_cast %178 : vector<1x16x4xbf16> to vector<16x4xbf16>
    %cst_169 = arith.constant dense<0.000000e+00> : vector<8x4xf32>
    %180 = tpu.matmul %177, %179, %cst_169 {dimension_numbers = #tpu.dot_dimension_numbers<[1], [0], [0], [1], [0, 0, 1, 1], [], []>} : vector<8x16xbf16>, vector<16x4xbf16>, vector<8x4xf32> -> vector<8x4xf32>
    %181 = arith.addf %175, %180 : vector<8x4xf32>
    %c5_170 = arith.constant 5 : index
    %c7_171 = arith.constant 7 : index
    %c0_172 = arith.constant 0 : index
    %182 = vector.load %arg11[%c5_170, %c7_171, %c0_172] : memref<10x24x16xbf16, #tpu.memory_space<vmem>>, vector<1x8x16xbf16>
    %183 = vector.shape_cast %182 : vector<1x8x16xbf16> to vector<8x16xbf16>
    %c2_173 = arith.constant 2 : index
    %c0_174 = arith.constant 0 : index
    %c0_175 = arith.constant 0 : index
    %184 = vector.load %arg4[%c2_173, %c0_174, %c0_175] : memref<4x16x4xbf16, #tpu.memory_space<vmem>>, vector<1x16x4xbf16>
    %185 = vector.shape_cast %184 : vector<1x16x4xbf16> to vector<16x4xbf16>
    %cst_176 = arith.constant dense<0.000000e+00> : vector<8x4xf32>
    %186 = tpu.matmul %183, %185, %cst_176 {dimension_numbers = #tpu.dot_dimension_numbers<[1], [0], [0], [1], [0, 0, 1, 1], [], []>} : vector<8x16xbf16>, vector<16x4xbf16>, vector<8x4xf32> -> vector<8x4xf32>
    %187 = arith.addf %181, %186 : vector<8x4xf32>
    %c5_177 = arith.constant 5 : index
    %c8_178 = arith.constant 8 : index
    %c0_179 = arith.constant 0 : index
    %188 = vector.load %arg11[%c5_177, %c8_178, %c0_179] : memref<10x24x16xbf16, #tpu.memory_space<vmem>>, vector<1x8x16xbf16>
    %189 = vector.shape_cast %188 : vector<1x8x16xbf16> to vector<8x16xbf16>
    %c3_180 = arith.constant 3 : index
    %c0_181 = arith.constant 0 : index
    %c0_182 = arith.constant 0 : index
    %190 = vector.load %arg4[%c3_180, %c0_181, %c0_182] : memref<4x16x4xbf16, #tpu.memory_space<vmem>>, vector<1x16x4xbf16>
    %191 = vector.shape_cast %190 : vector<1x16x4xbf16> to vector<16x4xbf16>
    %cst_183 = arith.constant dense<0.000000e+00> : vector<8x4xf32>
    %192 = tpu.matmul %189, %191, %cst_183 {dimension_numbers = #tpu.dot_dimension_numbers<[1], [0], [0], [1], [0, 0, 1, 1], [], []>} : vector<8x16xbf16>, vector<16x4xbf16>, vector<8x4xf32> -> vector<8x4xf32>
    %193 = arith.addf %187, %192 : vector<8x4xf32>
    %194 = vector.broadcast %44 : vector<1x4xf32> to vector<8x4xf32>
    %195 = arith.addf %193, %194 : vector<8x4xf32>
    %cst_184 = arith.constant 0.000000e+00 : f32
    %196 = vector.broadcast %cst_184 : f32 to vector<8x4xf32>
    %197 = arith.maximumf %195, %196 : vector<8x4xf32>
    %198 = arith.truncf %197 : vector<8x4xf32> to vector<8x4xbf16>
    %c32 = arith.constant 32 : index
    %c0_185 = arith.constant 0 : index
    %199 = vector.load %arg12[%c32, %c0_185] : memref<64x4xbf16, #tpu.memory_space<vmem>>, vector<8x4xbf16>
    tpu.vector_store %arg12[%c32, %c0_185], %198 {strides = array<i32>} : memref<64x4xbf16, #tpu.memory_space<vmem>>, vector<8x4xbf16>,
    %cst_186 = arith.constant 0.000000e+00 : f32
    %200 = vector.broadcast %cst_186 : f32 to vector<8x4xf32>
    %c5_187 = arith.constant 5 : index
    %c7_188 = arith.constant 7 : index
    %c0_189 = arith.constant 0 : index
    %201 = vector.load %arg11[%c5_187, %c7_188, %c0_189] : memref<10x24x16xbf16, #tpu.memory_space<vmem>>, vector<1x8x16xbf16>
    %202 = vector.shape_cast %201 : vector<1x8x16xbf16> to vector<8x16xbf16>
    %c0_190 = arith.constant 0 : index
    %c0_191 = arith.constant 0 : index
    %c0_192 = arith.constant 0 : index
    %203 = vector.load %arg4[%c0_190, %c0_191, %c0_192] : memref<4x16x4xbf16, #tpu.memory_space<vmem>>, vector<1x16x4xbf16>
    %204 = vector.shape_cast %203 : vector<1x16x4xbf16> to vector<16x4xbf16>
    %cst_193 = arith.constant dense<0.000000e+00> : vector<8x4xf32>
    %205 = tpu.matmul %202, %204, %cst_193 {dimension_numbers = #tpu.dot_dimension_numbers<[1], [0], [0], [1], [0, 0, 1, 1], [], []>} : vector<8x16xbf16>, vector<16x4xbf16>, vector<8x4xf32> -> vector<8x4xf32>
    %206 = arith.addf %200, %205 : vector<8x4xf32>
    %c5_194 = arith.constant 5 : index
    %c8_195 = arith.constant 8 : index
    %c0_196 = arith.constant 0 : index
    %207 = vector.load %arg11[%c5_194, %c8_195, %c0_196] : memref<10x24x16xbf16, #tpu.memory_space<vmem>>, vector<1x8x16xbf16>
    %208 = vector.shape_cast %207 : vector<1x8x16xbf16> to vector<8x16xbf16>
    %c1_197 = arith.constant 1 : index
    %c0_198 = arith.constant 0 : index
    %c0_199 = arith.constant 0 : index
    %209 = vector.load %arg4[%c1_197, %c0_198, %c0_199] : memref<4x16x4xbf16, #tpu.memory_space<vmem>>, vector<1x16x4xbf16>
    %210 = vector.shape_cast %209 : vector<1x16x4xbf16> to vector<16x4xbf16>
    %cst_200 = arith.constant dense<0.000000e+00> : vector<8x4xf32>
    %211 = tpu.matmul %208, %210, %cst_200 {dimension_numbers = #tpu.dot_dimension_numbers<[1], [0], [0], [1], [0, 0, 1, 1], [], []>} : vector<8x16xbf16>, vector<16x4xbf16>, vector<8x4xf32> -> vector<8x4xf32>
    %212 = arith.addf %206, %211 : vector<8x4xf32>
    %c6_201 = arith.constant 6 : index
    %c7_202 = arith.constant 7 : index
    %c0_203 = arith.constant 0 : index
    %213 = vector.load %arg11[%c6_201, %c7_202, %c0_203] : memref<10x24x16xbf16, #tpu.memory_space<vmem>>, vector<1x8x16xbf16>
    %214 = vector.shape_cast %213 : vector<1x8x16xbf16> to vector<8x16xbf16>
    %c2_204 = arith.constant 2 : index
    %c0_205 = arith.constant 0 : index
    %c0_206 = arith.constant 0 : index
    %215 = vector.load %arg4[%c2_204, %c0_205, %c0_206] : memref<4x16x4xbf16, #tpu.memory_space<vmem>>, vector<1x16x4xbf16>
    %216 = vector.shape_cast %215 : vector<1x16x4xbf16> to vector<16x4xbf16>
    %cst_207 = arith.constant dense<0.000000e+00> : vector<8x4xf32>
    %217 = tpu.matmul %214, %216, %cst_207 {dimension_numbers = #tpu.dot_dimension_numbers<[1], [0], [0], [1], [0, 0, 1, 1], [], []>} : vector<8x16xbf16>, vector<16x4xbf16>, vector<8x4xf32> -> vector<8x4xf32>
    %218 = arith.addf %212, %217 : vector<8x4xf32>
    %c6_208 = arith.constant 6 : index
    %c8_209 = arith.constant 8 : index
    %c0_210 = arith.constant 0 : index
    %219 = vector.load %arg11[%c6_208, %c8_209, %c0_210] : memref<10x24x16xbf16, #tpu.memory_space<vmem>>, vector<1x8x16xbf16>
    %220 = vector.shape_cast %219 : vector<1x8x16xbf16> to vector<8x16xbf16>
    %c3_211 = arith.constant 3 : index
    %c0_212 = arith.constant 0 : index
    %c0_213 = arith.constant 0 : index
    %221 = vector.load %arg4[%c3_211, %c0_212, %c0_213] : memref<4x16x4xbf16, #tpu.memory_space<vmem>>, vector<1x16x4xbf16>
    %222 = vector.shape_cast %221 : vector<1x16x4xbf16> to vector<16x4xbf16>
    %cst_214 = arith.constant dense<0.000000e+00> : vector<8x4xf32>
    %223 = tpu.matmul %220, %222, %cst_214 {dimension_numbers = #tpu.dot_dimension_numbers<[1], [0], [0], [1], [0, 0, 1, 1], [], []>} : vector<8x16xbf16>, vector<16x4xbf16>, vector<8x4xf32> -> vector<8x4xf32>
    %224 = arith.addf %218, %223 : vector<8x4xf32>
    %225 = vector.broadcast %44 : vector<1x4xf32> to vector<8x4xf32>
    %226 = arith.addf %224, %225 : vector<8x4xf32>
    %cst_215 = arith.constant 0.000000e+00 : f32
    %227 = vector.broadcast %cst_215 : f32 to vector<8x4xf32>
    %228 = arith.maximumf %226, %227 : vector<8x4xf32>
    %229 = arith.truncf %228 : vector<8x4xf32> to vector<8x4xbf16>
    %c40 = arith.constant 40 : index
    %c0_216 = arith.constant 0 : index
    %230 = vector.load %arg12[%c40, %c0_216] : memref<64x4xbf16, #tpu.memory_space<vmem>>, vector<8x4xbf16>
    tpu.vector_store %arg12[%c40, %c0_216], %229 {strides = array<i32>} : memref<64x4xbf16, #tpu.memory_space<vmem>>, vector<8x4xbf16>,
    %cst_217 = arith.constant 0.000000e+00 : f32
    %231 = vector.broadcast %cst_217 : f32 to vector<8x4xf32>
    %c6_218 = arith.constant 6 : index
    %c7_219 = arith.constant 7 : index
    %c0_220 = arith.constant 0 : index
    %232 = vector.load %arg11[%c6_218, %c7_219, %c0_220] : memref<10x24x16xbf16, #tpu.memory_space<vmem>>, vector<1x8x16xbf16>
    %233 = vector.shape_cast %232 : vector<1x8x16xbf16> to vector<8x16xbf16>
    %c0_221 = arith.constant 0 : index
    %c0_222 = arith.constant 0 : index
    %c0_223 = arith.constant 0 : index
    %234 = vector.load %arg4[%c0_221, %c0_222, %c0_223] : memref<4x16x4xbf16, #tpu.memory_space<vmem>>, vector<1x16x4xbf16>
    %235 = vector.shape_cast %234 : vector<1x16x4xbf16> to vector<16x4xbf16>
    %cst_224 = arith.constant dense<0.000000e+00> : vector<8x4xf32>
    %236 = tpu.matmul %233, %235, %cst_224 {dimension_numbers = #tpu.dot_dimension_numbers<[1], [0], [0], [1], [0, 0, 1, 1], [], []>} : vector<8x16xbf16>, vector<16x4xbf16>, vector<8x4xf32> -> vector<8x4xf32>
    %237 = arith.addf %231, %236 : vector<8x4xf32>
    %c6_225 = arith.constant 6 : index
    %c8_226 = arith.constant 8 : index
    %c0_227 = arith.constant 0 : index
    %238 = vector.load %arg11[%c6_225, %c8_226, %c0_227] : memref<10x24x16xbf16, #tpu.memory_space<vmem>>, vector<1x8x16xbf16>
    %239 = vector.shape_cast %238 : vector<1x8x16xbf16> to vector<8x16xbf16>
    %c1_228 = arith.constant 1 : index
    %c0_229 = arith.constant 0 : index
    %c0_230 = arith.constant 0 : index
    %240 = vector.load %arg4[%c1_228, %c0_229, %c0_230] : memref<4x16x4xbf16, #tpu.memory_space<vmem>>, vector<1x16x4xbf16>
    %241 = vector.shape_cast %240 : vector<1x16x4xbf16> to vector<16x4xbf16>
    %cst_231 = arith.constant dense<0.000000e+00> : vector<8x4xf32>
    %242 = tpu.matmul %239, %241, %cst_231 {dimension_numbers = #tpu.dot_dimension_numbers<[1], [0], [0], [1], [0, 0, 1, 1], [], []>} : vector<8x16xbf16>, vector<16x4xbf16>, vector<8x4xf32> -> vector<8x4xf32>
    %243 = arith.addf %237, %242 : vector<8x4xf32>
    %c7_232 = arith.constant 7 : index
    %c7_233 = arith.constant 7 : index
    %c0_234 = arith.constant 0 : index
    %244 = vector.load %arg11[%c7_232, %c7_233, %c0_234] : memref<10x24x16xbf16, #tpu.memory_space<vmem>>, vector<1x8x16xbf16>
    %245 = vector.shape_cast %244 : vector<1x8x16xbf16> to vector<8x16xbf16>
    %c2_235 = arith.constant 2 : index
    %c0_236 = arith.constant 0 : index
    %c0_237 = arith.constant 0 : index
    %246 = vector.load %arg4[%c2_235, %c0_236, %c0_237] : memref<4x16x4xbf16, #tpu.memory_space<vmem>>, vector<1x16x4xbf16>
    %247 = vector.shape_cast %246 : vector<1x16x4xbf16> to vector<16x4xbf16>
    %cst_238 = arith.constant dense<0.000000e+00> : vector<8x4xf32>
    %248 = tpu.matmul %245, %247, %cst_238 {dimension_numbers = #tpu.dot_dimension_numbers<[1], [0], [0], [1], [0, 0, 1, 1], [], []>} : vector<8x16xbf16>, vector<16x4xbf16>, vector<8x4xf32> -> vector<8x4xf32>
    %249 = arith.addf %243, %248 : vector<8x4xf32>
    %c7_239 = arith.constant 7 : index
    %c8_240 = arith.constant 8 : index
    %c0_241 = arith.constant 0 : index
    %250 = vector.load %arg11[%c7_239, %c8_240, %c0_241] : memref<10x24x16xbf16, #tpu.memory_space<vmem>>, vector<1x8x16xbf16>
    %251 = vector.shape_cast %250 : vector<1x8x16xbf16> to vector<8x16xbf16>
    %c3_242 = arith.constant 3 : index
    %c0_243 = arith.constant 0 : index
    %c0_244 = arith.constant 0 : index
    %252 = vector.load %arg4[%c3_242, %c0_243, %c0_244] : memref<4x16x4xbf16, #tpu.memory_space<vmem>>, vector<1x16x4xbf16>
    %253 = vector.shape_cast %252 : vector<1x16x4xbf16> to vector<16x4xbf16>
    %cst_245 = arith.constant dense<0.000000e+00> : vector<8x4xf32>
    %254 = tpu.matmul %251, %253, %cst_245 {dimension_numbers = #tpu.dot_dimension_numbers<[1], [0], [0], [1], [0, 0, 1, 1], [], []>} : vector<8x16xbf16>, vector<16x4xbf16>, vector<8x4xf32> -> vector<8x4xf32>
    %255 = arith.addf %249, %254 : vector<8x4xf32>
    %256 = vector.broadcast %44 : vector<1x4xf32> to vector<8x4xf32>
    %257 = arith.addf %255, %256 : vector<8x4xf32>
    %cst_246 = arith.constant 0.000000e+00 : f32
    %258 = vector.broadcast %cst_246 : f32 to vector<8x4xf32>
    %259 = arith.maximumf %257, %258 : vector<8x4xf32>
    %260 = arith.truncf %259 : vector<8x4xf32> to vector<8x4xbf16>
    %c48 = arith.constant 48 : index
    %c0_247 = arith.constant 0 : index
    %261 = vector.load %arg12[%c48, %c0_247] : memref<64x4xbf16, #tpu.memory_space<vmem>>, vector<8x4xbf16>
    tpu.vector_store %arg12[%c48, %c0_247], %260 {strides = array<i32>} : memref<64x4xbf16, #tpu.memory_space<vmem>>, vector<8x4xbf16>,
    %cst_248 = arith.constant 0.000000e+00 : f32
    %262 = vector.broadcast %cst_248 : f32 to vector<8x4xf32>
    %c7_249 = arith.constant 7 : index
    %c7_250 = arith.constant 7 : index
    %c0_251 = arith.constant 0 : index
    %263 = vector.load %arg11[%c7_249, %c7_250, %c0_251] : memref<10x24x16xbf16, #tpu.memory_space<vmem>>, vector<1x8x16xbf16>
    %264 = vector.shape_cast %263 : vector<1x8x16xbf16> to vector<8x16xbf16>
    %c0_252 = arith.constant 0 : index
    %c0_253 = arith.constant 0 : index
    %c0_254 = arith.constant 0 : index
    %265 = vector.load %arg4[%c0_252, %c0_253, %c0_254] : memref<4x16x4xbf16, #tpu.memory_space<vmem>>, vector<1x16x4xbf16>
    %266 = vector.shape_cast %265 : vector<1x16x4xbf16> to vector<16x4xbf16>
    %cst_255 = arith.constant dense<0.000000e+00> : vector<8x4xf32>
    %267 = tpu.matmul %264, %266, %cst_255 {dimension_numbers = #tpu.dot_dimension_numbers<[1], [0], [0], [1], [0, 0, 1, 1], [], []>} : vector<8x16xbf16>, vector<16x4xbf16>, vector<8x4xf32> -> vector<8x4xf32>
    %268 = arith.addf %262, %267 : vector<8x4xf32>
    %c7_256 = arith.constant 7 : index
    %c8_257 = arith.constant 8 : index
    %c0_258 = arith.constant 0 : index
    %269 = vector.load %arg11[%c7_256, %c8_257, %c0_258] : memref<10x24x16xbf16, #tpu.memory_space<vmem>>, vector<1x8x16xbf16>
    %270 = vector.shape_cast %269 : vector<1x8x16xbf16> to vector<8x16xbf16>
    %c1_259 = arith.constant 1 : index
    %c0_260 = arith.constant 0 : index
    %c0_261 = arith.constant 0 : index
    %271 = vector.load %arg4[%c1_259, %c0_260, %c0_261] : memref<4x16x4xbf16, #tpu.memory_space<vmem>>, vector<1x16x4xbf16>
    %272 = vector.shape_cast %271 : vector<1x16x4xbf16> to vector<16x4xbf16>
    %cst_262 = arith.constant dense<0.000000e+00> : vector<8x4xf32>
    %273 = tpu.matmul %270, %272, %cst_262 {dimension_numbers = #tpu.dot_dimension_numbers<[1], [0], [0], [1], [0, 0, 1, 1], [], []>} : vector<8x16xbf16>, vector<16x4xbf16>, vector<8x4xf32> -> vector<8x4xf32>
    %274 = arith.addf %268, %273 : vector<8x4xf32>
    %c8_263 = arith.constant 8 : index
    %c7_264 = arith.constant 7 : index
    %c0_265 = arith.constant 0 : index
    %275 = vector.load %arg11[%c8_263, %c7_264, %c0_265] : memref<10x24x16xbf16, #tpu.memory_space<vmem>>, vector<1x8x16xbf16>
    %276 = vector.shape_cast %275 : vector<1x8x16xbf16> to vector<8x16xbf16>
    %c2_266 = arith.constant 2 : index
    %c0_267 = arith.constant 0 : index
    %c0_268 = arith.constant 0 : index
    %277 = vector.load %arg4[%c2_266, %c0_267, %c0_268] : memref<4x16x4xbf16, #tpu.memory_space<vmem>>, vector<1x16x4xbf16>
    %278 = vector.shape_cast %277 : vector<1x16x4xbf16> to vector<16x4xbf16>
    %cst_269 = arith.constant dense<0.000000e+00> : vector<8x4xf32>
    %279 = tpu.matmul %276, %278, %cst_269 {dimension_numbers = #tpu.dot_dimension_numbers<[1], [0], [0], [1], [0, 0, 1, 1], [], []>} : vector<8x16xbf16>, vector<16x4xbf16>, vector<8x4xf32> -> vector<8x4xf32>
    %280 = arith.addf %274, %279 : vector<8x4xf32>
    %c8_270 = arith.constant 8 : index
    %c8_271 = arith.constant 8 : index
    %c0_272 = arith.constant 0 : index
    %281 = vector.load %arg11[%c8_270, %c8_271, %c0_272] : memref<10x24x16xbf16, #tpu.memory_space<vmem>>, vector<1x8x16xbf16>
    %282 = vector.shape_cast %281 : vector<1x8x16xbf16> to vector<8x16xbf16>
    %c3_273 = arith.constant 3 : index
    %c0_274 = arith.constant 0 : index
    %c0_275 = arith.constant 0 : index
    %283 = vector.load %arg4[%c3_273, %c0_274, %c0_275] : memref<4x16x4xbf16, #tpu.memory_space<vmem>>, vector<1x16x4xbf16>
    %284 = vector.shape_cast %283 : vector<1x16x4xbf16> to vector<16x4xbf16>
    %cst_276 = arith.constant dense<0.000000e+00> : vector<8x4xf32>
    %285 = tpu.matmul %282, %284, %cst_276 {dimension_numbers = #tpu.dot_dimension_numbers<[1], [0], [0], [1], [0, 0, 1, 1], [], []>} : vector<8x16xbf16>, vector<16x4xbf16>, vector<8x4xf32> -> vector<8x4xf32>
    %286 = arith.addf %280, %285 : vector<8x4xf32>
    %287 = vector.broadcast %44 : vector<1x4xf32> to vector<8x4xf32>
    %288 = arith.addf %286, %287 : vector<8x4xf32>
    %cst_277 = arith.constant 0.000000e+00 : f32
    %289 = vector.broadcast %cst_277 : f32 to vector<8x4xf32>
    %290 = arith.maximumf %288, %289 : vector<8x4xf32>
    %291 = arith.truncf %290 : vector<8x4xf32> to vector<8x4xbf16>
    %c56 = arith.constant 56 : index
    %c0_278 = arith.constant 0 : index
    %292 = vector.load %arg12[%c56, %c0_278] : memref<64x4xbf16, #tpu.memory_space<vmem>>, vector<8x4xbf16>
    tpu.vector_store %arg12[%c56, %c0_278], %291 {strides = array<i32>} : memref<64x4xbf16, #tpu.memory_space<vmem>>, vector<8x4xbf16>,
    %c0_279 = arith.constant 0 : index
    %c0_280 = arith.constant 0 : index
    %293 = vector.load %arg12[%c0_279, %c0_280] : memref<64x4xbf16, #tpu.memory_space<vmem>>, vector<64x4xbf16>
    %c0_281 = arith.constant 0 : index
    %c0_282 = arith.constant 0 : index
    %294 = vector.load %arg6[%c0_281, %c0_282] : memref<4x16xbf16, #tpu.memory_space<vmem>>, vector<4x16xbf16>
    %cst_283 = arith.constant dense<0.000000e+00> : vector<64x16xf32>
    %295 = tpu.matmul %293, %294, %cst_283 {dimension_numbers = #tpu.dot_dimension_numbers<[1], [0], [0], [1], [0, 0, 1, 1], [], []>} : vector<64x4xbf16>, vector<4x16xbf16>, vector<64x16xf32> -> vector<64x16xf32>
    %c0_284 = arith.constant 0 : index
    %c0_285 = arith.constant 0 : index
    %296 = vector.load %arg7[%c0_284, %c0_285] : memref<1x16xf32, #tpu.memory_space<vmem>>, vector<1x16xf32>
    %297 = vector.broadcast %296 : vector<1x16xf32> to vector<64x16xf32>
    %298 = arith.addf %295, %297 : vector<64x16xf32>
    %299 = vector.extract_strided_slice %3 {offsets = [0, 0], sizes = [64, 4], strides = [1, 1]} : vector<64x16xbf16> to vector<64x4xbf16>
    %c0_286 = arith.constant 0 : index
    %c0_287 = arith.constant 0 : index
    %300 = vector.load %arg8[%c0_286, %c0_287] : memref<4x16xbf16, #tpu.memory_space<vmem>>, vector<4x16xbf16>
    %cst_288 = arith.constant dense<0.000000e+00> : vector<64x16xf32>
    %301 = tpu.matmul %299, %300, %cst_288 {dimension_numbers = #tpu.dot_dimension_numbers<[1], [0], [0], [1], [0, 0, 1, 1], [], []>} : vector<64x4xbf16>, vector<4x16xbf16>, vector<64x16xf32> -> vector<64x16xf32>
    %c0_289 = arith.constant 0 : index
    %c0_290 = arith.constant 0 : index
    %302 = vector.load %arg9[%c0_289, %c0_290] : memref<1x16xf32, #tpu.memory_space<vmem>>, vector<1x16xf32>
    %303 = vector.broadcast %302 : vector<1x16xf32> to vector<64x16xf32>
    %304 = arith.addf %301, %303 : vector<64x16xf32>
    %305 = arith.addf %298, %304 : vector<64x16xf32>
    %cst_291 = arith.constant 0.000000e+00 : f32
    %306 = vector.broadcast %cst_291 : f32 to vector<64x16xf32>
    %307 = arith.maximumf %305, %306 : vector<64x16xf32>
    %c0_292 = arith.constant 0 : index
    %c0_293 = arith.constant 0 : index
    %c0_294 = arith.constant 0 : index
    %308 = vector.load %arg10[%c0_292, %c0_293, %c0_294] : memref<1x64x16xf32, #tpu.memory_space<vmem>>, vector<1x64x16xf32>
    %309 = vector.shape_cast %308 : vector<1x64x16xf32> to vector<64x16xf32>
    %310 = vector.shape_cast %307 : vector<64x16xf32> to vector<1x64x16xf32>
    tpu.vector_store %arg10[%c0_292, %c0_293, %c0_294], %310 {strides = array<i32>} : memref<1x64x16xf32, #tpu.memory_space<vmem>>, vector<1x64x16xf32>,
    return
  }
  func.func @transform_0(%arg0: i32) -> (i32, i32, i32) {
    %c0_i32 = arith.constant 0 : i32
    %c0_i32_0 = arith.constant 0 : i32
    %c0_i32_1 = arith.constant 0 : i32
    return %arg0, %c0_i32, %c0_i32_0 : i32, i32, i32
  }
  func.func @transform_1(%arg0: i32) -> (i32, i32) {
    %c0_i32 = arith.constant 0 : i32
    %c0_i32_0 = arith.constant 0 : i32
    %c0_i32_1 = arith.constant 0 : i32
    return %c0_i32, %c0_i32_0 : i32, i32
  }
  func.func @transform_2(%arg0: i32) -> (i32, i32) {
    %c0_i32 = arith.constant 0 : i32
    %c0_i32_0 = arith.constant 0 : i32
    %c0_i32_1 = arith.constant 0 : i32
    return %c0_i32, %c0_i32_0 : i32, i32
  }
  func.func @transform_3(%arg0: i32) -> (i32, i32, i32) {
    %c0_i32 = arith.constant 0 : i32
    %c0_i32_0 = arith.constant 0 : i32
    %c0_i32_1 = arith.constant 0 : i32
    %c0_i32_2 = arith.constant 0 : i32
    return %c0_i32, %c0_i32_0, %c0_i32_1 : i32, i32, i32
  }
  func.func @transform_4(%arg0: i32) -> (i32, i32) {
    %c0_i32 = arith.constant 0 : i32
    %c0_i32_0 = arith.constant 0 : i32
    %c0_i32_1 = arith.constant 0 : i32
    return %c0_i32, %c0_i32_0 : i32, i32
  }
  func.func @transform_5(%arg0: i32) -> (i32, i32) {
    %c0_i32 = arith.constant 0 : i32
    %c0_i32_0 = arith.constant 0 : i32
    %c0_i32_1 = arith.constant 0 : i32
    return %c0_i32, %c0_i32_0 : i32, i32
  }
  func.func @transform_6(%arg0: i32) -> (i32, i32) {
    %c0_i32 = arith.constant 0 : i32
    %c0_i32_0 = arith.constant 0 : i32
    %c0_i32_1 = arith.constant 0 : i32
    return %c0_i32, %c0_i32_0 : i32, i32
  }
  func.func @transform_7(%arg0: i32) -> (i32, i32) {
    %c0_i32 = arith.constant 0 : i32
    %c0_i32_0 = arith.constant 0 : i32
    %c0_i32_1 = arith.constant 0 : i32
    return %c0_i32, %c0_i32_0 : i32, i32
  }
  func.func @transform_8(%arg0: i32) -> (i32, i32) {
    %c0_i32 = arith.constant 0 : i32
    %c0_i32_0 = arith.constant 0 : i32
    %c0_i32_1 = arith.constant 0 : i32
    return %c0_i32, %c0_i32_0 : i32, i32
  }
  func.func @transform_9(%arg0: i32) -> (i32, i32, i32) {
    %c0_i32 = arith.constant 0 : i32
    %c0_i32_0 = arith.constant 0 : i32
    %c0_i32_1 = arith.constant 0 : i32
    return %arg0, %c0_i32, %c0_i32_0 : i32, i32, i32
  }
}

</mosaic_0001>

<llo_original>
// kernel: tpu_custom_call.1
$region0: #{tpu_custom_call.1}
  #allocation0 [shape = 'u32[]', space=smem, size = 0x4, offset = 0x4, fixed_abs, tag = 'smem constant byte address 0x4 - core index']
  #allocation1 [shape = 'u32[144,128]{1,0:T(1,128)}', space=vmem, size = 0x12000, scoped, tag = 'internal scratch']
  #allocation2 [shape = 'bf16[10,24,16]{2,1,0:T(8,128)(2,1)}', space=vmem, size = 0xf000, scoped, tag = 'scratch operand']
  #allocation3 [shape = 'bf16[64,4]{1,0:T(8,128)(2,1)}', space=vmem, size = 0x4000, scoped, tag = 'scratch operand']
  %s0 = inlined_call_operand.vmem [shape: bf16[2,64,16], index: 0, kind: input, shape index: {}]
  %s1 = inlined_call_operand.vmem [shape: bf16[16,16], index: 1, kind: input, shape index: {}]
  %s2 = inlined_call_operand.vmem [shape: f32[1,16], index: 2, kind: input, shape index: {}]
  %s3 = inlined_call_operand.vmem [shape: bf16[4,16,4], index: 3, kind: input, shape index: {}]
  %s4 = inlined_call_operand.vmem [shape: f32[1,4], index: 4, kind: input, shape index: {}]
  %s5 = inlined_call_operand.vmem [shape: bf16[4,16], index: 5, kind: input, shape index: {}]
  %s6 = inlined_call_operand.vmem [shape: f32[1,16], index: 6, kind: input, shape index: {}]
  %s7 = inlined_call_operand.vmem [shape: bf16[4,16], index: 7, kind: input, shape index: {}]
  %s8 = inlined_call_operand.vmem [shape: f32[1,16], index: 8, kind: input, shape index: {}]
  %s9 = inlined_call_operand.vmem [shape: f32[2,64,16], index: 9, kind: output, shape index: {}]
  %s10 = sld [smem:[#allocation0]]
  $region69: #{tpu_custom_call.1} parent=0
    _
  %s12 = ssub.s32 1, %s10
  %s13 = scalar_select 0, %s12, %s10
  loop: start=0, step=1, limit=4
  $region2: #{tpu_custom_call.1} parent=0 // loop_pre_header
    _
  $region3: #{tpu_custom_call.1} parent=0 // loop_header
    %s15 = sphi 0, %s19
    %p16 = scmp.ge.s32.totalorder %s15, 4
    %s25 = sphi 0, %s27
    %s28 = sphi 0, %s25
    %s29 = sphi 0, %s28
    %s45 = sphi 0, %s29
    %s49 = sphi 0, %s49
    %s51 = sphi 0, %s49
    %s52 = sphi 0, %s51
    %s66 = sphi 0, %s52
    %s70 = sphi 0, %s70
    %s72 = sphi 0, %s70
    %s73 = sphi 0, %s72
    %s87 = sphi 0, %s73
    %s91 = sphi 0, %s91
    %s93 = sphi 0, %s91
    %s94 = sphi 0, %s93
    %s108 = sphi 0, %s94
    %s112 = sphi 0, %s112
    %s114 = sphi 0, %s112
    %s115 = sphi 0, %s114
    %s129 = sphi 0, %s115
    %s133 = sphi 0, %s133
    %s135 = sphi 0, %s133
    %s136 = sphi 0, %s135
    %s150 = sphi 0, %s136
    %s154 = sphi 0, %s154
    %s156 = sphi 0, %s154
    %s157 = sphi 0, %s156
    %s171 = sphi 0, %s157
    %s175 = sphi 0, %s175
    %s177 = sphi 0, %s175
    %s178 = sphi 0, %s177
    %s192 = sphi 0, %s178
    %s196 = sphi 0, %s196
    %s198 = sphi 0, %s196
    %s199 = sphi 0, %s198
    %s213 = sphi 0, %s199
    %s219 = sphi 0, %s221
    %s222 = sphi 0, %s219
    %s223 = sphi 0, %s222
    %s239 = sphi 0, %s223
  $region4: #{tpu_custom_call.1} parent=0 // loop_header_branch
    %18 = sbr.rel (%p16) target = $region8
  $region5: #{tpu_custom_call.1} parent=0 // loop_body
    %s20 = ssub.s32 %s15, 1
    %s21 = ssub.s32 %s15, 2
    %s22 = sadd.s32 %s15, 1
    %s23 = ssub.s32 %s15, %s22
    %p24 = scmp.eq.s32.totalorder %s23, 0
    %s26 = sadd.s32 %s25, 1
    %s27 = scalar_select %p24, %s25, %s26
    %p30 = pneg %p24
    %p31 = scmp.eq.s32.totalorder %s15, 1
    %p32 = por %p30, %p31
    %p33 = scmp.ne.s32.totalorder %s25, %s28
    %p34 = scmp.eq.s32.totalorder %s15, 0
    %p35 = por %p33, %p34
    %p36 = scmp.ne.s32.totalorder %s25, %s28
    %p37 = scmp.eq.s32.totalorder %s20, 1
    %p38 = por %p36, %p37
    %p39 = scmp.ne.s32.totalorder %s28, %s29
    %p40 = scmp.eq.s32.totalorder %s20, 0
    %p41 = por %p39, %p40
    %p42 = scmp.ne.s32.totalorder %s28, %s29
    %p43 = scmp.eq.s32.totalorder %s21, 1
    %p44 = por %p42, %p43
    %p46 = scmp.ne.s32.totalorder %s29, %s45
    %p47 = scmp.eq.s32.totalorder %s21, 0
    %p48 = por %p46, %p47
    %s50 = sadd.s32 %s49, 1
    %p53 = scmp.eq.s32.totalorder %s15, 1
    %p54 = scmp.ne.s32.totalorder %s49, %s51
    %p55 = scmp.eq.s32.totalorder %s15, 0
    %p56 = por %p54, %p55
    %p57 = scmp.ne.s32.totalorder %s49, %s51
    %p58 = scmp.eq.s32.totalorder %s20, 1
    %p59 = por %p57, %p58
    %p60 = scmp.ne.s32.totalorder %s51, %s52
    %p61 = scmp.eq.s32.totalorder %s20, 0
    %p62 = por %p60, %p61
    %p63 = scmp.ne.s32.totalorder %s51, %s52
    %p64 = scmp.eq.s32.totalorder %s21, 1
    %p65 = por %p63, %p64
    %p67 = scmp.ne.s32.totalorder %s52, %s66
    %p68 = scmp.eq.s32.totalorder %s21, 0
    %p69 = por %p67, %p68
    %s71 = sadd.s32 %s70, 1
    %p74 = scmp.eq.s32.totalorder %s15, 1
    %p75 = scmp.ne.s32.totalorder %s70, %s72
    %p76 = scmp.eq.s32.totalorder %s15, 0
    %p77 = por %p75, %p76
    %p78 = scmp.ne.s32.totalorder %s70, %s72
    %p79 = scmp.eq.s32.totalorder %s20, 1
    %p80 = por %p78, %p79
    %p81 = scmp.ne.s32.totalorder %s72, %s73
    %p82 = scmp.eq.s32.totalorder %s20, 0
    %p83 = por %p81, %p82
    %p84 = scmp.ne.s32.totalorder %s72, %s73
    %p85 = scmp.eq.s32.totalorder %s21, 1
    %p86 = por %p84, %p85
    %p88 = scmp.ne.s32.totalorder %s73, %s87
    %p89 = scmp.eq.s32.totalorder %s21, 0
    %p90 = por %p88, %p89
    %s92 = sadd.s32 %s91, 1
    %p95 = scmp.eq.s32.totalorder %s15, 1
    %p96 = scmp.ne.s32.totalorder %s91, %s93
    %p97 = scmp.eq.s32.totalorder %s15, 0
    %p98 = por %p96, %p97
    %p99 = scmp.ne.s32.totalorder %s91, %s93
    %p100 = scmp.eq.s32.totalorder %s20, 1
    %p101 = por %p99, %p100
    %p102 = scmp.ne.s32.totalorder %s93, %s94
    %p103 = scmp.eq.s32.totalorder %s20, 0
    %p104 = por %p102, %p103
    %p105 = scmp.ne.s32.totalorder %s93, %s94
    %p106 = scmp.eq.s32.totalorder %s21, 1
    %p107 = por %p105, %p106
    %p109 = scmp.ne.s32.totalorder %s94, %s108
    %p110 = scmp.eq.s32.totalorder %s21, 0
    %p111 = por %p109, %p110
    %s113 = sadd.s32 %s112, 1
    %p116 = scmp.eq.s32.totalorder %s15, 1
    %p117 = scmp.ne.s32.totalorder %s112, %s114
    %p118 = scmp.eq.s32.totalorder %s15, 0
    %p119 = por %p117, %p118
    %p120 = scmp.ne.s32.totalorder %s112, %s114
    %p121 = scmp.eq.s32.totalorder %s20, 1
    %p122 = por %p120, %p121
    %p123 = scmp.ne.s32.totalorder %s114, %s115
    %p124 = scmp.eq.s32.totalorder %s20, 0
    %p125 = por %p123, %p124
    %p126 = scmp.ne.s32.totalorder %s114, %s115
    %p127 = scmp.eq.s32.totalorder %s21, 1
    %p128 = por %p126, %p127
    %p130 = scmp.ne.s32.totalorder %s115, %s129
    %p131 = scmp.eq.s32.totalorder %s21, 0
    %p132 = por %p130, %p131
    %s134 = sadd.s32 %s133, 1
    %p137 = scmp.eq.s32.totalorder %s15, 1
    %p138 = scmp.ne.s32.totalorder %s133, %s135
    %p139 = scmp.eq.s32.totalorder %s15, 0
    %p140 = por %p138, %p139
    %p141 = scmp.ne.s32.totalorder %s133, %s135
    %p142 = scmp.eq.s32.totalorder %s20, 1
    %p143 = por %p141, %p142
    %p144 = scmp.ne.s32.totalorder %s135, %s136
    %p145 = scmp.eq.s32.totalorder %s20, 0
    %p146 = por %p144, %p145
    %p147 = scmp.ne.s32.totalorder %s135, %s136
    %p148 = scmp.eq.s32.totalorder %s21, 1
    %p149 = por %p147, %p148
    %p151 = scmp.ne.s32.totalorder %s136, %s150
    %p152 = scmp.eq.s32.totalorder %s21, 0
    %p153 = por %p151, %p152
    %s155 = sadd.s32 %s154, 1
    %p158 = scmp.eq.s32.totalorder %s15, 1
    %p159 = scmp.ne.s32.totalorder %s154, %s156
    %p160 = scmp.eq.s32.totalorder %s15, 0
    %p161 = por %p159, %p160
    %p162 = scmp.ne.s32.totalorder %s154, %s156
    %p163 = scmp.eq.s32.totalorder %s20, 1
    %p164 = por %p162, %p163
    %p165 = scmp.ne.s32.totalorder %s156, %s157
    %p166 = scmp.eq.s32.totalorder %s20, 0
    %p167 = por %p165, %p166
    %p168 = scmp.ne.s32.totalorder %s156, %s157
    %p169 = scmp.eq.s32.totalorder %s21, 1
    %p170 = por %p168, %p169
    %p172 = scmp.ne.s32.totalorder %s157, %s171
    %p173 = scmp.eq.s32.totalorder %s21, 0
    %p174 = por %p172, %p173
    %s176 = sadd.s32 %s175, 1
    %p179 = scmp.eq.s32.totalorder %s15, 1
    %p180 = scmp.ne.s32.totalorder %s175, %s177
    %p181 = scmp.eq.s32.totalorder %s15, 0
    %p182 = por %p180, %p181
    %p183 = scmp.ne.s32.totalorder %s175, %s177
    %p184 = scmp.eq.s32.totalorder %s20, 1
    %p185 = por %p183, %p184
    %p186 = scmp.ne.s32.totalorder %s177, %s178
    %p187 = scmp.eq.s32.totalorder %s20, 0
    %p188 = por %p186, %p187
    %p189 = scmp.ne.s32.totalorder %s177, %s178
    %p190 = scmp.eq.s32.totalorder %s21, 1
    %p191 = por %p189, %p190
    %p193 = scmp.ne.s32.totalorder %s178, %s192
    %p194 = scmp.eq.s32.totalorder %s21, 0
    %p195 = por %p193, %p194
    %s197 = sadd.s32 %s196, 1
    %p200 = scmp.eq.s32.totalorder %s15, 1
    %p201 = scmp.ne.s32.totalorder %s196, %s198
    %p202 = scmp.eq.s32.totalorder %s15, 0
    %p203 = por %p201, %p202
    %p204 = scmp.ne.s32.totalorder %s196, %s198
    %p205 = scmp.eq.s32.totalorder %s20, 1
    %p206 = por %p204, %p205
    %p207 = scmp.ne.s32.totalorder %s198, %s199
    %p208 = scmp.eq.s32.totalorder %s20, 0
    %p209 = por %p207, %p208
    %p210 = scmp.ne.s32.totalorder %s198, %s199
    %p211 = scmp.eq.s32.totalorder %s21, 1
    %p212 = por %p210, %p211
    %p214 = scmp.ne.s32.totalorder %s199, %s213
    %p215 = scmp.eq.s32.totalorder %s21, 0
    %p216 = por %p214, %p215
    %s217 = ssub.s32 %s15, %s22
    %p218 = scmp.eq.s32.totalorder %s217, 0
    %s220 = sadd.s32 %s219, 1
    %s221 = scalar_select %p218, %s219, %s220
    %p224 = pneg %p218
    %p225 = scmp.eq.s32.totalorder %s15, 1
    %p226 = por %p224, %p225
    %p227 = scmp.ne.s32.totalorder %s219, %s222
    %p228 = scmp.eq.s32.totalorder %s15, 0
    %p229 = por %p227, %p228
    %p230 = scmp.ne.s32.totalorder %s219, %s222
    %p231 = scmp.eq.s32.totalorder %s20, 1
    %p232 = por %p230, %p231
    %p233 = scmp.ne.s32.totalorder %s222, %s223
    %p234 = scmp.eq.s32.totalorder %s20, 0
    %p235 = por %p233, %p234
    %p236 = scmp.ne.s32.totalorder %s222, %s223
    %p237 = scmp.eq.s32.totalorder %s21, 1
    %p238 = por %p236, %p237
    %p240 = scmp.ne.s32.totalorder %s223, %s239
    %p241 = scmp.eq.s32.totalorder %s21, 0
    %p242 = por %p240, %p241
    %p243 = scmp.le.s32.totalorder 1, %s15
    %p244 = scmp.lt.s32.totalorder %s15, 3
    %p245 = pnand %p243, %p244
    %p246 = pneg %p245
    // Predicated region
    $region9: #{tpu_custom_call.1} parent=5 // pred_check
      _
    $region10: #{tpu_custom_call.1} parent=5 // pred_check_branch
      %248 = sbr.rel (%p245) target = $region12
    $region11: #{tpu_custom_call.1} parent=5 // pred_region
      %s249 = ssub.s32 %s15, 1
      // Predicated region
      $region13: #{tpu_custom_call.1} parent=11 // pred_check
        %p250 = pneg %p62
      $region14: #{tpu_custom_call.1} parent=11 // pred_check_branch
        %252 = sbr.rel (%p250) target = $region16
      $region15: #{tpu_custom_call.1} parent=11 // pred_region
        _
      $region16: #{tpu_custom_call.1} parent=11 // pred_fallthru
        _
      // Predicated region
      $region17: #{tpu_custom_call.1} parent=11 // pred_check
        %p253 = pneg %p83
      $region18: #{tpu_custom_call.1} parent=11 // pred_check_branch
        %255 = sbr.rel (%p253) target = $region20
      $region19: #{tpu_custom_call.1} parent=11 // pred_region
        _
      $region20: #{tpu_custom_call.1} parent=11 // pred_fallthru
        _
      // Predicated region
      $region21: #{tpu_custom_call.1} parent=11 // pred_check
        %p256 = pneg %p104
      $region22: #{tpu_custom_call.1} parent=11 // pred_check_branch
        %258 = sbr.rel (%p256) target = $region24
      $region23: #{tpu_custom_call.1} parent=11 // pred_region
        _
      $region24: #{tpu_custom_call.1} parent=11 // pred_fallthru
        _
      // Predicated region
      $region25: #{tpu_custom_call.1} parent=11 // pred_check
        %p259 = pneg %p125
      $region26: #{tpu_custom_call.1} parent=11 // pred_check_branch
        %261 = sbr.rel (%p259) target = $region28
      $region27: #{tpu_custom_call.1} parent=11 // pred_region
        _
      $region28: #{tpu_custom_call.1} parent=11 // pred_fallthru
        _
      // Predicated region
      $region29: #{tpu_custom_call.1} parent=11 // pred_check
        %p262 = pneg %p146
      $region30: #{tpu_custom_call.1} parent=11 // pred_check_branch
        %264 = sbr.rel (%p262) target = $region32
      $region31: #{tpu_custom_call.1} parent=11 // pred_region
        _
      $region32: #{tpu_custom_call.1} parent=11 // pred_fallthru
        _
      // Predicated region
      $region33: #{tpu_custom_call.1} parent=11 // pred_check
        %p265 = pneg %p167
      $region34: #{tpu_custom_call.1} parent=11 // pred_check_branch
        %267 = sbr.rel (%p265) target = $region36
      $region35: #{tpu_custom_call.1} parent=11 // pred_region
        _
      $region36: #{tpu_custom_call.1} parent=11 // pred_fallthru
        _
      // Predicated region
      $region37: #{tpu_custom_call.1} parent=11 // pred_check
        %p268 = pneg %p188
      $region38: #{tpu_custom_call.1} parent=11 // pred_check_branch
        %270 = sbr.rel (%p268) target = $region40
      $region39: #{tpu_custom_call.1} parent=11 // pred_region
        _
      $region40: #{tpu_custom_call.1} parent=11 // pred_fallthru
        _
      // Predicated region
      $region41: #{tpu_custom_call.1} parent=11 // pred_check
        %p271 = pneg %p209
      $region42: #{tpu_custom_call.1} parent=11 // pred_check_branch
        %273 = sbr.rel (%p271) target = $region44
      $region43: #{tpu_custom_call.1} parent=11 // pred_region
        _
      $region44: #{tpu_custom_call.1} parent=11 // pred_fallthru
        _
    $region12: #{tpu_custom_call.1} parent=5 // pred_fallthru
      _
    %p274 = scmp.lt.s32.totalorder %s15, 2
    // Predicated region
    $region45: #{tpu_custom_call.1} parent=5 // pred_check
      %p275 = pneg %p274
    $region46: #{tpu_custom_call.1} parent=5 // pred_check_branch
      %277 = sbr.rel (%p275) target = $region48
    $region47: #{tpu_custom_call.1} parent=5 // pred_region
      // Predicated region
      $region49: #{tpu_custom_call.1} parent=47 // pred_check
        %p278 = pneg %p35
      $region50: #{tpu_custom_call.1} parent=47 // pred_check_branch
        %280 = sbr.rel (%p278) target = $region52
      $region51: #{tpu_custom_call.1} parent=47 // pred_region
        %p281 = scmp.lt.s32.totalorder %s15, 1
        %s282 = scalar_select %p281, %s15, 1
        %s283 = smul.addr %s282, 8
        %s284 = smul.addr %s283, 4
        %s285 = scalar_lea.vmem %s0, %s284
      $region52: #{tpu_custom_call.1} parent=47 // pred_fallthru
        _
    $region48: #{tpu_custom_call.1} parent=5 // pred_fallthru
      _
    %p286 = scmp.le.s32.totalorder 1, %s15
    %p287 = scmp.lt.s32.totalorder %s15, 3
    %p288 = pnand %p286, %p287
    %p289 = pneg %p288
    // Predicated region
    $region53: #{tpu_custom_call.1} parent=5 // pred_check
      _
    $region54: #{tpu_custom_call.1} parent=5 // pred_check_branch
      %291 = sbr.rel (%p288) target = $region56
    $region55: #{tpu_custom_call.1} parent=5 // pred_region
      %s292 = ssub.s32 %s15, 1
      %p293 = scmp.lt.s32.totalorder %s20, 1
      %s294 = scalar_select %p293, %s20, 1
      %s295 = smul.addr %s294, 8
      %s296 = smul.addr %s295, 4
      %s297 = scalar_lea.vmem %s0, %s296
      %p298 = pneg %p41
      %p299 = pneg %p38
      %p300 = pneg %p62
      %p301 = pneg %p59
      %p302 = pneg %p83
      %p303 = pneg %p80
      %p304 = pneg %p104
      %p305 = pneg %p101
      %p306 = pneg %p125
      %p307 = pneg %p122
      %p308 = pneg %p146
      %p309 = pneg %p143
      %p310 = pneg %p167
      %p311 = pneg %p164
      %p312 = pneg %p188
      %p313 = pneg %p185
      %p314 = pneg %p209
      %p315 = pneg %p206
      %p316 = pneg %p235
      %p317 = pneg %p232
      %p318 = scmp.lt.s32.totalorder %s20, 1
      %s319 = scalar_select %p318, %s20, 1
      %s320 = smul.addr %s319, 8
      %s321 = smul.addr %s320, 8
      %s322 = scalar_lea.vmem %s9, %s321
      %p323 = scmp.lt.s32.totalorder %s20, 1
      %s324 = scalar_select %p323, %s20, 1
      %s325 = smul.addr %s324, 8
      %s326 = smul.addr %s325, 4
      %s327 = scalar_lea.vmem %s0, %s326
      %p328 = scmp.lt.s32.totalorder %s20, 1
      %s329 = scalar_select %p328, %s20, 1
      %s330 = smul.addr %s329, 8
      %s331 = smul.addr %s330, 8
      %s332 = scalar_lea.vmem %s9, %s331
      %vm334 = vcmask 125952
      %335 = vst.msk [vmem:[#allocation2] sm:$0xf] %vm334, 0
      %336 = vst.msk [vmem:[#allocation2 + $0x4] sm:$0xf] %vm334, 0
      %337 = vst.msk [vmem:[#allocation2 + $0x8] sm:$0xf] %vm334, 0
      %338 = vst.msk [vmem:[#allocation2 + $0xc] sm:$0xf] %vm334, 0
      %339 = vst.msk [vmem:[#allocation2 + $0x10] sm:$0xf] %vm334, 0
      %340 = vst.msk [vmem:[#allocation2 + $0x14] sm:$0xf] %vm334, 0
      %341 = vst.msk [vmem:[#allocation2 + $0x18] sm:$0xf] %vm334, 0
      %342 = vst.msk [vmem:[#allocation2 + $0x1c] sm:$0xf] %vm334, 0
      %343 = vst.msk [vmem:[#allocation2 + $0x20] sm:$0xf] %vm334, 0
      %344 = vst.msk [vmem:[#allocation2 + $0x24] sm:$0xf] %vm334, 0
      %345 = vst.msk [vmem:[#allocation2 + $0x28] sm:$0xf] %vm334, 0
      %346 = vst.msk [vmem:[#allocation2 + $0x2c] sm:$0xf] %vm334, 0
      %347 = vst.msk [vmem:[#allocation2 + $0x30] sm:$0xf] %vm334, 0
      %348 = vst.msk [vmem:[#allocation2 + $0x34] sm:$0xf] %vm334, 0
      %349 = vst.msk [vmem:[#allocation2 + $0x38] sm:$0xf] %vm334, 0
      %350 = vst.msk [vmem:[#allocation2 + $0x3c] sm:$0xf] %vm334, 0
      %351 = vst.msk [vmem:[#allocation2 + $0x40] sm:$0xf] %vm334, 0
      %352 = vst.msk [vmem:[#allocation2 + $0x44] sm:$0xf] %vm334, 0
      %353 = vst.msk [vmem:[#allocation2 + $0x48] sm:$0xf] %vm334, 0
      %354 = vst.msk [vmem:[#allocation2 + $0x4c] sm:$0xf] %vm334, 0
      %355 = vst.msk [vmem:[#allocation2 + $0x50] sm:$0xf] %vm334, 0
      %356 = vst.msk [vmem:[#allocation2 + $0x54] sm:$0xf] %vm334, 0
      %357 = vst.msk [vmem:[#allocation2 + $0x58] sm:$0xf] %vm334, 0
      %358 = vst.msk [vmem:[#allocation2 + $0x5c] sm:$0xf] %vm334, 0
      %359 = vst.msk [vmem:[#allocation2 + $0x60] sm:$0xf] %vm334, 0
      %360 = vst.msk [vmem:[#allocation2 + $0x64] sm:$0xf] %vm334, 0
      %361 = vst.msk [vmem:[#allocation2 + $0x68] sm:$0xf] %vm334, 0
      %362 = vst.msk [vmem:[#allocation2 + $0x6c] sm:$0xf] %vm334, 0
      %363 = vst.msk [vmem:[#allocation2 + $0x70] sm:$0xf] %vm334, 0
      %364 = vst.msk [vmem:[#allocation2 + $0x74] sm:$0xf] %vm334, 0
      %v365 = vld [vmem:[%s327] sm:$0xf]
      %v366 = vld [vmem:[%s327 + $0x4] sm:$0xf]
      %v367 = vld [vmem:[%s327 + $0x8] sm:$0xf]
      %v368 = vld [vmem:[%s327 + $0xc] sm:$0xf]
      %v369 = vld [vmem:[%s327 + $0x10] sm:$0xf]
      %v370 = vld [vmem:[%s327 + $0x14] sm:$0xf]
      %v371 = vld [vmem:[%s327 + $0x18] sm:$0xf]
      %v372 = vld [vmem:[%s327 + $0x1c] sm:$0xf]
      %v373 = vld [vmem:[%s1] sm:$0xf]
      %v374 = vld [vmem:[%s1 + $0x4] sm:$0xf]
      %v375 = vld [vmem:[%s2] sm:$0x1]
      %v377 = vlaneseq
      %v378 = vshrl.u32 %v377, 7
      %v379 = vsub.s32 0, %v378
      %v380 = vrot.slane %v375, %v379
      %v390 = vunpack.c.l.b16 %v365
      %v391 = vunpack.c.l.b16 %v366
      %v392 = vunpack.c.l.b16 %v367
      %v393 = vunpack.c.l.b16 %v368
      %v394 = vunpack.c.l.b16 %v369
      %v395 = vunpack.c.l.b16 %v370
      %v396 = vunpack.c.l.b16 %v371
      %v397 = vunpack.c.l.b16 %v372
      %v398 = vpack.c.b16 %v391, %v390
      %v399 = vpack.c.b16 %v393, %v392
      %v400 = vpack.c.b16 %v395, %v394
      %v401 = vpack.c.b16 %v397, %v396
      %v404 = vunpack.c.l.b16 %v373
      %v405 = vunpack.c.l.b16 %v374
      %v406 = vpack.c.b16 %v405, %v404
      %vm408 = vcmask 130048
      %v410 = vsel %vm408, %v398, 0
      %v413 = vsel %vm408, %v399, 0
      %v416 = vsel %vm408, %v400, 0
      %v419 = vsel %vm408, %v401, 0
      %421 = vmatprep.subr.bf16.mxu0 0
      %422 = vmatpush1.bf16.msra.mxu0 0
      %423 = vmatprep.subr.bf16.mxu0 0
      %424 = vmatpush1.bf16.msra.mxu0 0
      %425 = vmatprep.subr.bf16.mxu0 0
      %426 = vmatpush1.bf16.msra.mxu0 0
      %427 = vmatprep.subr.bf16.mxu0 0
      %428 = vmatpush1.bf16.msra.mxu0 0
      %429 = vmatprep.subr.bf16.mxu0 0
      %430 = vmatpush1.bf16.msra.mxu0 0
      %431 = vmatprep.subr.bf16.mxu0 0
      %432 = vmatpush1.bf16.msra.mxu0 0
      %433 = vmatprep.subr.bf16.mxu0 0
      %434 = vmatpush1.bf16.msra.mxu0 0
      %435 = vmatprep.subr.bf16.mxu0 0
      %436 = vmatpush1.bf16.msra.mxu0 %v406
      %437 = vmatprep.subr.bf16.mxu0 0
      %438 = vmatpush2.bf16.msra.mxu0 0
      %439 = vmatprep.subr.bf16.mxu0 0
      %440 = vmatpush2.bf16.msra.mxu0 0
      %441 = vmatprep.subr.bf16.mxu0 0
      %442 = vmatpush2.bf16.msra.mxu0 0
      %443 = vmatprep.subr.bf16.mxu0 0
      %444 = vmatpush2.bf16.msra.mxu0 0
      %445 = vmatprep.subr.bf16.mxu0 0
      %446 = vmatpush2.bf16.msra.mxu0 0
      %447 = vmatprep.subr.bf16.mxu0 0
      %448 = vmatpush2.bf16.msra.mxu0 0
      %449 = vmatprep.subr.bf16.mxu0 0
      %450 = vmatpush2.bf16.msra.mxu0 0
      %451 = vmatprep.subr.bf16.mxu0 0
      %452 = vmatpush2.bf16.msra.mxu0 0
      %453 = vmatprep.mubr.bf16.mxu0 0
      %454 = vmatmul.mubr.bf16.gmra.mxu0 %v410
      %v455 = vpop.f32.mrf.mxu0
      %v456 = vadd.f32 %v380, %v455
      %v457 = vpop.f32.mrf.mxu0
      %v458 = vpop.f32.mrf.mxu0
      %v459 = vadd.f32 %v380, %v458
      %v460 = vpop.f32.mrf.mxu0
      %461 = vmatprep.mubr.bf16.mxu0 0
      %462 = vmatmul.mubr.bf16.gmra.mxu0 %v413
      %v463 = vpop.f32.mrf.mxu0
      %v464 = vadd.f32 %v380, %v463
      %v465 = vpop.f32.mrf.mxu0
      %v466 = vpop.f32.mrf.mxu0
      %v467 = vadd.f32 %v380, %v466
      %v468 = vpop.f32.mrf.mxu0
      %469 = vmatprep.mubr.bf16.mxu0 0
      %470 = vmatmul.mubr.bf16.gmra.mxu0 %v416
      %v471 = vpop.f32.mrf.mxu0
      %v472 = vadd.f32 %v380, %v471
      %v473 = vpop.f32.mrf.mxu0
      %v474 = vpop.f32.mrf.mxu0
      %v475 = vadd.f32 %v380, %v474
      %v476 = vpop.f32.mrf.mxu0
      %477 = vmatprep.mubr.bf16.mxu0 0
      %478 = vmatmul.mubr.bf16.gmra.mxu0 %v419
      %v479 = vpop.f32.mrf.mxu0
      %v480 = vadd.f32 %v380, %v479
      %v481 = vpop.f32.mrf.mxu0
      %v482 = vpop.f32.mrf.mxu0
      %v483 = vadd.f32 %v380, %v482
      %v484 = vpop.f32.mrf.mxu0
      %485 = vdwg.mxu0
      %v486 = vmax.f32 %v456, 0.0
      %v487 = vmax.f32 %v459, 0.0
      %v488 = vmax.f32 %v464, 0.0
      %v489 = vmax.f32 %v467, 0.0
      %v490 = vmax.f32 %v472, 0.0
      %v491 = vmax.f32 %v475, 0.0
      %v492 = vmax.f32 %v480, 0.0
      %v493 = vmax.f32 %v483, 0.0
      %v494 = vpack.c.bf16 %v487, %v486
      %v495 = vpack.c.bf16 %v489, %v488
      %v496 = vpack.c.bf16 %v491, %v490
      %v497 = vpack.c.bf16 %v493, %v492
      %s498 = scalar_lea.vmem [#allocation2], 12
      %499 = vst.msk [vmem:[%s498 + $0x4] sm:$0xf] %vm334, %v494
      %v501 = vunpack.c.h.b16 %v494
      %v502 = vpack.c.b16 %v501, %v501
      %s504 = scalar_lea.vmem [#allocation2], 24
      %505 = vst.msk [vmem:[%s504 + $0x4] sm:$0xf] %vm334, %v502
      %s506 = scalar_lea.vmem [#allocation2], 36
      %507 = vst.msk [vmem:[%s506 + $0x4] sm:$0xf] %vm334, %v495
      %v509 = vunpack.c.h.b16 %v495
      %v510 = vpack.c.b16 %v509, %v509
      %s512 = scalar_lea.vmem [#allocation2], 48
      %513 = vst.msk [vmem:[%s512 + $0x4] sm:$0xf] %vm334, %v510
      %s514 = scalar_lea.vmem [#allocation2], 60
      %515 = vst.msk [vmem:[%s514 + $0x4] sm:$0xf] %vm334, %v496
      %v517 = vunpack.c.h.b16 %v496
      %v518 = vpack.c.b16 %v517, %v517
      %s520 = scalar_lea.vmem [#allocation2], 72
      %521 = vst.msk [vmem:[%s520 + $0x4] sm:$0xf] %vm334, %v518
      %s522 = scalar_lea.vmem [#allocation2], 84
      %523 = vst.msk [vmem:[%s522 + $0x4] sm:$0xf] %vm334, %v497
      %v525 = vunpack.c.h.b16 %v497
      %v526 = vpack.c.b16 %v525, %v525
      %s528 = scalar_lea.vmem [#allocation2], 96
      %529 = vst.msk [vmem:[%s528 + $0x4] sm:$0xf] %vm334, %v526
      %v530 = vld [vmem:[%s4] sm:$0x1]
      %v531 = vld [vmem:[#allocation2] sm:$0x8]
      %v532 = vld [vmem:[#allocation2 + $0x4] sm:$0xf]
      %v533 = vld [vmem:[%s3] sm:$0xf]
      %v534 = vld [vmem:[%s3 + $0x4] sm:$0xf]
      %s535 = scalar_lea.vmem %s3, 8
      %v536 = vld [vmem:[%s535] sm:$0xf]
      %v537 = vld [vmem:[%s535 + $0x4] sm:$0xf]
      %v540 = vunpack.c.l.b16 %v536
      %v541 = vunpack.c.l.b16 %v537
      %v542 = vpack.c.b16 %v541, %v540
      %v545 = vsel %vm408, %v532, 0
      %547 = vmatprep.subr.bf16.mxu0 0
      %548 = vmatpush1.bf16.msra.mxu0 0
      %549 = vmatprep.subr.bf16.mxu0 0
      %550 = vmatpush1.bf16.msra.mxu0 0
      %551 = vmatprep.subr.bf16.mxu0 0
      %552 = vmatpush1.bf16.msra.mxu0 0
      %553 = vmatprep.subr.bf16.mxu0 0
      %554 = vmatpush1.bf16.msra.mxu0 0
      %555 = vmatprep.subr.bf16.mxu0 0
      %556 = vmatpush1.bf16.msra.mxu0 0
      %557 = vmatprep.subr.bf16.mxu0 0
      %558 = vmatpush1.bf16.msra.mxu0 0
      %559 = vmatprep.subr.bf16.mxu0 0
      %560 = vmatpush1.bf16.msra.mxu0 0
      %561 = vmatprep.subr.bf16.mxu0 0
      %562 = vmatpush1.bf16.msra.mxu0 %v542
      %563 = vmatprep.subr.bf16.mxu0 0
      %564 = vmatpush2.bf16.msra.mxu0 0
      %565 = vmatprep.subr.bf16.mxu0 0
      %566 = vmatpush2.bf16.msra.mxu0 0
      %567 = vmatprep.subr.bf16.mxu0 0
      %568 = vmatpush2.bf16.msra.mxu0 0
      %569 = vmatprep.subr.bf16.mxu0 0
      %570 = vmatpush2.bf16.msra.mxu0 0
      %571 = vmatprep.subr.bf16.mxu0 0
      %572 = vmatpush2.bf16.msra.mxu0 0
      %573 = vmatprep.subr.bf16.mxu0 0
      %574 = vmatpush2.bf16.msra.mxu0 0
      %575 = vmatprep.subr.bf16.mxu0 0
      %576 = vmatpush2.bf16.msra.mxu0 0
      %577 = vmatprep.subr.bf16.mxu0 0
      %578 = vmatpush2.bf16.msra.mxu0 0
      %579 = vmatprep.mubr.bf16.mxu0 0
      %580 = vmatmul.mubr.bf16.gmra.mxu0 %v545
      %v581 = vpop.f32.mrf.mxu0
      %v582 = vadd.f32 0.0, %v581
      %v583 = vpop.f32.mrf.mxu0
      %v584 = vpop.f32.mrf.mxu0
      %v585 = vpop.f32.mrf.mxu0
      %586 = vdwg.mxu0
      %v589 = vunpack.c.l.b16 %v531
      %v590 = vunpack.c.l.b16 %v532
      %v591 = vpack.c.b16 %v590, %v589
      %v593 = vshrl.u32 %v591, 16
      %v595 = vrot.slane %v593, 3
      %v596 = vshll.u32 %v591, 16
      %v598 = vrot.slane %v596, 4
      %v599 = vor.u32 %v595, %v598
      %v602 = vunpack.c.l.b16 %v533
      %v603 = vunpack.c.l.b16 %v534
      %v604 = vpack.c.b16 %v603, %v602
      %v607 = vsel %vm408, %v599, 0
      %609 = vmatprep.subr.bf16.mxu0 0
      %610 = vmatpush1.bf16.msra.mxu0 0
      %611 = vmatprep.subr.bf16.mxu0 0
      %612 = vmatpush1.bf16.msra.mxu0 0
      %613 = vmatprep.subr.bf16.mxu0 0
      %614 = vmatpush1.bf16.msra.mxu0 0
      %615 = vmatprep.subr.bf16.mxu0 0
      %616 = vmatpush1.bf16.msra.mxu0 0
      %617 = vmatprep.subr.bf16.mxu0 0
      %618 = vmatpush1.bf16.msra.mxu0 0
      %619 = vmatprep.subr.bf16.mxu0 0
      %620 = vmatpush1.bf16.msra.mxu0 0
      %621 = vmatprep.subr.bf16.mxu0 0
      %622 = vmatpush1.bf16.msra.mxu0 0
      %623 = vmatprep.subr.bf16.mxu0 0
      %624 = vmatpush1.bf16.msra.mxu0 %v604
      %625 = vmatprep.subr.bf16.mxu0 0
      %626 = vmatpush2.bf16.msra.mxu0 0
      %627 = vmatprep.subr.bf16.mxu0 0
      %628 = vmatpush2.bf16.msra.mxu0 0
      %629 = vmatprep.subr.bf16.mxu0 0
      %630 = vmatpush2.bf16.msra.mxu0 0
      %631 = vmatprep.subr.bf16.mxu0 0
      %632 = vmatpush2.bf16.msra.mxu0 0
      %633 = vmatprep.subr.bf16.mxu0 0
      %634 = vmatpush2.bf16.msra.mxu0 0
      %635 = vmatprep.subr.bf16.mxu0 0
      %636 = vmatpush2.bf16.msra.mxu0 0
      %637 = vmatprep.subr.bf16.mxu0 0
      %638 = vmatpush2.bf16.msra.mxu0 0
      %639 = vmatprep.subr.bf16.mxu0 0
      %640 = vmatpush2.bf16.msra.mxu0 0
      %641 = vmatprep.mubr.bf16.mxu0 0
      %642 = vmatmul.mubr.bf16.gmra.mxu0 %v607
      %v643 = vpop.f32.mrf.mxu0
      %v644 = vadd.f32 %v582, %v643
      %v645 = vpop.f32.mrf.mxu0
      %v646 = vpop.f32.mrf.mxu0
      %v647 = vpop.f32.mrf.mxu0
      %648 = vdwg.mxu0
      %v649 = vld [vmem:[%s498] sm:$0x8]
      %v650 = vld [vmem:[%s498 + $0x4] sm:$0xf]
      %s651 = scalar_lea.vmem %s3, 16
      %v652 = vld [vmem:[%s651] sm:$0xf]
      %v653 = vld [vmem:[%s651 + $0x4] sm:$0xf]
      %v656 = vunpack.c.l.b16 %v649
      %v657 = vunpack.c.l.b16 %v650
      %v658 = vpack.c.b16 %v657, %v656
      %v660 = vshrl.u32 %v658, 16
      %v662 = vrot.slane %v660, 3
      %v663 = vshll.u32 %v658, 16
      %v665 = vrot.slane %v663, 4
      %v666 = vor.u32 %v662, %v665
      %v669 = vunpack.c.l.b16 %v652
      %v670 = vunpack.c.l.b16 %v653
      %v671 = vpack.c.b16 %v670, %v669
      %v674 = vsel %vm408, %v666, 0
      %676 = vmatprep.subr.bf16.mxu0 0
      %677 = vmatpush1.bf16.msra.mxu0 0
      %678 = vmatprep.subr.bf16.mxu0 0
      %679 = vmatpush1.bf16.msra.mxu0 0
      %680 = vmatprep.subr.bf16.mxu0 0
      %681 = vmatpush1.bf16.msra.mxu0 0
      %682 = vmatprep.subr.bf16.mxu0 0
      %683 = vmatpush1.bf16.msra.mxu0 0
      %684 = vmatprep.subr.bf16.mxu0 0
      %685 = vmatpush1.bf16.msra.mxu0 0
      %686 = vmatprep.subr.bf16.mxu0 0
      %687 = vmatpush1.bf16.msra.mxu0 0
      %688 = vmatprep.subr.bf16.mxu0 0
      %689 = vmatpush1.bf16.msra.mxu0 0
      %690 = vmatprep.subr.bf16.mxu0 0
      %691 = vmatpush1.bf16.msra.mxu0 %v671
      %692 = vmatprep.subr.bf16.mxu0 0
      %693 = vmatpush2.bf16.msra.mxu0 0
      %694 = vmatprep.subr.bf16.mxu0 0
      %695 = vmatpush2.bf16.msra.mxu0 0
      %696 = vmatprep.subr.bf16.mxu0 0
      %697 = vmatpush2.bf16.msra.mxu0 0
      %698 = vmatprep.subr.bf16.mxu0 0
      %699 = vmatpush2.bf16.msra.mxu0 0
      %700 = vmatprep.subr.bf16.mxu0 0
      %701 = vmatpush2.bf16.msra.mxu0 0
      %702 = vmatprep.subr.bf16.mxu0 0
      %703 = vmatpush2.bf16.msra.mxu0 0
      %704 = vmatprep.subr.bf16.mxu0 0
      %705 = vmatpush2.bf16.msra.mxu0 0
      %706 = vmatprep.subr.bf16.mxu0 0
      %707 = vmatpush2.bf16.msra.mxu0 0
      %708 = vmatprep.mubr.bf16.mxu0 0
      %709 = vmatmul.mubr.bf16.gmra.mxu0 %v674
      %v710 = vpop.f32.mrf.mxu0
      %v711 = vadd.f32 0.0, %v710
      %v712 = vpop.f32.mrf.mxu0
      %v713 = vpop.f32.mrf.mxu0
      %v714 = vpop.f32.mrf.mxu0
      %715 = vdwg.mxu0
      %v716 = vadd.f32 %v644, %v711
      %s717 = scalar_lea.vmem %s3, 24
      %v718 = vld [vmem:[%s717] sm:$0xf]
      %v719 = vld [vmem:[%s717 + $0x4] sm:$0xf]
      %v722 = vunpack.c.l.b16 %v718
      %v723 = vunpack.c.l.b16 %v719
      %v724 = vpack.c.b16 %v723, %v722
      %v727 = vsel %vm408, %v650, 0
      %729 = vmatprep.subr.bf16.mxu0 0
      %730 = vmatpush1.bf16.msra.mxu0 0
      %731 = vmatprep.subr.bf16.mxu0 0
      %732 = vmatpush1.bf16.msra.mxu0 0
      %733 = vmatprep.subr.bf16.mxu0 0
      %734 = vmatpush1.bf16.msra.mxu0 0
      %735 = vmatprep.subr.bf16.mxu0 0
      %736 = vmatpush1.bf16.msra.mxu0 0
      %737 = vmatprep.subr.bf16.mxu0 0
      %738 = vmatpush1.bf16.msra.mxu0 0
      %739 = vmatprep.subr.bf16.mxu0 0
      %740 = vmatpush1.bf16.msra.mxu0 0
      %741 = vmatprep.subr.bf16.mxu0 0
      %742 = vmatpush1.bf16.msra.mxu0 0
      %743 = vmatprep.subr.bf16.mxu0 0
      %744 = vmatpush1.bf16.msra.mxu0 %v724
      %745 = vmatprep.subr.bf16.mxu0 0
      %746 = vmatpush2.bf16.msra.mxu0 0
      %747 = vmatprep.subr.bf16.mxu0 0
      %748 = vmatpush2.bf16.msra.mxu0 0
      %749 = vmatprep.subr.bf16.mxu0 0
      %750 = vmatpush2.bf16.msra.mxu0 0
      %751 = vmatprep.subr.bf16.mxu0 0
      %752 = vmatpush2.bf16.msra.mxu0 0
      %753 = vmatprep.subr.bf16.mxu0 0
      %754 = vmatpush2.bf16.msra.mxu0 0
      %755 = vmatprep.subr.bf16.mxu0 0
      %756 = vmatpush2.bf16.msra.mxu0 0
      %757 = vmatprep.subr.bf16.mxu0 0
      %758 = vmatpush2.bf16.msra.mxu0 0
      %759 = vmatprep.subr.bf16.mxu0 0
      %760 = vmatpush2.bf16.msra.mxu0 0
      %761 = vmatprep.mubr.bf16.mxu0 0
      %762 = vmatmul.mubr.bf16.gmra.mxu0 %v727
      %v763 = vpop.f32.mrf.mxu0
      %v764 = vadd.f32 0.0, %v763
      %v765 = vpop.f32.mrf.mxu0
      %v766 = vpop.f32.mrf.mxu0
      %v767 = vpop.f32.mrf.mxu0
      %768 = vdwg.mxu0
      %v769 = vadd.f32 %v716, %v764
      %v771 = vlaneseq
      %v772 = vshrl.u32 %v771, 7
      %v773 = vsub.s32 0, %v772
      %v774 = vrot.slane %v530, %v773
      %v776 = vadd.f32 %v769, %v774
      %v777 = vmax.f32 %v776, 0.0
      %v778 = vpack.c.bf16 %v777, %v777
      %vm779 = vcmask 27648
      %780 = vst.msk [vmem:[#allocation3] sm:$0xf] %vm779, %v778
      %v781 = vld [vmem:[%s498] sm:$0x8]
      %v782 = vld [vmem:[%s498 + $0x4] sm:$0xf]
      %v783 = vld [vmem:[%s3] sm:$0xf]
      %v784 = vld [vmem:[%s3 + $0x4] sm:$0xf]
      %v785 = vld [vmem:[%s535] sm:$0xf]
      %v786 = vld [vmem:[%s535 + $0x4] sm:$0xf]
      %v789 = vunpack.c.l.b16 %v785
      %v790 = vunpack.c.l.b16 %v786
      %v791 = vpack.c.b16 %v790, %v789
      %v794 = vsel %vm408, %v782, 0
      %796 = vmatprep.subr.bf16.mxu0 0
      %797 = vmatpush1.bf16.msra.mxu0 0
      %798 = vmatprep.subr.bf16.mxu0 0
      %799 = vmatpush1.bf16.msra.mxu0 0
      %800 = vmatprep.subr.bf16.mxu0 0
      %801 = vmatpush1.bf16.msra.mxu0 0
      %802 = vmatprep.subr.bf16.mxu0 0
      %803 = vmatpush1.bf16.msra.mxu0 0
      %804 = vmatprep.subr.bf16.mxu0 0
      %805 = vmatpush1.bf16.msra.mxu0 0
      %806 = vmatprep.subr.bf16.mxu0 0
      %807 = vmatpush1.bf16.msra.mxu0 0
      %808 = vmatprep.subr.bf16.mxu0 0
      %809 = vmatpush1.bf16.msra.mxu0 0
      %810 = vmatprep.subr.bf16.mxu0 0
      %811 = vmatpush1.bf16.msra.mxu0 %v791
      %812 = vmatprep.subr.bf16.mxu0 0
      %813 = vmatpush2.bf16.msra.mxu0 0
      %814 = vmatprep.subr.bf16.mxu0 0
      %815 = vmatpush2.bf16.msra.mxu0 0
      %816 = vmatprep.subr.bf16.mxu0 0
      %817 = vmatpush2.bf16.msra.mxu0 0
      %818 = vmatprep.subr.bf16.mxu0 0
      %819 = vmatpush2.bf16.msra.mxu0 0
      %820 = vmatprep.subr.bf16.mxu0 0
      %821 = vmatpush2.bf16.msra.mxu0 0
      %822 = vmatprep.subr.bf16.mxu0 0
      %823 = vmatpush2.bf16.msra.mxu0 0
      %824 = vmatprep.subr.bf16.mxu0 0
      %825 = vmatpush2.bf16.msra.mxu0 0
      %826 = vmatprep.subr.bf16.mxu0 0
      %827 = vmatpush2.bf16.msra.mxu0 0
      %828 = vmatprep.mubr.bf16.mxu0 0
      %829 = vmatmul.mubr.bf16.gmra.mxu0 %v794
      %v830 = vpop.f32.mrf.mxu0
      %v831 = vadd.f32 0.0, %v830
      %v832 = vpop.f32.mrf.mxu0
      %v833 = vpop.f32.mrf.mxu0
      %v834 = vpop.f32.mrf.mxu0
      %835 = vdwg.mxu0
      %v838 = vunpack.c.l.b16 %v781
      %v839 = vunpack.c.l.b16 %v782
      %v840 = vpack.c.b16 %v839, %v838
      %v842 = vshrl.u32 %v840, 16
      %v844 = vrot.slane %v842, 3
      %v845 = vshll.u32 %v840, 16
      %v847 = vrot.slane %v845, 4
      %v848 = vor.u32 %v844, %v847
      %v851 = vunpack.c.l.b16 %v783
      %v852 = vunpack.c.l.b16 %v784
      %v853 = vpack.c.b16 %v852, %v851
      %v856 = vsel %vm408, %v848, 0
      %858 = vmatprep.subr.bf16.mxu0 0
      %859 = vmatpush1.bf16.msra.mxu0 0
      %860 = vmatprep.subr.bf16.mxu0 0
      %861 = vmatpush1.bf16.msra.mxu0 0
      %862 = vmatprep.subr.bf16.mxu0 0
      %863 = vmatpush1.bf16.msra.mxu0 0
      %864 = vmatprep.subr.bf16.mxu0 0
      %865 = vmatpush1.bf16.msra.mxu0 0
      %866 = vmatprep.subr.bf16.mxu0 0
      %867 = vmatpush1.bf16.msra.mxu0 0
      %868 = vmatprep.subr.bf16.mxu0 0
      %869 = vmatpush1.bf16.msra.mxu0 0
      %870 = vmatprep.subr.bf16.mxu0 0
      %871 = vmatpush1.bf16.msra.mxu0 0
      %872 = vmatprep.subr.bf16.mxu0 0
      %873 = vmatpush1.bf16.msra.mxu0 %v853
      %874 = vmatprep.subr.bf16.mxu0 0
      %875 = vmatpush2.bf16.msra.mxu0 0
      %876 = vmatprep.subr.bf16.mxu0 0
      %877 = vmatpush2.bf16.msra.mxu0 0
      %878 = vmatprep.subr.bf16.mxu0 0
      %879 = vmatpush2.bf16.msra.mxu0 0
      %880 = vmatprep.subr.bf16.mxu0 0
      %881 = vmatpush2.bf16.msra.mxu0 0
      %882 = vmatprep.subr.bf16.mxu0 0
      %883 = vmatpush2.bf16.msra.mxu0 0
      %884 = vmatprep.subr.bf16.mxu0 0
      %885 = vmatpush2.bf16.msra.mxu0 0
      %886 = vmatprep.subr.bf16.mxu0 0
      %887 = vmatpush2.bf16.msra.mxu0 0
      %888 = vmatprep.subr.bf16.mxu0 0
      %889 = vmatpush2.bf16.msra.mxu0 0
      %890 = vmatprep.mubr.bf16.mxu0 0
      %891 = vmatmul.mubr.bf16.gmra.mxu0 %v856
      %v892 = vpop.f32.mrf.mxu0
      %v893 = vadd.f32 %v831, %v892
      %v894 = vpop.f32.mrf.mxu0
      %v895 = vpop.f32.mrf.mxu0
      %v896 = vpop.f32.mrf.mxu0
      %897 = vdwg.mxu0
      %v898 = vld [vmem:[%s504] sm:$0x8]
      %v899 = vld [vmem:[%s504 + $0x4] sm:$0xf]
      %v900 = vld [vmem:[%s651] sm:$0xf]
      %v901 = vld [vmem:[%s651 + $0x4] sm:$0xf]
      %v904 = vunpack.c.l.b16 %v898
      %v905 = vunpack.c.l.b16 %v899
      %v906 = vpack.c.b16 %v905, %v904
      %v908 = vshrl.u32 %v906, 16
      %v910 = vrot.slane %v908, 3
      %v911 = vshll.u32 %v906, 16
      %v913 = vrot.slane %v911, 4
      %v914 = vor.u32 %v910, %v913
      %v917 = vunpack.c.l.b16 %v900
      %v918 = vunpack.c.l.b16 %v901
      %v919 = vpack.c.b16 %v918, %v917
      %v922 = vsel %vm408, %v914, 0
      %924 = vmatprep.subr.bf16.mxu0 0
      %925 = vmatpush1.bf16.msra.mxu0 0
      %926 = vmatprep.subr.bf16.mxu0 0
      %927 = vmatpush1.bf16.msra.mxu0 0
      %928 = vmatprep.subr.bf16.mxu0 0
      %929 = vmatpush1.bf16.msra.mxu0 0
      %930 = vmatprep.subr.bf16.mxu0 0
      %931 = vmatpush1.bf16.msra.mxu0 0
      %932 = vmatprep.subr.bf16.mxu0 0
      %933 = vmatpush1.bf16.msra.mxu0 0
      %934 = vmatprep.subr.bf16.mxu0 0
      %935 = vmatpush1.bf16.msra.mxu0 0
      %936 = vmatprep.subr.bf16.mxu0 0
      %937 = vmatpush1.bf16.msra.mxu0 0
      %938 = vmatprep.subr.bf16.mxu0 0
      %939 = vmatpush1.bf16.msra.mxu0 %v919
      %940 = vmatprep.subr.bf16.mxu0 0
      %941 = vmatpush2.bf16.msra.mxu0 0
      %942 = vmatprep.subr.bf16.mxu0 0
      %943 = vmatpush2.bf16.msra.mxu0 0
      %944 = vmatprep.subr.bf16.mxu0 0
      %945 = vmatpush2.bf16.msra.mxu0 0
      %946 = vmatprep.subr.bf16.mxu0 0
      %947 = vmatpush2.bf16.msra.mxu0 0
      %948 = vmatprep.subr.bf16.mxu0 0
      %949 = vmatpush2.bf16.msra.mxu0 0
      %950 = vmatprep.subr.bf16.mxu0 0
      %951 = vmatpush2.bf16.msra.mxu0 0
      %952 = vmatprep.subr.bf16.mxu0 0
      %953 = vmatpush2.bf16.msra.mxu0 0
      %954 = vmatprep.subr.bf16.mxu0 0
      %955 = vmatpush2.bf16.msra.mxu0 0
      %956 = vmatprep.mubr.bf16.mxu0 0
      %957 = vmatmul.mubr.bf16.gmra.mxu0 %v922
      %v958 = vpop.f32.mrf.mxu0
      %v959 = vadd.f32 0.0, %v958
      %v960 = vpop.f32.mrf.mxu0
      %v961 = vpop.f32.mrf.mxu0
      %v962 = vpop.f32.mrf.mxu0
      %963 = vdwg.mxu0
      %v964 = vadd.f32 %v893, %v959
      %v965 = vld [vmem:[%s717] sm:$0xf]
      %v966 = vld [vmem:[%s717 + $0x4] sm:$0xf]
      %v969 = vunpack.c.l.b16 %v965
      %v970 = vunpack.c.l.b16 %v966
      %v971 = vpack.c.b16 %v970, %v969
      %v974 = vsel %vm408, %v899, 0
      %976 = vmatprep.subr.bf16.mxu0 0
      %977 = vmatpush1.bf16.msra.mxu0 0
      %978 = vmatprep.subr.bf16.mxu0 0
      %979 = vmatpush1.bf16.msra.mxu0 0
      %980 = vmatprep.subr.bf16.mxu0 0
      %981 = vmatpush1.bf16.msra.mxu0 0
      %982 = vmatprep.subr.bf16.mxu0 0
      %983 = vmatpush1.bf16.msra.mxu0 0
      %984 = vmatprep.subr.bf16.mxu0 0
      %985 = vmatpush1.bf16.msra.mxu0 0
      %986 = vmatprep.subr.bf16.mxu0 0
      %987 = vmatpush1.bf16.msra.mxu0 0
      %988 = vmatprep.subr.bf16.mxu0 0
      %989 = vmatpush1.bf16.msra.mxu0 0
      %990 = vmatprep.subr.bf16.mxu0 0
      %991 = vmatpush1.bf16.msra.mxu0 %v971
      %992 = vmatprep.subr.bf16.mxu0 0
      %993 = vmatpush2.bf16.msra.mxu0 0
      %994 = vmatprep.subr.bf16.mxu0 0
      %995 = vmatpush2.bf16.msra.mxu0 0
      %996 = vmatprep.subr.bf16.mxu0 0
      %997 = vmatpush2.bf16.msra.mxu0 0
      %998 = vmatprep.subr.bf16.mxu0 0
      %999 = vmatpush2.bf16.msra.mxu0 0
      %1000 = vmatprep.subr.bf16.mxu0 0
      %1001 = vmatpush2.bf16.msra.mxu0 0
      %1002 = vmatprep.subr.bf16.mxu0 0
      %1003 = vmatpush2.bf16.msra.mxu0 0
      %1004 = vmatprep.subr.bf16.mxu0 0
      %1005 = vmatpush2.bf16.msra.mxu0 0
      %1006 = vmatprep.subr.bf16.mxu0 0
      %1007 = vmatpush2.bf16.msra.mxu0 0
      %1008 = vmatprep.mubr.bf16.mxu0 0
      %1009 = vmatmul.mubr.bf16.gmra.mxu0 %v974
      %v1010 = vpop.f32.mrf.mxu0
      %v1011 = vadd.f32 0.0, %v1010
      %v1012 = vpop.f32.mrf.mxu0
      %v1013 = vpop.f32.mrf.mxu0
      %v1014 = vpop.f32.mrf.mxu0
      %1015 = vdwg.mxu0
      %v1016 = vadd.f32 %v964, %v1011
      %v1017 = vadd.f32 %v1016, %v774
      %v1018 = vmax.f32 %v1017, 0.0
      %v1019 = vpack.c.bf16 %v1018, %v1018
      %1020 = vst.msk [vmem:[#allocation3 + $0x4] sm:$0xf] %vm779, %v1019
      %v1021 = vld [vmem:[%s504] sm:$0x8]
      %v1022 = vld [vmem:[%s504 + $0x4] sm:$0xf]
      %v1023 = vld [vmem:[%s3] sm:$0xf]
      %v1024 = vld [vmem:[%s3 + $0x4] sm:$0xf]
      %v1025 = vld [vmem:[%s535] sm:$0xf]
      %v1026 = vld [vmem:[%s535 + $0x4] sm:$0xf]
      %v1029 = vunpack.c.l.b16 %v1025
      %v1030 = vunpack.c.l.b16 %v1026
      %v1031 = vpack.c.b16 %v1030, %v1029
      %v1034 = vsel %vm408, %v1022, 0
      %1036 = vmatprep.subr.bf16.mxu0 0
      %1037 = vmatpush1.bf16.msra.mxu0 0
      %1038 = vmatprep.subr.bf16.mxu0 0
      %1039 = vmatpush1.bf16.msra.mxu0 0
      %1040 = vmatprep.subr.bf16.mxu0 0
      %1041 = vmatpush1.bf16.msra.mxu0 0
      %1042 = vmatprep.subr.bf16.mxu0 0
      %1043 = vmatpush1.bf16.msra.mxu0 0
      %1044 = vmatprep.subr.bf16.mxu0 0
      %1045 = vmatpush1.bf16.msra.mxu0 0
      %1046 = vmatprep.subr.bf16.mxu0 0
      %1047 = vmatpush1.bf16.msra.mxu0 0
      %1048 = vmatprep.subr.bf16.mxu0 0
      %1049 = vmatpush1.bf16.msra.mxu0 0
      %1050 = vmatprep.subr.bf16.mxu0 0
      %1051 = vmatpush1.bf16.msra.mxu0 %v1031
      %1052 = vmatprep.subr.bf16.mxu0 0
      %1053 = vmatpush2.bf16.msra.mxu0 0
      %1054 = vmatprep.subr.bf16.mxu0 0
      %1055 = vmatpush2.bf16.msra.mxu0 0
      %1056 = vmatprep.subr.bf16.mxu0 0
      %1057 = vmatpush2.bf16.msra.mxu0 0
      %1058 = vmatprep.subr.bf16.mxu0 0
      %1059 = vmatpush2.bf16.msra.mxu0 0
      %1060 = vmatprep.subr.bf16.mxu0 0
      %1061 = vmatpush2.bf16.msra.mxu0 0
      %1062 = vmatprep.subr.bf16.mxu0 0
      %1063 = vmatpush2.bf16.msra.mxu0 0
      %1064 = vmatprep.subr.bf16.mxu0 0
      %1065 = vmatpush2.bf16.msra.mxu0 0
      %1066 = vmatprep.subr.bf16.mxu0 0
      %1067 = vmatpush2.bf16.msra.mxu0 0
      %1068 = vmatprep.mubr.bf16.mxu0 0
      %1069 = vmatmul.mubr.bf16.gmra.mxu0 %v1034
      %v1070 = vpop.f32.mrf.mxu0
      %v1071 = vadd.f32 0.0, %v1070
      %v1072 = vpop.f32.mrf.mxu0
      %v1073 = vpop.f32.mrf.mxu0
      %v1074 = vpop.f32.mrf.mxu0
      %1075 = vdwg.mxu0
      %v1078 = vunpack.c.l.b16 %v1021
      %v1079 = vunpack.c.l.b16 %v1022
      %v1080 = vpack.c.b16 %v1079, %v1078
      %v1082 = vshrl.u32 %v1080, 16
      %v1084 = vrot.slane %v1082, 3
      %v1085 = vshll.u32 %v1080, 16
      %v1087 = vrot.slane %v1085, 4
      %v1088 = vor.u32 %v1084, %v1087
      %v1091 = vunpack.c.l.b16 %v1023
      %v1092 = vunpack.c.l.b16 %v1024
      %v1093 = vpack.c.b16 %v1092, %v1091
      %v1096 = vsel %vm408, %v1088, 0
      %1098 = vmatprep.subr.bf16.mxu0 0
      %1099 = vmatpush1.bf16.msra.mxu0 0
      %1100 = vmatprep.subr.bf16.mxu0 0
      %1101 = vmatpush1.bf16.msra.mxu0 0
      %1102 = vmatprep.subr.bf16.mxu0 0
      %1103 = vmatpush1.bf16.msra.mxu0 0
      %1104 = vmatprep.subr.bf16.mxu0 0
      %1105 = vmatpush1.bf16.msra.mxu0 0
      %1106 = vmatprep.subr.bf16.mxu0 0
      %1107 = vmatpush1.bf16.msra.mxu0 0
      %1108 = vmatprep.subr.bf16.mxu0 0
      %1109 = vmatpush1.bf16.msra.mxu0 0
      %1110 = vmatprep.subr.bf16.mxu0 0
      %1111 = vmatpush1.bf16.msra.mxu0 0
      %1112 = vmatprep.subr.bf16.mxu0 0
      %1113 = vmatpush1.bf16.msra.mxu0 %v1093
      %1114 = vmatprep.subr.bf16.mxu0 0
      %1115 = vmatpush2.bf16.msra.mxu0 0
      %1116 = vmatprep.subr.bf16.mxu0 0
      %1117 = vmatpush2.bf16.msra.mxu0 0
      %1118 = vmatprep.subr.bf16.mxu0 0
      %1119 = vmatpush2.bf16.msra.mxu0 0
      %1120 = vmatprep.subr.bf16.mxu0 0
      %1121 = vmatpush2.bf16.msra.mxu0 0
      %1122 = vmatprep.subr.bf16.mxu0 0
      %1123 = vmatpush2.bf16.msra.mxu0 0
      %1124 = vmatprep.subr.bf16.mxu0 0
      %1125 = vmatpush2.bf16.msra.mxu0 0
      %1126 = vmatprep.subr.bf16.mxu0 0
      %1127 = vmatpush2.bf16.msra.mxu0 0
      %1128 = vmatprep.subr.bf16.mxu0 0
      %1129 = vmatpush2.bf16.msra.mxu0 0
      %1130 = vmatprep.mubr.bf16.mxu0 0
      %1131 = vmatmul.mubr.bf16.gmra.mxu0 %v1096
      %v1132 = vpop.f32.mrf.mxu0
      %v1133 = vadd.f32 %v1071, %v1132
      %v1134 = vpop.f32.mrf.mxu0
      %v1135 = vpop.f32.mrf.mxu0
      %v1136 = vpop.f32.mrf.mxu0
      %1137 = vdwg.mxu0
      %v1138 = vld [vmem:[%s506] sm:$0x8]
      %v1139 = vld [vmem:[%s506 + $0x4] sm:$0xf]
      %v1140 = vld [vmem:[%s651] sm:$0xf]
      %v1141 = vld [vmem:[%s651 + $0x4] sm:$0xf]
      %v1144 = vunpack.c.l.b16 %v1138
      %v1145 = vunpack.c.l.b16 %v1139
      %v1146 = vpack.c.b16 %v1145, %v1144
      %v1148 = vshrl.u32 %v1146, 16
      %v1150 = vrot.slane %v1148, 3
      %v1151 = vshll.u32 %v1146, 16
      %v1153 = vrot.slane %v1151, 4
      %v1154 = vor.u32 %v1150, %v1153
      %v1157 = vunpack.c.l.b16 %v1140
      %v1158 = vunpack.c.l.b16 %v1141
      %v1159 = vpack.c.b16 %v1158, %v1157
      %v1162 = vsel %vm408, %v1154, 0
      %1164 = vmatprep.subr.bf16.mxu0 0
      %1165 = vmatpush1.bf16.msra.mxu0 0
      %1166 = vmatprep.subr.bf16.mxu0 0
      %1167 = vmatpush1.bf16.msra.mxu0 0
      %1168 = vmatprep.subr.bf16.mxu0 0
      %1169 = vmatpush1.bf16.msra.mxu0 0
      %1170 = vmatprep.subr.bf16.mxu0 0
      %1171 = vmatpush1.bf16.msra.mxu0 0
      %1172 = vmatprep.subr.bf16.mxu0 0
      %1173 = vmatpush1.bf16.msra.mxu0 0
      %1174 = vmatprep.subr.bf16.mxu0 0
      %1175 = vmatpush1.bf16.msra.mxu0 0
      %1176 = vmatprep.subr.bf16.mxu0 0
      %1177 = vmatpush1.bf16.msra.mxu0 0
      %1178 = vmatprep.subr.bf16.mxu0 0
      %1179 = vmatpush1.bf16.msra.mxu0 %v1159
      %1180 = vmatprep.subr.bf16.mxu0 0
      %1181 = vmatpush2.bf16.msra.mxu0 0
      %1182 = vmatprep.subr.bf16.mxu0 0
      %1183 = vmatpush2.bf16.msra.mxu0 0
      %1184 = vmatprep.subr.bf16.mxu0 0
      %1185 = vmatpush2.bf16.msra.mxu0 0
      %1186 = vmatprep.subr.bf16.mxu0 0
      %1187 = vmatpush2.bf16.msra.mxu0 0
      %1188 = vmatprep.subr.bf16.mxu0 0
      %1189 = vmatpush2.bf16.msra.mxu0 0
      %1190 = vmatprep.subr.bf16.mxu0 0
      %1191 = vmatpush2.bf16.msra.mxu0 0
      %1192 = vmatprep.subr.bf16.mxu0 0
      %1193 = vmatpush2.bf16.msra.mxu0 0
      %1194 = vmatprep.subr.bf16.mxu0 0
      %1195 = vmatpush2.bf16.msra.mxu0 0
      %1196 = vmatprep.mubr.bf16.mxu0 0
      %1197 = vmatmul.mubr.bf16.gmra.mxu0 %v1162
      %v1198 = vpop.f32.mrf.mxu0
      %v1199 = vadd.f32 0.0, %v1198
      %v1200 = vpop.f32.mrf.mxu0
      %v1201 = vpop.f32.mrf.mxu0
      %v1202 = vpop.f32.mrf.mxu0
      %1203 = vdwg.mxu0
      %v1204 = vadd.f32 %v1133, %v1199
      %v1205 = vld [vmem:[%s717] sm:$0xf]
      %v1206 = vld [vmem:[%s717 + $0x4] sm:$0xf]
      %v1209 = vunpack.c.l.b16 %v1205
      %v1210 = vunpack.c.l.b16 %v1206
      %v1211 = vpack.c.b16 %v1210, %v1209
      %v1214 = vsel %vm408, %v1139, 0
      %1216 = vmatprep.subr.bf16.mxu0 0
      %1217 = vmatpush1.bf16.msra.mxu0 0
      %1218 = vmatprep.subr.bf16.mxu0 0
      %1219 = vmatpush1.bf16.msra.mxu0 0
      %1220 = vmatprep.subr.bf16.mxu0 0
      %1221 = vmatpush1.bf16.msra.mxu0 0
      %1222 = vmatprep.subr.bf16.mxu0 0
      %1223 = vmatpush1.bf16.msra.mxu0 0
      %1224 = vmatprep.subr.bf16.mxu0 0
      %1225 = vmatpush1.bf16.msra.mxu0 0
      %1226 = vmatprep.subr.bf16.mxu0 0
      %1227 = vmatpush1.bf16.msra.mxu0 0
      %1228 = vmatprep.subr.bf16.mxu0 0
      %1229 = vmatpush1.bf16.msra.mxu0 0
      %1230 = vmatprep.subr.bf16.mxu0 0
      %1231 = vmatpush1.bf16.msra.mxu0 %v1211
      %1232 = vmatprep.subr.bf16.mxu0 0
      %1233 = vmatpush2.bf16.msra.mxu0 0
      %1234 = vmatprep.subr.bf16.mxu0 0
      %1235 = vmatpush2.bf16.msra.mxu0 0
      %1236 = vmatprep.subr.bf16.mxu0 0
      %1237 = vmatpush2.bf16.msra.mxu0 0
      %1238 = vmatprep.subr.bf16.mxu0 0
      %1239 = vmatpush2.bf16.msra.mxu0 0
      %1240 = vmatprep.subr.bf16.mxu0 0
      %1241 = vmatpush2.bf16.msra.mxu0 0
      %1242 = vmatprep.subr.bf16.mxu0 0
      %1243 = vmatpush2.bf16.msra.mxu0 0
      %1244 = vmatprep.subr.bf16.mxu0 0
      %1245 = vmatpush2.bf16.msra.mxu0 0
      %1246 = vmatprep.subr.bf16.mxu0 0
      %1247 = vmatpush2.bf16.msra.mxu0 0
      %1248 = vmatprep.mubr.bf16.mxu0 0
      %1249 = vmatmul.mubr.bf16.gmra.mxu0 %v1214
      %v1250 = vpop.f32.mrf.mxu0
      %v1251 = vadd.f32 0.0, %v1250
      %v1252 = vpop.f32.mrf.mxu0
      %v1253 = vpop.f32.mrf.mxu0
      %v1254 = vpop.f32.mrf.mxu0
      %1255 = vdwg.mxu0
      %v1256 = vadd.f32 %v1204, %v1251
      %v1257 = vadd.f32 %v1256, %v774
      %v1258 = vmax.f32 %v1257, 0.0
      %v1259 = vpack.c.bf16 %v1258, %v1258
      %1260 = vst.msk [vmem:[#allocation3 + $0x8] sm:$0xf] %vm779, %v1259
      %v1261 = vld [vmem:[%s506] sm:$0x8]
      %v1262 = vld [vmem:[%s506 + $0x4] sm:$0xf]
      %v1263 = vld [vmem:[%s3] sm:$0xf]
      %v1264 = vld [vmem:[%s3 + $0x4] sm:$0xf]
      %v1265 = vld [vmem:[%s535] sm:$0xf]
      %v1266 = vld [vmem:[%s535 + $0x4] sm:$0xf]
      %v1269 = vunpack.c.l.b16 %v1265
      %v1270 = vunpack.c.l.b16 %v1266
      %v1271 = vpack.c.b16 %v1270, %v1269
      %v1274 = vsel %vm408, %v1262, 0
      %1276 = vmatprep.subr.bf16.mxu0 0
      %1277 = vmatpush1.bf16.msra.mxu0 0
      %1278 = vmatprep.subr.bf16.mxu0 0
      %1279 = vmatpush1.bf16.msra.mxu0 0
      %1280 = vmatprep.subr.bf16.mxu0 0
      %1281 = vmatpush1.bf16.msra.mxu0 0
      %1282 = vmatprep.subr.bf16.mxu0 0
      %1283 = vmatpush1.bf16.msra.mxu0 0
      %1284 = vmatprep.subr.bf16.mxu0 0
      %1285 = vmatpush1.bf16.msra.mxu0 0
      %1286 = vmatprep.subr.bf16.mxu0 0
      %1287 = vmatpush1.bf16.msra.mxu0 0
      %1288 = vmatprep.subr.bf16.mxu0 0
      %1289 = vmatpush1.bf16.msra.mxu0 0
      %1290 = vmatprep.subr.bf16.mxu0 0
      %1291 = vmatpush1.bf16.msra.mxu0 %v1271
      %1292 = vmatprep.subr.bf16.mxu0 0
      %1293 = vmatpush2.bf16.msra.mxu0 0
      %1294 = vmatprep.subr.bf16.mxu0 0
      %1295 = vmatpush2.bf16.msra.mxu0 0
      %1296 = vmatprep.subr.bf16.mxu0 0
      %1297 = vmatpush2.bf16.msra.mxu0 0
      %1298 = vmatprep.subr.bf16.mxu0 0
      %1299 = vmatpush2.bf16.msra.mxu0 0
      %1300 = vmatprep.subr.bf16.mxu0 0
      %1301 = vmatpush2.bf16.msra.mxu0 0
      %1302 = vmatprep.subr.bf16.mxu0 0
      %1303 = vmatpush2.bf16.msra.mxu0 0
      %1304 = vmatprep.subr.bf16.mxu0 0
      %1305 = vmatpush2.bf16.msra.mxu0 0
      %1306 = vmatprep.subr.bf16.mxu0 0
      %1307 = vmatpush2.bf16.msra.mxu0 0
      %1308 = vmatprep.mubr.bf16.mxu0 0
      %1309 = vmatmul.mubr.bf16.gmra.mxu0 %v1274
      %v1310 = vpop.f32.mrf.mxu0
      %v1311 = vadd.f32 0.0, %v1310
      %v1312 = vpop.f32.mrf.mxu0
      %v1313 = vpop.f32.mrf.mxu0
      %v1314 = vpop.f32.mrf.mxu0
      %1315 = vdwg.mxu0
      %v1318 = vunpack.c.l.b16 %v1261
      %v1319 = vunpack.c.l.b16 %v1262
      %v1320 = vpack.c.b16 %v1319, %v1318
      %v1322 = vshrl.u32 %v1320, 16
      %v1324 = vrot.slane %v1322, 3
      %v1325 = vshll.u32 %v1320, 16
      %v1327 = vrot.slane %v1325, 4
      %v1328 = vor.u32 %v1324, %v1327
      %v1331 = vunpack.c.l.b16 %v1263
      %v1332 = vunpack.c.l.b16 %v1264
      %v1333 = vpack.c.b16 %v1332, %v1331
      %v1336 = vsel %vm408, %v1328, 0
      %1338 = vmatprep.subr.bf16.mxu0 0
      %1339 = vmatpush1.bf16.msra.mxu0 0
      %1340 = vmatprep.subr.bf16.mxu0 0
      %1341 = vmatpush1.bf16.msra.mxu0 0
      %1342 = vmatprep.subr.bf16.mxu0 0
      %1343 = vmatpush1.bf16.msra.mxu0 0
      %1344 = vmatprep.subr.bf16.mxu0 0
      %1345 = vmatpush1.bf16.msra.mxu0 0
      %1346 = vmatprep.subr.bf16.mxu0 0
      %1347 = vmatpush1.bf16.msra.mxu0 0
      %1348 = vmatprep.subr.bf16.mxu0 0
      %1349 = vmatpush1.bf16.msra.mxu0 0
      %1350 = vmatprep.subr.bf16.mxu0 0
      %1351 = vmatpush1.bf16.msra.mxu0 0
      %1352 = vmatprep.subr.bf16.mxu0 0
      %1353 = vmatpush1.bf16.msra.mxu0 %v1333
      %1354 = vmatprep.subr.bf16.mxu0 0
      %1355 = vmatpush2.bf16.msra.mxu0 0
      %1356 = vmatprep.subr.bf16.mxu0 0
      %1357 = vmatpush2.bf16.msra.mxu0 0
      %1358 = vmatprep.subr.bf16.mxu0 0
      %1359 = vmatpush2.bf16.msra.mxu0 0
      %1360 = vmatprep.subr.bf16.mxu0 0
      %1361 = vmatpush2.bf16.msra.mxu0 0
      %1362 = vmatprep.subr.bf16.mxu0 0
      %1363 = vmatpush2.bf16.msra.mxu0 0
      %1364 = vmatprep.subr.bf16.mxu0 0
      %1365 = vmatpush2.bf16.msra.mxu0 0
      %1366 = vmatprep.subr.bf16.mxu0 0
      %1367 = vmatpush2.bf16.msra.mxu0 0
      %1368 = vmatprep.subr.bf16.mxu0 0
      %1369 = vmatpush2.bf16.msra.mxu0 0
      %1370 = vmatprep.mubr.bf16.mxu0 0
      %1371 = vmatmul.mubr.bf16.gmra.mxu0 %v1336
      %v1372 = vpop.f32.mrf.mxu0
      %v1373 = vadd.f32 %v1311, %v1372
      %v1374 = vpop.f32.mrf.mxu0
      %v1375 = vpop.f32.mrf.mxu0
      %v1376 = vpop.f32.mrf.mxu0
      %1377 = vdwg.mxu0
      %v1378 = vld [vmem:[%s512] sm:$0x8]
      %v1379 = vld [vmem:[%s512 + $0x4] sm:$0xf]
      %v1380 = vld [vmem:[%s651] sm:$0xf]
      %v1381 = vld [vmem:[%s651 + $0x4] sm:$0xf]
      %v1384 = vunpack.c.l.b16 %v1378
      %v1385 = vunpack.c.l.b16 %v1379
      %v1386 = vpack.c.b16 %v1385, %v1384
      %v1388 = vshrl.u32 %v1386, 16
      %v1390 = vrot.slane %v1388, 3
      %v1391 = vshll.u32 %v1386, 16
      %v1393 = vrot.slane %v1391, 4
      %v1394 = vor.u32 %v1390, %v1393
      %v1397 = vunpack.c.l.b16 %v1380
      %v1398 = vunpack.c.l.b16 %v1381
      %v1399 = vpack.c.b16 %v1398, %v1397
      %v1402 = vsel %vm408, %v1394, 0
      %1404 = vmatprep.subr.bf16.mxu0 0
      %1405 = vmatpush1.bf16.msra.mxu0 0
      %1406 = vmatprep.subr.bf16.mxu0 0
      %1407 = vmatpush1.bf16.msra.mxu0 0
      %1408 = vmatprep.subr.bf16.mxu0 0
      %1409 = vmatpush1.bf16.msra.mxu0 0
      %1410 = vmatprep.subr.bf16.mxu0 0
      %1411 = vmatpush1.bf16.msra.mxu0 0
      %1412 = vmatprep.subr.bf16.mxu0 0
      %1413 = vmatpush1.bf16.msra.mxu0 0
      %1414 = vmatprep.subr.bf16.mxu0 0
      %1415 = vmatpush1.bf16.msra.mxu0 0
      %1416 = vmatprep.subr.bf16.mxu0 0
      %1417 = vmatpush1.bf16.msra.mxu0 0
      %1418 = vmatprep.subr.bf16.mxu0 0
      %1419 = vmatpush1.bf16.msra.mxu0 %v1399
      %1420 = vmatprep.subr.bf16.mxu0 0
      %1421 = vmatpush2.bf16.msra.mxu0 0
      %1422 = vmatprep.subr.bf16.mxu0 0
      %1423 = vmatpush2.bf16.msra.mxu0 0
      %1424 = vmatprep.subr.bf16.mxu0 0
      %1425 = vmatpush2.bf16.msra.mxu0 0
      %1426 = vmatprep.subr.bf16.mxu0 0
      %1427 = vmatpush2.bf16.msra.mxu0 0
      %1428 = vmatprep.subr.bf16.mxu0 0
      %1429 = vmatpush2.bf16.msra.mxu0 0
      %1430 = vmatprep.subr.bf16.mxu0 0
      %1431 = vmatpush2.bf16.msra.mxu0 0
      %1432 = vmatprep.subr.bf16.mxu0 0
      %1433 = vmatpush2.bf16.msra.mxu0 0
      %1434 = vmatprep.subr.bf16.mxu0 0
      %1435 = vmatpush2.bf16.msra.mxu0 0
      %1436 = vmatprep.mubr.bf16.mxu0 0
      %1437 = vmatmul.mubr.bf16.gmra.mxu0 %v1402
      %v1438 = vpop.f32.mrf.mxu0
      %v1439 = vadd.f32 0.0, %v1438
      %v1440 = vpop.f32.mrf.mxu0
      %v1441 = vpop.f32.mrf.mxu0
      %v1442 = vpop.f32.mrf.mxu0
      %1443 = vdwg.mxu0
      %v1444 = vadd.f32 %v1373, %v1439
      %v1445 = vld [vmem:[%s717] sm:$0xf]
      %v1446 = vld [vmem:[%s717 + $0x4] sm:$0xf]
      %v1449 = vunpack.c.l.b16 %v1445
      %v1450 = vunpack.c.l.b16 %v1446
      %v1451 = vpack.c.b16 %v1450, %v1449
      %v1454 = vsel %vm408, %v1379, 0
      %1456 = vmatprep.subr.bf16.mxu0 0
      %1457 = vmatpush1.bf16.msra.mxu0 0
      %1458 = vmatprep.subr.bf16.mxu0 0
      %1459 = vmatpush1.bf16.msra.mxu0 0
      %1460 = vmatprep.subr.bf16.mxu0 0
      %1461 = vmatpush1.bf16.msra.mxu0 0
      %1462 = vmatprep.subr.bf16.mxu0 0
      %1463 = vmatpush1.bf16.msra.mxu0 0
      %1464 = vmatprep.subr.bf16.mxu0 0
      %1465 = vmatpush1.bf16.msra.mxu0 0
      %1466 = vmatprep.subr.bf16.mxu0 0
      %1467 = vmatpush1.bf16.msra.mxu0 0
      %1468 = vmatprep.subr.bf16.mxu0 0
      %1469 = vmatpush1.bf16.msra.mxu0 0
      %1470 = vmatprep.subr.bf16.mxu0 0
      %1471 = vmatpush1.bf16.msra.mxu0 %v1451
      %1472 = vmatprep.subr.bf16.mxu0 0
      %1473 = vmatpush2.bf16.msra.mxu0 0
      %1474 = vmatprep.subr.bf16.mxu0 0
      %1475 = vmatpush2.bf16.msra.mxu0 0
      %1476 = vmatprep.subr.bf16.mxu0 0
      %1477 = vmatpush2.bf16.msra.mxu0 0
      %1478 = vmatprep.subr.bf16.mxu0 0
      %1479 = vmatpush2.bf16.msra.mxu0 0
      %1480 = vmatprep.subr.bf16.mxu0 0
      %1481 = vmatpush2.bf16.msra.mxu0 0
      %1482 = vmatprep.subr.bf16.mxu0 0
      %1483 = vmatpush2.bf16.msra.mxu0 0
      %1484 = vmatprep.subr.bf16.mxu0 0
      %1485 = vmatpush2.bf16.msra.mxu0 0
      %1486 = vmatprep.subr.bf16.mxu0 0
      %1487 = vmatpush2.bf16.msra.mxu0 0
      %1488 = vmatprep.mubr.bf16.mxu0 0
      %1489 = vmatmul.mubr.bf16.gmra.mxu0 %v1454
      %v1490 = vpop.f32.mrf.mxu0
      %v1491 = vadd.f32 0.0, %v1490
      %v1492 = vpop.f32.mrf.mxu0
      %v1493 = vpop.f32.mrf.mxu0
      %v1494 = vpop.f32.mrf.mxu0
      %1495 = vdwg.mxu0
      %v1496 = vadd.f32 %v1444, %v1491
      %v1497 = vadd.f32 %v1496, %v774
      %v1498 = vmax.f32 %v1497, 0.0
      %v1499 = vpack.c.bf16 %v1498, %v1498
      %1500 = vst.msk [vmem:[#allocation3 + $0xc] sm:$0xf] %vm779, %v1499
      %v1501 = vld [vmem:[%s512] sm:$0x8]
      %v1502 = vld [vmem:[%s512 + $0x4] sm:$0xf]
      %v1503 = vld [vmem:[%s3] sm:$0xf]
      %v1504 = vld [vmem:[%s3 + $0x4] sm:$0xf]
      %v1505 = vld [vmem:[%s535] sm:$0xf]
      %v1506 = vld [vmem:[%s535 + $0x4] sm:$0xf]
      %v1509 = vunpack.c.l.b16 %v1505
      %v1510 = vunpack.c.l.b16 %v1506
      %v1511 = vpack.c.b16 %v1510, %v1509
      %v1514 = vsel %vm408, %v1502, 0
      %1516 = vmatprep.subr.bf16.mxu0 0
      %1517 = vmatpush1.bf16.msra.mxu0 0
      %1518 = vmatprep.subr.bf16.mxu0 0
      %1519 = vmatpush1.bf16.msra.mxu0 0
      %1520 = vmatprep.subr.bf16.mxu0 0
      %1521 = vmatpush1.bf16.msra.mxu0 0
      %1522 = vmatprep.subr.bf16.mxu0 0
      %1523 = vmatpush1.bf16.msra.mxu0 0
      %1524 = vmatprep.subr.bf16.mxu0 0
      %1525 = vmatpush1.bf16.msra.mxu0 0
      %1526 = vmatprep.subr.bf16.mxu0 0
      %1527 = vmatpush1.bf16.msra.mxu0 0
      %1528 = vmatprep.subr.bf16.mxu0 0
      %1529 = vmatpush1.bf16.msra.mxu0 0
      %1530 = vmatprep.subr.bf16.mxu0 0
      %1531 = vmatpush1.bf16.msra.mxu0 %v1511
      %1532 = vmatprep.subr.bf16.mxu0 0
      %1533 = vmatpush2.bf16.msra.mxu0 0
      %1534 = vmatprep.subr.bf16.mxu0 0
      %1535 = vmatpush2.bf16.msra.mxu0 0
      %1536 = vmatprep.subr.bf16.mxu0 0
      %1537 = vmatpush2.bf16.msra.mxu0 0
      %1538 = vmatprep.subr.bf16.mxu0 0
      %1539 = vmatpush2.bf16.msra.mxu0 0
      %1540 = vmatprep.subr.bf16.mxu0 0
      %1541 = vmatpush2.bf16.msra.mxu0 0
      %1542 = vmatprep.subr.bf16.mxu0 0
      %1543 = vmatpush2.bf16.msra.mxu0 0
      %1544 = vmatprep.subr.bf16.mxu0 0
      %1545 = vmatpush2.bf16.msra.mxu0 0
      %1546 = vmatprep.subr.bf16.mxu0 0
      %1547 = vmatpush2.bf16.msra.mxu0 0
      %1548 = vmatprep.mubr.bf16.mxu0 0
      %1549 = vmatmul.mubr.bf16.gmra.mxu0 %v1514
      %v1550 = vpop.f32.mrf.mxu0
      %v1551 = vadd.f32 0.0, %v1550
      %v1552 = vpop.f32.mrf.mxu0
      %v1553 = vpop.f32.mrf.mxu0
      %v1554 = vpop.f32.mrf.mxu0
      %1555 = vdwg.mxu0
      %v1558 = vunpack.c.l.b16 %v1501
      %v1559 = vunpack.c.l.b16 %v1502
      %v1560 = vpack.c.b16 %v1559, %v1558
      %v1562 = vshrl.u32 %v1560, 16
      %v1564 = vrot.slane %v1562, 3
      %v1565 = vshll.u32 %v1560, 16
      %v1567 = vrot.slane %v1565, 4
      %v1568 = vor.u32 %v1564, %v1567
      %v1571 = vunpack.c.l.b16 %v1503
      %v1572 = vunpack.c.l.b16 %v1504
      %v1573 = vpack.c.b16 %v1572, %v1571
      %v1576 = vsel %vm408, %v1568, 0
      %1578 = vmatprep.subr.bf16.mxu0 0
      %1579 = vmatpush1.bf16.msra.mxu0 0
      %1580 = vmatprep.subr.bf16.mxu0 0
      %1581 = vmatpush1.bf16.msra.mxu0 0
      %1582 = vmatprep.subr.bf16.mxu0 0
      %1583 = vmatpush1.bf16.msra.mxu0 0
      %1584 = vmatprep.subr.bf16.mxu0 0
      %1585 = vmatpush1.bf16.msra.mxu0 0
      %1586 = vmatprep.subr.bf16.mxu0 0
      %1587 = vmatpush1.bf16.msra.mxu0 0
      %1588 = vmatprep.subr.bf16.mxu0 0
      %1589 = vmatpush1.bf16.msra.mxu0 0
      %1590 = vmatprep.subr.bf16.mxu0 0
      %1591 = vmatpush1.bf16.msra.mxu0 0
      %1592 = vmatprep.subr.bf16.mxu0 0
      %1593 = vmatpush1.bf16.msra.mxu0 %v1573
      %1594 = vmatprep.subr.bf16.mxu0 0
      %1595 = vmatpush2.bf16.msra.mxu0 0
      %1596 = vmatprep.subr.bf16.mxu0 0
      %1597 = vmatpush2.bf16.msra.mxu0 0
      %1598 = vmatprep.subr.bf16.mxu0 0
      %1599 = vmatpush2.bf16.msra.mxu0 0
      %1600 = vmatprep.subr.bf16.mxu0 0
      %1601 = vmatpush2.bf16.msra.mxu0 0
      %1602 = vmatprep.subr.bf16.mxu0 0
      %1603 = vmatpush2.bf16.msra.mxu0 0
      %1604 = vmatprep.subr.bf16.mxu0 0
      %1605 = vmatpush2.bf16.msra.mxu0 0
      %1606 = vmatprep.subr.bf16.mxu0 0
      %1607 = vmatpush2.bf16.msra.mxu0 0
      %1608 = vmatprep.subr.bf16.mxu0 0
      %1609 = vmatpush2.bf16.msra.mxu0 0
      %1610 = vmatprep.mubr.bf16.mxu0 0
      %1611 = vmatmul.mubr.bf16.gmra.mxu0 %v1576
      %v1612 = vpop.f32.mrf.mxu0
      %v1613 = vadd.f32 %v1551, %v1612
      %v1614 = vpop.f32.mrf.mxu0
      %v1615 = vpop.f32.mrf.mxu0
      %v1616 = vpop.f32.mrf.mxu0
      %1617 = vdwg.mxu0
      %v1618 = vld [vmem:[%s514] sm:$0x8]
      %v1619 = vld [vmem:[%s514 + $0x4] sm:$0xf]
      %v1620 = vld [vmem:[%s651] sm:$0xf]
      %v1621 = vld [vmem:[%s651 + $0x4] sm:$0xf]
      %v1624 = vunpack.c.l.b16 %v1618
      %v1625 = vunpack.c.l.b16 %v1619
      %v1626 = vpack.c.b16 %v1625, %v1624
      %v1628 = vshrl.u32 %v1626, 16
      %v1630 = vrot.slane %v1628, 3
      %v1631 = vshll.u32 %v1626, 16
      %v1633 = vrot.slane %v1631, 4
      %v1634 = vor.u32 %v1630, %v1633
      %v1637 = vunpack.c.l.b16 %v1620
      %v1638 = vunpack.c.l.b16 %v1621
      %v1639 = vpack.c.b16 %v1638, %v1637
      %v1642 = vsel %vm408, %v1634, 0
      %1644 = vmatprep.subr.bf16.mxu0 0
      %1645 = vmatpush1.bf16.msra.mxu0 0
      %1646 = vmatprep.subr.bf16.mxu0 0
      %1647 = vmatpush1.bf16.msra.mxu0 0
      %1648 = vmatprep.subr.bf16.mxu0 0
      %1649 = vmatpush1.bf16.msra.mxu0 0
      %1650 = vmatprep.subr.bf16.mxu0 0
      %1651 = vmatpush1.bf16.msra.mxu0 0
      %1652 = vmatprep.subr.bf16.mxu0 0
      %1653 = vmatpush1.bf16.msra.mxu0 0
      %1654 = vmatprep.subr.bf16.mxu0 0
      %1655 = vmatpush1.bf16.msra.mxu0 0
      %1656 = vmatprep.subr.bf16.mxu0 0
      %1657 = vmatpush1.bf16.msra.mxu0 0
      %1658 = vmatprep.subr.bf16.mxu0 0
      %1659 = vmatpush1.bf16.msra.mxu0 %v1639
      %1660 = vmatprep.subr.bf16.mxu0 0
      %1661 = vmatpush2.bf16.msra.mxu0 0
      %1662 = vmatprep.subr.bf16.mxu0 0
      %1663 = vmatpush2.bf16.msra.mxu0 0
      %1664 = vmatprep.subr.bf16.mxu0 0
      %1665 = vmatpush2.bf16.msra.mxu0 0
      %1666 = vmatprep.subr.bf16.mxu0 0
      %1667 = vmatpush2.bf16.msra.mxu0 0
      %1668 = vmatprep.subr.bf16.mxu0 0
      %1669 = vmatpush2.bf16.msra.mxu0 0
      %1670 = vmatprep.subr.bf16.mxu0 0
      %1671 = vmatpush2.bf16.msra.mxu0 0
      %1672 = vmatprep.subr.bf16.mxu0 0
      %1673 = vmatpush2.bf16.msra.mxu0 0
      %1674 = vmatprep.subr.bf16.mxu0 0
      %1675 = vmatpush2.bf16.msra.mxu0 0
      %1676 = vmatprep.mubr.bf16.mxu0 0
      %1677 = vmatmul.mubr.bf16.gmra.mxu0 %v1642
      %v1678 = vpop.f32.mrf.mxu0
      %v1679 = vadd.f32 0.0, %v1678
      %v1680 = vpop.f32.mrf.mxu0
      %v1681 = vpop.f32.mrf.mxu0
      %v1682 = vpop.f32.mrf.mxu0
      %1683 = vdwg.mxu0
      %v1684 = vadd.f32 %v1613, %v1679
      %v1685 = vld [vmem:[%s717] sm:$0xf]
      %v1686 = vld [vmem:[%s717 + $0x4] sm:$0xf]
      %v1689 = vunpack.c.l.b16 %v1685
      %v1690 = vunpack.c.l.b16 %v1686
      %v1691 = vpack.c.b16 %v1690, %v1689
      %v1694 = vsel %vm408, %v1619, 0
      %1696 = vmatprep.subr.bf16.mxu0 0
      %1697 = vmatpush1.bf16.msra.mxu0 0
      %1698 = vmatprep.subr.bf16.mxu0 0
      %1699 = vmatpush1.bf16.msra.mxu0 0
      %1700 = vmatprep.subr.bf16.mxu0 0
      %1701 = vmatpush1.bf16.msra.mxu0 0
      %1702 = vmatprep.subr.bf16.mxu0 0
      %1703 = vmatpush1.bf16.msra.mxu0 0
      %1704 = vmatprep.subr.bf16.mxu0 0
      %1705 = vmatpush1.bf16.msra.mxu0 0
      %1706 = vmatprep.subr.bf16.mxu0 0
      %1707 = vmatpush1.bf16.msra.mxu0 0
      %1708 = vmatprep.subr.bf16.mxu0 0
      %1709 = vmatpush1.bf16.msra.mxu0 0
      %1710 = vmatprep.subr.bf16.mxu0 0
      %1711 = vmatpush1.bf16.msra.mxu0 %v1691
      %1712 = vmatprep.subr.bf16.mxu0 0
      %1713 = vmatpush2.bf16.msra.mxu0 0
      %1714 = vmatprep.subr.bf16.mxu0 0
      %1715 = vmatpush2.bf16.msra.mxu0 0
      %1716 = vmatprep.subr.bf16.mxu0 0
      %1717 = vmatpush2.bf16.msra.mxu0 0
      %1718 = vmatprep.subr.bf16.mxu0 0
      %1719 = vmatpush2.bf16.msra.mxu0 0
      %1720 = vmatprep.subr.bf16.mxu0 0
      %1721 = vmatpush2.bf16.msra.mxu0 0
      %1722 = vmatprep.subr.bf16.mxu0 0
      %1723 = vmatpush2.bf16.msra.mxu0 0
      %1724 = vmatprep.subr.bf16.mxu0 0
      %1725 = vmatpush2.bf16.msra.mxu0 0
      %1726 = vmatprep.subr.bf16.mxu0 0
      %1727 = vmatpush2.bf16.msra.mxu0 0
      %1728 = vmatprep.mubr.bf16.mxu0 0
      %1729 = vmatmul.mubr.bf16.gmra.mxu0 %v1694
      %v1730 = vpop.f32.mrf.mxu0
      %v1731 = vadd.f32 0.0, %v1730
      %v1732 = vpop.f32.mrf.mxu0
      %v1733 = vpop.f32.mrf.mxu0
      %v1734 = vpop.f32.mrf.mxu0
      %1735 = vdwg.mxu0
      %v1736 = vadd.f32 %v1684, %v1731
      %v1737 = vadd.f32 %v1736, %v774
      %v1738 = vmax.f32 %v1737, 0.0
      %v1739 = vpack.c.bf16 %v1738, %v1738
      %1740 = vst.msk [vmem:[#allocation3 + $0x10] sm:$0xf] %vm779, %v1739
      %v1741 = vld [vmem:[%s514] sm:$0x8]
      %v1742 = vld [vmem:[%s514 + $0x4] sm:$0xf]
      %v1743 = vld [vmem:[%s3] sm:$0xf]
      %v1744 = vld [vmem:[%s3 + $0x4] sm:$0xf]
      %v1745 = vld [vmem:[%s535] sm:$0xf]
      %v1746 = vld [vmem:[%s535 + $0x4] sm:$0xf]
      %v1749 = vunpack.c.l.b16 %v1745
      %v1750 = vunpack.c.l.b16 %v1746
      %v1751 = vpack.c.b16 %v1750, %v1749
      %v1754 = vsel %vm408, %v1742, 0
      %1756 = vmatprep.subr.bf16.mxu0 0
      %1757 = vmatpush1.bf16.msra.mxu0 0
      %1758 = vmatprep.subr.bf16.mxu0 0
      %1759 = vmatpush1.bf16.msra.mxu0 0
      %1760 = vmatprep.subr.bf16.mxu0 0
      %1761 = vmatpush1.bf16.msra.mxu0 0
      %1762 = vmatprep.subr.bf16.mxu0 0
      %1763 = vmatpush1.bf16.msra.mxu0 0
      %1764 = vmatprep.subr.bf16.mxu0 0
      %1765 = vmatpush1.bf16.msra.mxu0 0
      %1766 = vmatprep.subr.bf16.mxu0 0
      %1767 = vmatpush1.bf16.msra.mxu0 0
      %1768 = vmatprep.subr.bf16.mxu0 0
      %1769 = vmatpush1.bf16.msra.mxu0 0
      %1770 = vmatprep.subr.bf16.mxu0 0
      %1771 = vmatpush1.bf16.msra.mxu0 %v1751
      %1772 = vmatprep.subr.bf16.mxu0 0
      %1773 = vmatpush2.bf16.msra.mxu0 0
      %1774 = vmatprep.subr.bf16.mxu0 0
      %1775 = vmatpush2.bf16.msra.mxu0 0
      %1776 = vmatprep.subr.bf16.mxu0 0
      %1777 = vmatpush2.bf16.msra.mxu0 0
      %1778 = vmatprep.subr.bf16.mxu0 0
      %1779 = vmatpush2.bf16.msra.mxu0 0
      %1780 = vmatprep.subr.bf16.mxu0 0
      %1781 = vmatpush2.bf16.msra.mxu0 0
      %1782 = vmatprep.subr.bf16.mxu0 0
      %1783 = vmatpush2.bf16.msra.mxu0 0
      %1784 = vmatprep.subr.bf16.mxu0 0
      %1785 = vmatpush2.bf16.msra.mxu0 0
      %1786 = vmatprep.subr.bf16.mxu0 0
      %1787 = vmatpush2.bf16.msra.mxu0 0
      %1788 = vmatprep.mubr.bf16.mxu0 0
      %1789 = vmatmul.mubr.bf16.gmra.mxu0 %v1754
      %v1790 = vpop.f32.mrf.mxu0
      %v1791 = vadd.f32 0.0, %v1790
      %v1792 = vpop.f32.mrf.mxu0
      %v1793 = vpop.f32.mrf.mxu0
      %v1794 = vpop.f32.mrf.mxu0
      %1795 = vdwg.mxu0
      %v1798 = vunpack.c.l.b16 %v1741
      %v1799 = vunpack.c.l.b16 %v1742
      %v1800 = vpack.c.b16 %v1799, %v1798
      %v1802 = vshrl.u32 %v1800, 16
      %v1804 = vrot.slane %v1802, 3
      %v1805 = vshll.u32 %v1800, 16
      %v1807 = vrot.slane %v1805, 4
      %v1808 = vor.u32 %v1804, %v1807
      %v1811 = vunpack.c.l.b16 %v1743
      %v1812 = vunpack.c.l.b16 %v1744
      %v1813 = vpack.c.b16 %v1812, %v1811
      %v1816 = vsel %vm408, %v1808, 0
      %1818 = vmatprep.subr.bf16.mxu0 0
      %1819 = vmatpush1.bf16.msra.mxu0 0
      %1820 = vmatprep.subr.bf16.mxu0 0
      %1821 = vmatpush1.bf16.msra.mxu0 0
      %1822 = vmatprep.subr.bf16.mxu0 0
      %1823 = vmatpush1.bf16.msra.mxu0 0
      %1824 = vmatprep.subr.bf16.mxu0 0
      %1825 = vmatpush1.bf16.msra.mxu0 0
      %1826 = vmatprep.subr.bf16.mxu0 0
      %1827 = vmatpush1.bf16.msra.mxu0 0
      %1828 = vmatprep.subr.bf16.mxu0 0
      %1829 = vmatpush1.bf16.msra.mxu0 0
      %1830 = vmatprep.subr.bf16.mxu0 0
      %1831 = vmatpush1.bf16.msra.mxu0 0
      %1832 = vmatprep.subr.bf16.mxu0 0
      %1833 = vmatpush1.bf16.msra.mxu0 %v1813
      %1834 = vmatprep.subr.bf16.mxu0 0
      %1835 = vmatpush2.bf16.msra.mxu0 0
      %1836 = vmatprep.subr.bf16.mxu0 0
      %1837 = vmatpush2.bf16.msra.mxu0 0
      %1838 = vmatprep.subr.bf16.mxu0 0
      %1839 = vmatpush2.bf16.msra.mxu0 0
      %1840 = vmatprep.subr.bf16.mxu0 0
      %1841 = vmatpush2.bf16.msra.mxu0 0
      %1842 = vmatprep.subr.bf16.mxu0 0
      %1843 = vmatpush2.bf16.msra.mxu0 0
      %1844 = vmatprep.subr.bf16.mxu0 0
      %1845 = vmatpush2.bf16.msra.mxu0 0
      %1846 = vmatprep.subr.bf16.mxu0 0
      %1847 = vmatpush2.bf16.msra.mxu0 0
      %1848 = vmatprep.subr.bf16.mxu0 0
      %1849 = vmatpush2.bf16.msra.mxu0 0
      %1850 = vmatprep.mubr.bf16.mxu0 0
      %1851 = vmatmul.mubr.bf16.gmra.mxu0 %v1816
      %v1852 = vpop.f32.mrf.mxu0
      %v1853 = vadd.f32 %v1791, %v1852
      %v1854 = vpop.f32.mrf.mxu0
      %v1855 = vpop.f32.mrf.mxu0
      %v1856 = vpop.f32.mrf.mxu0
      %1857 = vdwg.mxu0
      %v1858 = vld [vmem:[%s520] sm:$0x8]
      %v1859 = vld [vmem:[%s520 + $0x4] sm:$0xf]
      %v1860 = vld [vmem:[%s651] sm:$0xf]
      %v1861 = vld [vmem:[%s651 + $0x4] sm:$0xf]
      %v1864 = vunpack.c.l.b16 %v1858
      %v1865 = vunpack.c.l.b16 %v1859
      %v1866 = vpack.c.b16 %v1865, %v1864
      %v1868 = vshrl.u32 %v1866, 16
      %v1870 = vrot.slane %v1868, 3
      %v1871 = vshll.u32 %v1866, 16
      %v1873 = vrot.slane %v1871, 4
      %v1874 = vor.u32 %v1870, %v1873
      %v1877 = vunpack.c.l.b16 %v1860
      %v1878 = vunpack.c.l.b16 %v1861
      %v1879 = vpack.c.b16 %v1878, %v1877
      %v1882 = vsel %vm408, %v1874, 0
      %1884 = vmatprep.subr.bf16.mxu0 0
      %1885 = vmatpush1.bf16.msra.mxu0 0
      %1886 = vmatprep.subr.bf16.mxu0 0
      %1887 = vmatpush1.bf16.msra.mxu0 0
      %1888 = vmatprep.subr.bf16.mxu0 0
      %1889 = vmatpush1.bf16.msra.mxu0 0
      %1890 = vmatprep.subr.bf16.mxu0 0
      %1891 = vmatpush1.bf16.msra.mxu0 0
      %1892 = vmatprep.subr.bf16.mxu0 0
      %1893 = vmatpush1.bf16.msra.mxu0 0
      %1894 = vmatprep.subr.bf16.mxu0 0
      %1895 = vmatpush1.bf16.msra.mxu0 0
      %1896 = vmatprep.subr.bf16.mxu0 0
      %1897 = vmatpush1.bf16.msra.mxu0 0
      %1898 = vmatprep.subr.bf16.mxu0 0
      %1899 = vmatpush1.bf16.msra.mxu0 %v1879
      %1900 = vmatprep.subr.bf16.mxu0 0
      %1901 = vmatpush2.bf16.msra.mxu0 0
      %1902 = vmatprep.subr.bf16.mxu0 0
      %1903 = vmatpush2.bf16.msra.mxu0 0
      %1904 = vmatprep.subr.bf16.mxu0 0
      %1905 = vmatpush2.bf16.msra.mxu0 0
      %1906 = vmatprep.subr.bf16.mxu0 0
      %1907 = vmatpush2.bf16.msra.mxu0 0
      %1908 = vmatprep.subr.bf16.mxu0 0
      %1909 = vmatpush2.bf16.msra.mxu0 0
      %1910 = vmatprep.subr.bf16.mxu0 0
      %1911 = vmatpush2.bf16.msra.mxu0 0
      %1912 = vmatprep.subr.bf16.mxu0 0
      %1913 = vmatpush2.bf16.msra.mxu0 0
      %1914 = vmatprep.subr.bf16.mxu0 0
      %1915 = vmatpush2.bf16.msra.mxu0 0
      %1916 = vmatprep.mubr.bf16.mxu0 0
      %1917 = vmatmul.mubr.bf16.gmra.mxu0 %v1882
      %v1918 = vpop.f32.mrf.mxu0
      %v1919 = vadd.f32 0.0, %v1918
      %v1920 = vpop.f32.mrf.mxu0
      %v1921 = vpop.f32.mrf.mxu0
      %v1922 = vpop.f32.mrf.mxu0
      %1923 = vdwg.mxu0
      %v1924 = vadd.f32 %v1853, %v1919
      %v1925 = vld [vmem:[%s717] sm:$0xf]
      %v1926 = vld [vmem:[%s717 + $0x4] sm:$0xf]
      %v1929 = vunpack.c.l.b16 %v1925
      %v1930 = vunpack.c.l.b16 %v1926
      %v1931 = vpack.c.b16 %v1930, %v1929
      %v1934 = vsel %vm408, %v1859, 0
      %1936 = vmatprep.subr.bf16.mxu0 0
      %1937 = vmatpush1.bf16.msra.mxu0 0
      %1938 = vmatprep.subr.bf16.mxu0 0
      %1939 = vmatpush1.bf16.msra.mxu0 0
      %1940 = vmatprep.subr.bf16.mxu0 0
      %1941 = vmatpush1.bf16.msra.mxu0 0
      %1942 = vmatprep.subr.bf16.mxu0 0
      %1943 = vmatpush1.bf16.msra.mxu0 0
      %1944 = vmatprep.subr.bf16.mxu0 0
      %1945 = vmatpush1.bf16.msra.mxu0 0
      %1946 = vmatprep.subr.bf16.mxu0 0
      %1947 = vmatpush1.bf16.msra.mxu0 0
      %1948 = vmatprep.subr.bf16.mxu0 0
      %1949 = vmatpush1.bf16.msra.mxu0 0
      %1950 = vmatprep.subr.bf16.mxu0 0
      %1951 = vmatpush1.bf16.msra.mxu0 %v1931
      %1952 = vmatprep.subr.bf16.mxu0 0
      %1953 = vmatpush2.bf16.msra.mxu0 0
      %1954 = vmatprep.subr.bf16.mxu0 0
      %1955 = vmatpush2.bf16.msra.mxu0 0
      %1956 = vmatprep.subr.bf16.mxu0 0
      %1957 = vmatpush2.bf16.msra.mxu0 0
      %1958 = vmatprep.subr.bf16.mxu0 0
      %1959 = vmatpush2.bf16.msra.mxu0 0
      %1960 = vmatprep.subr.bf16.mxu0 0
      %1961 = vmatpush2.bf16.msra.mxu0 0
      %1962 = vmatprep.subr.bf16.mxu0 0
      %1963 = vmatpush2.bf16.msra.mxu0 0
      %1964 = vmatprep.subr.bf16.mxu0 0
      %1965 = vmatpush2.bf16.msra.mxu0 0
      %1966 = vmatprep.subr.bf16.mxu0 0
      %1967 = vmatpush2.bf16.msra.mxu0 0
      %1968 = vmatprep.mubr.bf16.mxu0 0
      %1969 = vmatmul.mubr.bf16.gmra.mxu0 %v1934
      %v1970 = vpop.f32.mrf.mxu0
      %v1971 = vadd.f32 0.0, %v1970
      %v1972 = vpop.f32.mrf.mxu0
      %v1973 = vpop.f32.mrf.mxu0
      %v1974 = vpop.f32.mrf.mxu0
      %1975 = vdwg.mxu0
      %v1976 = vadd.f32 %v1924, %v1971
      %v1977 = vadd.f32 %v1976, %v774
      %v1978 = vmax.f32 %v1977, 0.0
      %v1979 = vpack.c.bf16 %v1978, %v1978
      %1980 = vst.msk [vmem:[#allocation3 + $0x14] sm:$0xf] %vm779, %v1979
      %v1981 = vld [vmem:[%s520] sm:$0x8]
      %v1982 = vld [vmem:[%s520 + $0x4] sm:$0xf]
      %v1983 = vld [vmem:[%s3] sm:$0xf]
      %v1984 = vld [vmem:[%s3 + $0x4] sm:$0xf]
      %v1985 = vld [vmem:[%s535] sm:$0xf]
      %v1986 = vld [vmem:[%s535 + $0x4] sm:$0xf]
      %v1989 = vunpack.c.l.b16 %v1985
      %v1990 = vunpack.c.l.b16 %v1986
      %v1991 = vpack.c.b16 %v1990, %v1989
      %v1994 = vsel %vm408, %v1982, 0
      %1996 = vmatprep.subr.bf16.mxu0 0
      %1997 = vmatpush1.bf16.msra.mxu0 0
      %1998 = vmatprep.subr.bf16.mxu0 0
      %1999 = vmatpush1.bf16.msra.mxu0 0
      %2000 = vmatprep.subr.bf16.mxu0 0
      %2001 = vmatpush1.bf16.msra.mxu0 0
      %2002 = vmatprep.subr.bf16.mxu0 0
      %2003 = vmatpush1.bf16.msra.mxu0 0
      %2004 = vmatprep.subr.bf16.mxu0 0
      %2005 = vmatpush1.bf16.msra.mxu0 0
      %2006 = vmatprep.subr.bf16.mxu0 0
      %2007 = vmatpush1.bf16.msra.mxu0 0
      %2008 = vmatprep.subr.bf16.mxu0 0
      %2009 = vmatpush1.bf16.msra.mxu0 0
      %2010 = vmatprep.subr.bf16.mxu0 0
      %2011 = vmatpush1.bf16.msra.mxu0 %v1991
      %2012 = vmatprep.subr.bf16.mxu0 0
      %2013 = vmatpush2.bf16.msra.mxu0 0
      %2014 = vmatprep.subr.bf16.mxu0 0
      %2015 = vmatpush2.bf16.msra.mxu0 0
      %2016 = vmatprep.subr.bf16.mxu0 0
      %2017 = vmatpush2.bf16.msra.mxu0 0
      %2018 = vmatprep.subr.bf16.mxu0 0
      %2019 = vmatpush2.bf16.msra.mxu0 0
      %2020 = vmatprep.subr.bf16.mxu0 0
      %2021 = vmatpush2.bf16.msra.mxu0 0
      %2022 = vmatprep.subr.bf16.mxu0 0
      %2023 = vmatpush2.bf16.msra.mxu0 0
      %2024 = vmatprep.subr.bf16.mxu0 0
      %2025 = vmatpush2.bf16.msra.mxu0 0
      %2026 = vmatprep.subr.bf16.mxu0 0
      %2027 = vmatpush2.bf16.msra.mxu0 0
      %2028 = vmatprep.mubr.bf16.mxu0 0
      %2029 = vmatmul.mubr.bf16.gmra.mxu0 %v1994
      %v2030 = vpop.f32.mrf.mxu0
      %v2031 = vadd.f32 0.0, %v2030
      %v2032 = vpop.f32.mrf.mxu0
      %v2033 = vpop.f32.mrf.mxu0
      %v2034 = vpop.f32.mrf.mxu0
      %2035 = vdwg.mxu0
      %v2038 = vunpack.c.l.b16 %v1981
      %v2039 = vunpack.c.l.b16 %v1982
      %v2040 = vpack.c.b16 %v2039, %v2038
      %v2042 = vshrl.u32 %v2040, 16
      %v2044 = vrot.slane %v2042, 3
      %v2045 = vshll.u32 %v2040, 16
      %v2047 = vrot.slane %v2045, 4
      %v2048 = vor.u32 %v2044, %v2047
      %v2051 = vunpack.c.l.b16 %v1983
      %v2052 = vunpack.c.l.b16 %v1984
      %v2053 = vpack.c.b16 %v2052, %v2051
      %v2056 = vsel %vm408, %v2048, 0
      %2058 = vmatprep.subr.bf16.mxu0 0
      %2059 = vmatpush1.bf16.msra.mxu0 0
      %2060 = vmatprep.subr.bf16.mxu0 0
      %2061 = vmatpush1.bf16.msra.mxu0 0
      %2062 = vmatprep.subr.bf16.mxu0 0
      %2063 = vmatpush1.bf16.msra.mxu0 0
      %2064 = vmatprep.subr.bf16.mxu0 0
      %2065 = vmatpush1.bf16.msra.mxu0 0
      %2066 = vmatprep.subr.bf16.mxu0 0
      %2067 = vmatpush1.bf16.msra.mxu0 0
      %2068 = vmatprep.subr.bf16.mxu0 0
      %2069 = vmatpush1.bf16.msra.mxu0 0
      %2070 = vmatprep.subr.bf16.mxu0 0
      %2071 = vmatpush1.bf16.msra.mxu0 0
      %2072 = vmatprep.subr.bf16.mxu0 0
      %2073 = vmatpush1.bf16.msra.mxu0 %v2053
      %2074 = vmatprep.subr.bf16.mxu0 0
      %2075 = vmatpush2.bf16.msra.mxu0 0
      %2076 = vmatprep.subr.bf16.mxu0 0
      %2077 = vmatpush2.bf16.msra.mxu0 0
      %2078 = vmatprep.subr.bf16.mxu0 0
      %2079 = vmatpush2.bf16.msra.mxu0 0
      %2080 = vmatprep.subr.bf16.mxu0 0
      %2081 = vmatpush2.bf16.msra.mxu0 0
      %2082 = vmatprep.subr.bf16.mxu0 0
      %2083 = vmatpush2.bf16.msra.mxu0 0
      %2084 = vmatprep.subr.bf16.mxu0 0
      %2085 = vmatpush2.bf16.msra.mxu0 0
      %2086 = vmatprep.subr.bf16.mxu0 0
      %2087 = vmatpush2.bf16.msra.mxu0 0
      %2088 = vmatprep.subr.bf16.mxu0 0
      %2089 = vmatpush2.bf16.msra.mxu0 0
      %2090 = vmatprep.mubr.bf16.mxu0 0
      %2091 = vmatmul.mubr.bf16.gmra.mxu0 %v2056
      %v2092 = vpop.f32.mrf.mxu0
      %v2093 = vadd.f32 %v2031, %v2092
      %v2094 = vpop.f32.mrf.mxu0
      %v2095 = vpop.f32.mrf.mxu0
      %v2096 = vpop.f32.mrf.mxu0
      %2097 = vdwg.mxu0
      %v2098 = vld [vmem:[%s522] sm:$0x8]
      %v2099 = vld [vmem:[%s522 + $0x4] sm:$0xf]
      %v2100 = vld [vmem:[%s651] sm:$0xf]
      %v2101 = vld [vmem:[%s651 + $0x4] sm:$0xf]
      %v2104 = vunpack.c.l.b16 %v2098
      %v2105 = vunpack.c.l.b16 %v2099
      %v2106 = vpack.c.b16 %v2105, %v2104
      %v2108 = vshrl.u32 %v2106, 16
      %v2110 = vrot.slane %v2108, 3
      %v2111 = vshll.u32 %v2106, 16
      %v2113 = vrot.slane %v2111, 4
      %v2114 = vor.u32 %v2110, %v2113
      %v2117 = vunpack.c.l.b16 %v2100
      %v2118 = vunpack.c.l.b16 %v2101
      %v2119 = vpack.c.b16 %v2118, %v2117
      %v2122 = vsel %vm408, %v2114, 0
      %2124 = vmatprep.subr.bf16.mxu0 0
      %2125 = vmatpush1.bf16.msra.mxu0 0
      %2126 = vmatprep.subr.bf16.mxu0 0
      %2127 = vmatpush1.bf16.msra.mxu0 0
      %2128 = vmatprep.subr.bf16.mxu0 0
      %2129 = vmatpush1.bf16.msra.mxu0 0
      %2130 = vmatprep.subr.bf16.mxu0 0
      %2131 = vmatpush1.bf16.msra.mxu0 0
      %2132 = vmatprep.subr.bf16.mxu0 0
      %2133 = vmatpush1.bf16.msra.mxu0 0
      %2134 = vmatprep.subr.bf16.mxu0 0
      %2135 = vmatpush1.bf16.msra.mxu0 0
      %2136 = vmatprep.subr.bf16.mxu0 0
      %2137 = vmatpush1.bf16.msra.mxu0 0
      %2138 = vmatprep.subr.bf16.mxu0 0
      %2139 = vmatpush1.bf16.msra.mxu0 %v2119
      %2140 = vmatprep.subr.bf16.mxu0 0
      %2141 = vmatpush2.bf16.msra.mxu0 0
      %2142 = vmatprep.subr.bf16.mxu0 0
      %2143 = vmatpush2.bf16.msra.mxu0 0
      %2144 = vmatprep.subr.bf16.mxu0 0
      %2145 = vmatpush2.bf16.msra.mxu0 0
      %2146 = vmatprep.subr.bf16.mxu0 0
      %2147 = vmatpush2.bf16.msra.mxu0 0
      %2148 = vmatprep.subr.bf16.mxu0 0
      %2149 = vmatpush2.bf16.msra.mxu0 0
      %2150 = vmatprep.subr.bf16.mxu0 0
      %2151 = vmatpush2.bf16.msra.mxu0 0
      %2152 = vmatprep.subr.bf16.mxu0 0
      %2153 = vmatpush2.bf16.msra.mxu0 0
      %2154 = vmatprep.subr.bf16.mxu0 0
      %2155 = vmatpush2.bf16.msra.mxu0 0
      %2156 = vmatprep.mubr.bf16.mxu0 0
      %2157 = vmatmul.mubr.bf16.gmra.mxu0 %v2122
      %v2158 = vpop.f32.mrf.mxu0
      %v2159 = vadd.f32 0.0, %v2158
      %v2160 = vpop.f32.mrf.mxu0
      %v2161 = vpop.f32.mrf.mxu0
      %v2162 = vpop.f32.mrf.mxu0
      %2163 = vdwg.mxu0
      %v2164 = vadd.f32 %v2093, %v2159
      %v2165 = vld [vmem:[%s717] sm:$0xf]
      %v2166 = vld [vmem:[%s717 + $0x4] sm:$0xf]
      %v2169 = vunpack.c.l.b16 %v2165
      %v2170 = vunpack.c.l.b16 %v2166
      %v2171 = vpack.c.b16 %v2170, %v2169
      %v2174 = vsel %vm408, %v2099, 0
      %2176 = vmatprep.subr.bf16.mxu0 0
      %2177 = vmatpush1.bf16.msra.mxu0 0
      %2178 = vmatprep.subr.bf16.mxu0 0
      %2179 = vmatpush1.bf16.msra.mxu0 0
      %2180 = vmatprep.subr.bf16.mxu0 0
      %2181 = vmatpush1.bf16.msra.mxu0 0
      %2182 = vmatprep.subr.bf16.mxu0 0
      %2183 = vmatpush1.bf16.msra.mxu0 0
      %2184 = vmatprep.subr.bf16.mxu0 0
      %2185 = vmatpush1.bf16.msra.mxu0 0
      %2186 = vmatprep.subr.bf16.mxu0 0
      %2187 = vmatpush1.bf16.msra.mxu0 0
      %2188 = vmatprep.subr.bf16.mxu0 0
      %2189 = vmatpush1.bf16.msra.mxu0 0
      %2190 = vmatprep.subr.bf16.mxu0 0
      %2191 = vmatpush1.bf16.msra.mxu0 %v2171
      %2192 = vmatprep.subr.bf16.mxu0 0
      %2193 = vmatpush2.bf16.msra.mxu0 0
      %2194 = vmatprep.subr.bf16.mxu0 0
      %2195 = vmatpush2.bf16.msra.mxu0 0
      %2196 = vmatprep.subr.bf16.mxu0 0
      %2197 = vmatpush2.bf16.msra.mxu0 0
      %2198 = vmatprep.subr.bf16.mxu0 0
      %2199 = vmatpush2.bf16.msra.mxu0 0
      %2200 = vmatprep.subr.bf16.mxu0 0
      %2201 = vmatpush2.bf16.msra.mxu0 0
      %2202 = vmatprep.subr.bf16.mxu0 0
      %2203 = vmatpush2.bf16.msra.mxu0 0
      %2204 = vmatprep.subr.bf16.mxu0 0
      %2205 = vmatpush2.bf16.msra.mxu0 0
      %2206 = vmatprep.subr.bf16.mxu0 0
      %2207 = vmatpush2.bf16.msra.mxu0 0
      %2208 = vmatprep.mubr.bf16.mxu0 0
      %2209 = vmatmul.mubr.bf16.gmra.mxu0 %v2174
      %v2210 = vpop.f32.mrf.mxu0
      %v2211 = vadd.f32 0.0, %v2210
      %v2212 = vpop.f32.mrf.mxu0
      %v2213 = vpop.f32.mrf.mxu0
      %v2214 = vpop.f32.mrf.mxu0
      %2215 = vdwg.mxu0
      %v2216 = vadd.f32 %v2164, %v2211
      %v2217 = vadd.f32 %v2216, %v774
      %v2218 = vmax.f32 %v2217, 0.0
      %v2219 = vpack.c.bf16 %v2218, %v2218
      %2220 = vst.msk [vmem:[#allocation3 + $0x18] sm:$0xf] %vm779, %v2219
      %v2221 = vld [vmem:[%s522] sm:$0x8]
      %v2222 = vld [vmem:[%s522 + $0x4] sm:$0xf]
      %v2223 = vld [vmem:[%s3] sm:$0xf]
      %v2224 = vld [vmem:[%s3 + $0x4] sm:$0xf]
      %v2225 = vld [vmem:[%s535] sm:$0xf]
      %v2226 = vld [vmem:[%s535 + $0x4] sm:$0xf]
      %v2229 = vunpack.c.l.b16 %v2225
      %v2230 = vunpack.c.l.b16 %v2226
      %v2231 = vpack.c.b16 %v2230, %v2229
      %v2234 = vsel %vm408, %v2222, 0
      %2236 = vmatprep.subr.bf16.mxu0 0
      %2237 = vmatpush1.bf16.msra.mxu0 0
      %2238 = vmatprep.subr.bf16.mxu0 0
      %2239 = vmatpush1.bf16.msra.mxu0 0
      %2240 = vmatprep.subr.bf16.mxu0 0
      %2241 = vmatpush1.bf16.msra.mxu0 0
      %2242 = vmatprep.subr.bf16.mxu0 0
      %2243 = vmatpush1.bf16.msra.mxu0 0
      %2244 = vmatprep.subr.bf16.mxu0 0
      %2245 = vmatpush1.bf16.msra.mxu0 0
      %2246 = vmatprep.subr.bf16.mxu0 0
      %2247 = vmatpush1.bf16.msra.mxu0 0
      %2248 = vmatprep.subr.bf16.mxu0 0
      %2249 = vmatpush1.bf16.msra.mxu0 0
      %2250 = vmatprep.subr.bf16.mxu0 0
      %2251 = vmatpush1.bf16.msra.mxu0 %v2231
      %2252 = vmatprep.subr.bf16.mxu0 0
      %2253 = vmatpush2.bf16.msra.mxu0 0
      %2254 = vmatprep.subr.bf16.mxu0 0
      %2255 = vmatpush2.bf16.msra.mxu0 0
      %2256 = vmatprep.subr.bf16.mxu0 0
      %2257 = vmatpush2.bf16.msra.mxu0 0
      %2258 = vmatprep.subr.bf16.mxu0 0
      %2259 = vmatpush2.bf16.msra.mxu0 0
      %2260 = vmatprep.subr.bf16.mxu0 0
      %2261 = vmatpush2.bf16.msra.mxu0 0
      %2262 = vmatprep.subr.bf16.mxu0 0
      %2263 = vmatpush2.bf16.msra.mxu0 0
      %2264 = vmatprep.subr.bf16.mxu0 0
      %2265 = vmatpush2.bf16.msra.mxu0 0
      %2266 = vmatprep.subr.bf16.mxu0 0
      %2267 = vmatpush2.bf16.msra.mxu0 0
      %2268 = vmatprep.mubr.bf16.mxu0 0
      %2269 = vmatmul.mubr.bf16.gmra.mxu0 %v2234
      %v2270 = vpop.f32.mrf.mxu0
      %v2271 = vadd.f32 0.0, %v2270
      %v2272 = vpop.f32.mrf.mxu0
      %v2273 = vpop.f32.mrf.mxu0
      %v2274 = vpop.f32.mrf.mxu0
      %2275 = vdwg.mxu0
      %v2278 = vunpack.c.l.b16 %v2221
      %v2279 = vunpack.c.l.b16 %v2222
      %v2280 = vpack.c.b16 %v2279, %v2278
      %v2282 = vshrl.u32 %v2280, 16
      %v2284 = vrot.slane %v2282, 3
      %v2285 = vshll.u32 %v2280, 16
      %v2287 = vrot.slane %v2285, 4
      %v2288 = vor.u32 %v2284, %v2287
      %v2291 = vunpack.c.l.b16 %v2223
      %v2292 = vunpack.c.l.b16 %v2224
      %v2293 = vpack.c.b16 %v2292, %v2291
      %v2296 = vsel %vm408, %v2288, 0
      %2298 = vmatprep.subr.bf16.mxu0 0
      %2299 = vmatpush1.bf16.msra.mxu0 0
      %2300 = vmatprep.subr.bf16.mxu0 0
      %2301 = vmatpush1.bf16.msra.mxu0 0
      %2302 = vmatprep.subr.bf16.mxu0 0
      %2303 = vmatpush1.bf16.msra.mxu0 0
      %2304 = vmatprep.subr.bf16.mxu0 0
      %2305 = vmatpush1.bf16.msra.mxu0 0
      %2306 = vmatprep.subr.bf16.mxu0 0
      %2307 = vmatpush1.bf16.msra.mxu0 0
      %2308 = vmatprep.subr.bf16.mxu0 0
      %2309 = vmatpush1.bf16.msra.mxu0 0
      %2310 = vmatprep.subr.bf16.mxu0 0
      %2311 = vmatpush1.bf16.msra.mxu0 0
      %2312 = vmatprep.subr.bf16.mxu0 0
      %2313 = vmatpush1.bf16.msra.mxu0 %v2293
      %2314 = vmatprep.subr.bf16.mxu0 0
      %2315 = vmatpush2.bf16.msra.mxu0 0
      %2316 = vmatprep.subr.bf16.mxu0 0
      %2317 = vmatpush2.bf16.msra.mxu0 0
      %2318 = vmatprep.subr.bf16.mxu0 0
      %2319 = vmatpush2.bf16.msra.mxu0 0
      %2320 = vmatprep.subr.bf16.mxu0 0
      %2321 = vmatpush2.bf16.msra.mxu0 0
      %2322 = vmatprep.subr.bf16.mxu0 0
      %2323 = vmatpush2.bf16.msra.mxu0 0
      %2324 = vmatprep.subr.bf16.mxu0 0
      %2325 = vmatpush2.bf16.msra.mxu0 0
      %2326 = vmatprep.subr.bf16.mxu0 0
      %2327 = vmatpush2.bf16.msra.mxu0 0
      %2328 = vmatprep.subr.bf16.mxu0 0
      %2329 = vmatpush2.bf16.msra.mxu0 0
      %2330 = vmatprep.mubr.bf16.mxu0 0
      %2331 = vmatmul.mubr.bf16.gmra.mxu0 %v2296
      %v2332 = vpop.f32.mrf.mxu0
      %v2333 = vadd.f32 %v2271, %v2332
      %v2334 = vpop.f32.mrf.mxu0
      %v2335 = vpop.f32.mrf.mxu0
      %v2336 = vpop.f32.mrf.mxu0
      %2337 = vdwg.mxu0
      %v2338 = vld [vmem:[%s528] sm:$0x8]
      %v2339 = vld [vmem:[%s528 + $0x4] sm:$0xf]
      %v2340 = vld [vmem:[%s651] sm:$0xf]
      %v2341 = vld [vmem:[%s651 + $0x4] sm:$0xf]
      %v2344 = vunpack.c.l.b16 %v2338
      %v2345 = vunpack.c.l.b16 %v2339
      %v2346 = vpack.c.b16 %v2345, %v2344
      %v2348 = vshrl.u32 %v2346, 16
      %v2350 = vrot.slane %v2348, 3
      %v2351 = vshll.u32 %v2346, 16
      %v2353 = vrot.slane %v2351, 4
      %v2354 = vor.u32 %v2350, %v2353
      %v2357 = vunpack.c.l.b16 %v2340
      %v2358 = vunpack.c.l.b16 %v2341
      %v2359 = vpack.c.b16 %v2358, %v2357
      %v2362 = vsel %vm408, %v2354, 0
      %2364 = vmatprep.subr.bf16.mxu0 0
      %2365 = vmatpush1.bf16.msra.mxu0 0
      %2366 = vmatprep.subr.bf16.mxu0 0
      %2367 = vmatpush1.bf16.msra.mxu0 0
      %2368 = vmatprep.subr.bf16.mxu0 0
      %2369 = vmatpush1.bf16.msra.mxu0 0
      %2370 = vmatprep.subr.bf16.mxu0 0
      %2371 = vmatpush1.bf16.msra.mxu0 0
      %2372 = vmatprep.subr.bf16.mxu0 0
      %2373 = vmatpush1.bf16.msra.mxu0 0
      %2374 = vmatprep.subr.bf16.mxu0 0
      %2375 = vmatpush1.bf16.msra.mxu0 0
      %2376 = vmatprep.subr.bf16.mxu0 0
      %2377 = vmatpush1.bf16.msra.mxu0 0
      %2378 = vmatprep.subr.bf16.mxu0 0
      %2379 = vmatpush1.bf16.msra.mxu0 %v2359
      %2380 = vmatprep.subr.bf16.mxu0 0
      %2381 = vmatpush2.bf16.msra.mxu0 0
      %2382 = vmatprep.subr.bf16.mxu0 0
      %2383 = vmatpush2.bf16.msra.mxu0 0
      %2384 = vmatprep.subr.bf16.mxu0 0
      %2385 = vmatpush2.bf16.msra.mxu0 0
      %2386 = vmatprep.subr.bf16.mxu0 0
      %2387 = vmatpush2.bf16.msra.mxu0 0
      %2388 = vmatprep.subr.bf16.mxu0 0
      %2389 = vmatpush2.bf16.msra.mxu0 0
      %2390 = vmatprep.subr.bf16.mxu0 0
      %2391 = vmatpush2.bf16.msra.mxu0 0
      %2392 = vmatprep.subr.bf16.mxu0 0
      %2393 = vmatpush2.bf16.msra.mxu0 0
      %2394 = vmatprep.subr.bf16.mxu0 0
      %2395 = vmatpush2.bf16.msra.mxu0 0
      %2396 = vmatprep.mubr.bf16.mxu0 0
      %2397 = vmatmul.mubr.bf16.gmra.mxu0 %v2362
      %v2398 = vpop.f32.mrf.mxu0
      %v2399 = vadd.f32 0.0, %v2398
      %v2400 = vpop.f32.mrf.mxu0
      %v2401 = vpop.f32.mrf.mxu0
      %v2402 = vpop.f32.mrf.mxu0
      %2403 = vdwg.mxu0
      %v2404 = vadd.f32 %v2333, %v2399
      %v2405 = vld [vmem:[%s717] sm:$0xf]
      %v2406 = vld [vmem:[%s717 + $0x4] sm:$0xf]
      %v2409 = vunpack.c.l.b16 %v2405
      %v2410 = vunpack.c.l.b16 %v2406
      %v2411 = vpack.c.b16 %v2410, %v2409
      %v2414 = vsel %vm408, %v2339, 0
      %2416 = vmatprep.subr.bf16.mxu0 0
      %2417 = vmatpush1.bf16.msra.mxu0 0
      %2418 = vmatprep.subr.bf16.mxu0 0
      %2419 = vmatpush1.bf16.msra.mxu0 0
      %2420 = vmatprep.subr.bf16.mxu0 0
      %2421 = vmatpush1.bf16.msra.mxu0 0
      %2422 = vmatprep.subr.bf16.mxu0 0
      %2423 = vmatpush1.bf16.msra.mxu0 0
      %2424 = vmatprep.subr.bf16.mxu0 0
      %2425 = vmatpush1.bf16.msra.mxu0 0
      %2426 = vmatprep.subr.bf16.mxu0 0
      %2427 = vmatpush1.bf16.msra.mxu0 0
      %2428 = vmatprep.subr.bf16.mxu0 0
      %2429 = vmatpush1.bf16.msra.mxu0 0
      %2430 = vmatprep.subr.bf16.mxu0 0
      %2431 = vmatpush1.bf16.msra.mxu0 %v2411
      %2432 = vmatprep.subr.bf16.mxu0 0
      %2433 = vmatpush2.bf16.msra.mxu0 0
      %2434 = vmatprep.subr.bf16.mxu0 0
      %2435 = vmatpush2.bf16.msra.mxu0 0
      %2436 = vmatprep.subr.bf16.mxu0 0
      %2437 = vmatpush2.bf16.msra.mxu0 0
      %2438 = vmatprep.subr.bf16.mxu0 0
      %2439 = vmatpush2.bf16.msra.mxu0 0
      %2440 = vmatprep.subr.bf16.mxu0 0
      %2441 = vmatpush2.bf16.msra.mxu0 0
      %2442 = vmatprep.subr.bf16.mxu0 0
      %2443 = vmatpush2.bf16.msra.mxu0 0
      %2444 = vmatprep.subr.bf16.mxu0 0
      %2445 = vmatpush2.bf16.msra.mxu0 0
      %2446 = vmatprep.subr.bf16.mxu0 0
      %2447 = vmatpush2.bf16.msra.mxu0 0
      %2448 = vmatprep.mubr.bf16.mxu0 0
      %2449 = vmatmul.mubr.bf16.gmra.mxu0 %v2414
      %v2450 = vpop.f32.mrf.mxu0
      %v2451 = vadd.f32 0.0, %v2450
      %v2452 = vpop.f32.mrf.mxu0
      %v2453 = vpop.f32.mrf.mxu0
      %v2454 = vpop.f32.mrf.mxu0
      %2455 = vdwg.mxu0
      %v2456 = vadd.f32 %v2404, %v2451
      %v2457 = vadd.f32 %v2456, %v774
      %v2458 = vmax.f32 %v2457, 0.0
      %v2459 = vpack.c.bf16 %v2458, %v2458
      %2460 = vst.msk [vmem:[#allocation3 + $0x1c] sm:$0xf] %vm779, %v2459
      %v2461 = vld [vmem:[#allocation3] sm:$0xf]
      %v2462 = vld [vmem:[#allocation3 + $0x4] sm:$0xf]
      %v2463 = vld [vmem:[#allocation3 + $0x8] sm:$0xf]
      %v2464 = vld [vmem:[#allocation3 + $0xc] sm:$0xf]
      %v2465 = vld [vmem:[#allocation3 + $0x10] sm:$0xf]
      %v2466 = vld [vmem:[#allocation3 + $0x14] sm:$0xf]
      %v2467 = vld [vmem:[#allocation3 + $0x18] sm:$0xf]
      %v2468 = vld [vmem:[#allocation3 + $0x1c] sm:$0xf]
      %v2469 = vld [vmem:[%s5] sm:$0x3]
      %v2470 = vld [vmem:[%s6] sm:$0x1]
      %v2472 = vlaneseq
      %v2473 = vshrl.u32 %v2472, 7
      %v2474 = vsub.s32 0, %v2473
      %v2475 = vrot.slane %v2470, %v2474
      %v2485 = vunpack.c.l.b16 %v2461
      %v2486 = vunpack.c.l.b16 %v2462
      %v2487 = vunpack.c.l.b16 %v2463
      %v2488 = vunpack.c.l.b16 %v2464
      %v2489 = vunpack.c.l.b16 %v2465
      %v2490 = vunpack.c.l.b16 %v2466
      %v2491 = vunpack.c.l.b16 %v2467
      %v2492 = vunpack.c.l.b16 %v2468
      %v2493 = vpack.c.b16 %v2486, %v2485
      %v2494 = vpack.c.b16 %v2488, %v2487
      %v2495 = vpack.c.b16 %v2490, %v2489
      %v2496 = vpack.c.b16 %v2492, %v2491
      %vm2497 = vcmask 31744
      %v2499 = vsel %vm2497, %v2493, 0
      %v2502 = vsel %vm2497, %v2494, 0
      %v2505 = vsel %vm2497, %v2495, 0
      %v2508 = vsel %vm2497, %v2496, 0
      %vm2510 = vcmask 1041408
      %v2512 = vsel %vm2510, %v2469, 0
      %2514 = vmatprep.subr.bf16.mxu0 0
      %2515 = vmatpush1.bf16.msra.mxu0 0
      %2516 = vmatprep.subr.bf16.mxu0 0
      %2517 = vmatpush1.bf16.msra.mxu0 0
      %2518 = vmatprep.subr.bf16.mxu0 0
      %2519 = vmatpush1.bf16.msra.mxu0 0
      %2520 = vmatprep.subr.bf16.mxu0 0
      %2521 = vmatpush1.bf16.msra.mxu0 0
      %2522 = vmatprep.subr.bf16.mxu0 0
      %2523 = vmatpush1.bf16.msra.mxu0 0
      %2524 = vmatprep.subr.bf16.mxu0 0
      %2525 = vmatpush1.bf16.msra.mxu0 0
      %2526 = vmatprep.subr.bf16.mxu0 0
      %2527 = vmatpush1.bf16.msra.mxu0 0
      %2528 = vmatprep.subr.bf16.mxu0 0
      %2529 = vmatpush1.bf16.msra.mxu0 %v2512
      %2530 = vmatprep.subr.bf16.mxu0 0
      %2531 = vmatpush2.bf16.msra.mxu0 0
      %2532 = vmatprep.subr.bf16.mxu0 0
      %2533 = vmatpush2.bf16.msra.mxu0 0
      %2534 = vmatprep.subr.bf16.mxu0 0
      %2535 = vmatpush2.bf16.msra.mxu0 0
      %2536 = vmatprep.subr.bf16.mxu0 0
      %2537 = vmatpush2.bf16.msra.mxu0 0
      %2538 = vmatprep.subr.bf16.mxu0 0
      %2539 = vmatpush2.bf16.msra.mxu0 0
      %2540 = vmatprep.subr.bf16.mxu0 0
      %2541 = vmatpush2.bf16.msra.mxu0 0
      %2542 = vmatprep.subr.bf16.mxu0 0
      %2543 = vmatpush2.bf16.msra.mxu0 0
      %2544 = vmatprep.subr.bf16.mxu0 0
      %2545 = vmatpush2.bf16.msra.mxu0 0
      %2546 = vmatprep.mubr.bf16.mxu0 0
      %2547 = vmatmul.mubr.bf16.gmra.mxu0 %v2499
      %v2548 = vpop.f32.mrf.mxu0
      %v2549 = vadd.f32 %v2475, %v2548
      %v2550 = vpop.f32.mrf.mxu0
      %v2551 = vpop.f32.mrf.mxu0
      %v2552 = vadd.f32 %v2475, %v2551
      %v2553 = vpop.f32.mrf.mxu0
      %2554 = vmatprep.mubr.bf16.mxu0 0
      %2555 = vmatmul.mubr.bf16.gmra.mxu0 %v2502
      %v2556 = vpop.f32.mrf.mxu0
      %v2557 = vadd.f32 %v2475, %v2556
      %v2558 = vpop.f32.mrf.mxu0
      %v2559 = vpop.f32.mrf.mxu0
      %v2560 = vadd.f32 %v2475, %v2559
      %v2561 = vpop.f32.mrf.mxu0
      %2562 = vmatprep.mubr.bf16.mxu0 0
      %2563 = vmatmul.mubr.bf16.gmra.mxu0 %v2505
      %v2564 = vpop.f32.mrf.mxu0
      %v2565 = vadd.f32 %v2475, %v2564
      %v2566 = vpop.f32.mrf.mxu0
      %v2567 = vpop.f32.mrf.mxu0
      %v2568 = vadd.f32 %v2475, %v2567
      %v2569 = vpop.f32.mrf.mxu0
      %2570 = vmatprep.mubr.bf16.mxu0 0
      %2571 = vmatmul.mubr.bf16.gmra.mxu0 %v2508
      %v2572 = vpop.f32.mrf.mxu0
      %v2573 = vadd.f32 %v2475, %v2572
      %v2574 = vpop.f32.mrf.mxu0
      %v2575 = vpop.f32.mrf.mxu0
      %v2576 = vadd.f32 %v2475, %v2575
      %v2577 = vpop.f32.mrf.mxu0
      %2578 = vdwg.mxu0
      %v2579 = vld [vmem:[%s7] sm:$0x3]
      %v2580 = vld [vmem:[%s8] sm:$0x1]
      %v2582 = vlaneseq
      %v2583 = vshrl.u32 %v2582, 7
      %v2584 = vsub.s32 0, %v2583
      %v2585 = vrot.slane %v2580, %v2584
      %v2587 = vsel %vm2497, %v398, 0
      %v2589 = vsel %vm2497, %v399, 0
      %v2591 = vsel %vm2497, %v400, 0
      %v2593 = vsel %vm2497, %v401, 0
      %v2596 = vsel %vm2510, %v2579, 0
      %2598 = vmatprep.subr.bf16.mxu0 0
      %2599 = vmatpush1.bf16.msra.mxu0 0
      %2600 = vmatprep.subr.bf16.mxu0 0
      %2601 = vmatpush1.bf16.msra.mxu0 0
      %2602 = vmatprep.subr.bf16.mxu0 0
      %2603 = vmatpush1.bf16.msra.mxu0 0
      %2604 = vmatprep.subr.bf16.mxu0 0
      %2605 = vmatpush1.bf16.msra.mxu0 0
      %2606 = vmatprep.subr.bf16.mxu0 0
      %2607 = vmatpush1.bf16.msra.mxu0 0
      %2608 = vmatprep.subr.bf16.mxu0 0
      %2609 = vmatpush1.bf16.msra.mxu0 0
      %2610 = vmatprep.subr.bf16.mxu0 0
      %2611 = vmatpush1.bf16.msra.mxu0 0
      %2612 = vmatprep.subr.bf16.mxu0 0
      %2613 = vmatpush1.bf16.msra.mxu0 %v2596
      %2614 = vmatprep.subr.bf16.mxu0 0
      %2615 = vmatpush2.bf16.msra.mxu0 0
      %2616 = vmatprep.subr.bf16.mxu0 0
      %2617 = vmatpush2.bf16.msra.mxu0 0
      %2618 = vmatprep.subr.bf16.mxu0 0
      %2619 = vmatpush2.bf16.msra.mxu0 0
      %2620 = vmatprep.subr.bf16.mxu0 0
      %2621 = vmatpush2.bf16.msra.mxu0 0
      %2622 = vmatprep.subr.bf16.mxu0 0
      %2623 = vmatpush2.bf16.msra.mxu0 0
      %2624 = vmatprep.subr.bf16.mxu0 0
      %2625 = vmatpush2.bf16.msra.mxu0 0
      %2626 = vmatprep.subr.bf16.mxu0 0
      %2627 = vmatpush2.bf16.msra.mxu0 0
      %2628 = vmatprep.subr.bf16.mxu0 0
      %2629 = vmatpush2.bf16.msra.mxu0 0
      %2630 = vmatprep.mubr.bf16.mxu0 0
      %2631 = vmatmul.mubr.bf16.gmra.mxu0 %v2587
      %v2632 = vpop.f32.mrf.mxu0
      %v2633 = vadd.f32 %v2585, %v2632
      %v2634 = vpop.f32.mrf.mxu0
      %v2635 = vpop.f32.mrf.mxu0
      %v2636 = vadd.f32 %v2585, %v2635
      %v2637 = vpop.f32.mrf.mxu0
      %2638 = vmatprep.mubr.bf16.mxu0 0
      %2639 = vmatmul.mubr.bf16.gmra.mxu0 %v2589
      %v2640 = vpop.f32.mrf.mxu0
      %v2641 = vadd.f32 %v2585, %v2640
      %v2642 = vpop.f32.mrf.mxu0
      %v2643 = vpop.f32.mrf.mxu0
      %v2644 = vadd.f32 %v2585, %v2643
      %v2645 = vpop.f32.mrf.mxu0
      %2646 = vmatprep.mubr.bf16.mxu0 0
      %2647 = vmatmul.mubr.bf16.gmra.mxu0 %v2591
      %v2648 = vpop.f32.mrf.mxu0
      %v2649 = vadd.f32 %v2585, %v2648
      %v2650 = vpop.f32.mrf.mxu0
      %v2651 = vpop.f32.mrf.mxu0
      %v2652 = vadd.f32 %v2585, %v2651
      %v2653 = vpop.f32.mrf.mxu0
      %2654 = vmatprep.mubr.bf16.mxu0 0
      %2655 = vmatmul.mubr.bf16.gmra.mxu0 %v2593
      %v2656 = vpop.f32.mrf.mxu0
      %v2657 = vadd.f32 %v2585, %v2656
      %v2658 = vpop.f32.mrf.mxu0
      %v2659 = vpop.f32.mrf.mxu0
      %v2660 = vadd.f32 %v2585, %v2659
      %v2661 = vpop.f32.mrf.mxu0
      %2662 = vdwg.mxu0
      %v2663 = vadd.f32 %v2549, %v2633
      %v2664 = vadd.f32 %v2552, %v2636
      %v2665 = vadd.f32 %v2557, %v2641
      %v2666 = vadd.f32 %v2560, %v2644
      %v2667 = vadd.f32 %v2565, %v2649
      %v2668 = vadd.f32 %v2568, %v2652
      %v2669 = vadd.f32 %v2573, %v2657
      %v2670 = vadd.f32 %v2576, %v2660
      %v2671 = vmax.f32 %v2663, 0.0
      %v2672 = vmax.f32 %v2664, 0.0
      %v2673 = vmax.f32 %v2665, 0.0
      %v2674 = vmax.f32 %v2666, 0.0
      %v2675 = vmax.f32 %v2667, 0.0
      %v2676 = vmax.f32 %v2668, 0.0
      %v2677 = vmax.f32 %v2669, 0.0
      %v2678 = vmax.f32 %v2670, 0.0
      %2679 = vst.msk [vmem:[%s332] sm:$0xff] %vm408, %v2671
      %2680 = vst.msk [vmem:[%s332 + $0x8] sm:$0xff] %vm408, %v2672
      %2681 = vst.msk [vmem:[%s332 + $0x10] sm:$0xff] %vm408, %v2673
      %2682 = vst.msk [vmem:[%s332 + $0x18] sm:$0xff] %vm408, %v2674
      %2683 = vst.msk [vmem:[%s332 + $0x20] sm:$0xff] %vm408, %v2675
      %2684 = vst.msk [vmem:[%s332 + $0x28] sm:$0xff] %vm408, %v2676
      %2685 = vst.msk [vmem:[%s332 + $0x30] sm:$0xff] %vm408, %v2677
      %2686 = vst.msk [vmem:[%s332 + $0x38] sm:$0xff] %vm408, %v2678
      %p2687 = scmp.lt.s32.totalorder %s20, 1
      %s2688 = scalar_select %p2687, %s20, 1
      %s2689 = smul.addr %s2688, 8
      %s2690 = smul.addr %s2689, 8
      %s2691 = scalar_lea.vmem %s9, %s2690
      // Predicated region
      $region57: #{tpu_custom_call.1} parent=55 // pred_check
        %p2692 = pneg %p232
      $region58: #{tpu_custom_call.1} parent=55 // pred_check_branch
        %2694 = sbr.rel (%p2692) target = $region60
      $region59: #{tpu_custom_call.1} parent=55 // pred_region
        _
      $region60: #{tpu_custom_call.1} parent=55 // pred_fallthru
        _
    $region56: #{tpu_custom_call.1} parent=5 // pred_fallthru
      _
    %p2695 = scmp.le.s32.totalorder 2, %s15
    // Predicated region
    $region61: #{tpu_custom_call.1} parent=5 // pred_check
      %p2696 = pneg %p2695
    $region62: #{tpu_custom_call.1} parent=5 // pred_check_branch
      %2698 = sbr.rel (%p2696) target = $region64
    $region63: #{tpu_custom_call.1} parent=5 // pred_region
      %s2699 = ssub.s32 %s15, 2
      // Predicated region
      $region65: #{tpu_custom_call.1} parent=63 // pred_check
        %p2700 = pneg %p238
      $region66: #{tpu_custom_call.1} parent=63 // pred_check_branch
        %2702 = sbr.rel (%p2700) target = $region68
      $region67: #{tpu_custom_call.1} parent=63 // pred_region
        %p2703 = scmp.lt.s32.totalorder %s21, 1
        %s2704 = scalar_select %p2703, %s21, 1
        %s2705 = smul.addr %s2704, 8
        %s2706 = smul.addr %s2705, 8
        %s2707 = scalar_lea.vmem %s9, %s2706
      $region68: #{tpu_custom_call.1} parent=63 // pred_fallthru
        _
    $region64: #{tpu_custom_call.1} parent=5 // pred_fallthru
      _
  $region6: #{tpu_custom_call.1} parent=0 // loop_footer
    %s19 = sadd.s32 1, %s15
  $region7: #{tpu_custom_call.1} parent=0 // loop_footer_branch
    %14 = sbr.rel target = $region3
  $region8: #{tpu_custom_call.1} parent=0 // loop_exit
    _

</llo_original>
